<compile_context>
chip_gen: v7x
topology: tpu7x:2x2x1
jax: 0.10.0
libtpu: 0.0.40
codegen_flags: <defaults>
</compile_context>

<pallas_src>
import math

import jax
import jax.numpy as jnp
from jax.experimental import pallas as pl
from jax.experimental.pallas import tpu as pltpu

# ------------------------- configuration -------------------------
INPUT_DIM = 4
D_MODEL = 32
NHEAD = 4
NUM_LAYERS = 2
DIM_FF = 64
MLP_UNITS = (32, 16)
BATCH = 2
SEQ = 8
LN_EPS = 1e-5          # nn.TransformerEncoderLayer / nn.LayerNorm default
OUT_PAD = 128          # lane-dense padding for the scalar output column
NEG_INF = -1e30        # additive mask value for cross-batch attention


# ------------------------- positional encoding table -------------------------
def positional_encoding(seq_len, d_model):
    pos = jnp.arange(seq_len, dtype=jnp.float32)[:, None]
    div = jnp.exp(
        jnp.arange(0, d_model, 2, dtype=jnp.float32) * (-math.log(10000.0) / d_model)
    )
    pe = jnp.zeros((seq_len, d_model), jnp.float32)
    pe = pe.at[:, 0::2].set(jnp.sin(pos * div))
    pe = pe.at[:, 1::2].set(jnp.cos(pos * div))
    return pe


# ------------------------- fused forward kernel -------------------------
def _make_fused_kernel(B, S, D, H, num_layers):
    dh = D // H
    scale = 1.0 / math.sqrt(dh)
    inv_d = 1.0 / D

    def layernorm(h, gamma, beta):
        mu = jnp.sum(h, axis=-1, keepdims=True) * inv_d
        c = h - mu
        var = jnp.sum(c * c, axis=-1, keepdims=True) * inv_d
        return c * jax.lax.rsqrt(var + LN_EPS) * gamma + beta

    def kernel(x_ref, pe_ref, mask_ref, pool_ref,
               w_in_ref, b_in_ref,
               wqkv_ref, bqkv_ref, wo_ref, bo_ref,
               g1_ref, be1_ref, w1_ref, bf1_ref, w2_ref, bf2_ref,
               g2_ref, be2_ref,
               wm1_ref, bm1_ref, wm2_ref, bm2_ref,
               wout_ref, bout_ref, o_ref):
        # ---- input projection + positional encoding (dropout = identity) ----
        h = (jnp.dot(x_ref[...], w_in_ref[...], preferred_element_type=jnp.float32)
             + b_in_ref[...] + pe_ref[...])                       # (B*S, D)

        mask = mask_ref[...]                                      # (B*S, B*S)

        # ---- transformer encoder layers (post-norm, relu FFN) ----
        for l in range(num_layers):
            # read each layer's parameters exactly once
            wqkv = wqkv_ref[l]; bqkv = bqkv_ref[l]
            wo = wo_ref[l];     bo = bo_ref[l]
            g1 = g1_ref[l];     be1 = be1_ref[l]
            w1 = w1_ref[l];     bf1 = bf1_ref[l]
            w2 = w2_ref[l];     bf2 = bf2_ref[l]
            g2 = g2_ref[l];     be2 = be2_ref[l]

            # fused Q/K/V projection: one (B*S, D) @ (D, 3D) matmul
            qkv = jnp.dot(h, wqkv, preferred_element_type=jnp.float32) + bqkv

            # batched-over-batch attention with block-diagonal mask;
            # heads accumulate directly through Wo (no concatenation).
            acc = jnp.zeros((B * S, D), jnp.float32)
            for hd in range(H):
                c0 = hd * dh
                qh = qkv[:, c0:c0 + dh]
                kh = qkv[:, D + c0:D + c0 + dh]
                vh = qkv[:, 2 * D + c0:2 * D + c0 + dh]
                s = jax.lax.dot_general(
                    qh, kh, (((1,), (1,)), ((), ())),
                    preferred_element_type=jnp.float32) * scale + mask
                s = s - jnp.max(s, axis=-1, keepdims=True)
                p = jnp.exp(s)
                p = p * pl.reciprocal(
                    jnp.sum(p, axis=-1, keepdims=True), approx=True)
                ctx = jnp.dot(p, vh, preferred_element_type=jnp.float32)
                acc = acc + jnp.dot(ctx, wo[c0:c0 + dh, :],
                                    preferred_element_type=jnp.float32)
            attn = acc + bo                                       # (B*S, D)

            h1 = layernorm(h + attn, g1, be1)
            ff = jnp.maximum(
                jnp.dot(h1, w1, preferred_element_type=jnp.float32) + bf1, 0.0)
            ff = jnp.dot(ff, w2, preferred_element_type=jnp.float32) + bf2
            h = layernorm(h1 + ff, g2, be2)

        # ---- mean over the sequence dimension via one pooling matmul ----
        pooled = jnp.dot(pool_ref[...], h,
                         preferred_element_type=jnp.float32)     # (B, D)

        # ---- MLP head (Linear + ReLU; dropout = identity) ----
        m = jnp.maximum(
            jnp.dot(pooled, wm1_ref[...], preferred_element_type=jnp.float32)
            + bm1_ref[...], 0.0)
        m = jnp.maximum(
            jnp.dot(m, wm2_ref[...], preferred_element_type=jnp.float32)
            + bm2_ref[...], 0.0)

        # ---- output layer, written lane-dense (column 0 holds the result) ----
        o_ref[...] = (jnp.dot(m, wout_ref[...], preferred_element_type=jnp.float32)
                      + bout_ref[...])

    return kernel


def fused_forward(x_flat, pe_flat, mask, pool, p):
    kern = _make_fused_kernel(BATCH, SEQ, D_MODEL, NHEAD, NUM_LAYERS)
    vmem = pl.BlockSpec(memory_space=pltpu.MemorySpace.VMEM)
    args = (x_flat, pe_flat, mask, pool,
            p["w_in"], p["b_in"],
            p["wqkv"], p["bqkv"], p["wo"], p["bo"],
            p["g1"], p["be1"], p["w1"], p["bf1"], p["w2"], p["bf2"],
            p["g2"], p["be2"],
            p["wm1"], p["bm1"], p["wm2"], p["bm2"],
            p["w_out"], p["b_out"])
    return pl.pallas_call(
        kern,
        out_shape=jax.ShapeDtypeStruct((BATCH, OUT_PAD), jnp.float32),
        in_specs=[vmem] * len(args),
        out_specs=vmem,
    )(*args)


@jax.jit
def transformer_forward(x, params):
    # TODO(synk): dropout layers are identity here (inference mode) — no RNG dropout.
    B, S, _ = x.shape
    # Constant tables (constant-folded under jit):
    pe_flat = jnp.tile(positional_encoding(S, D_MODEL), (B, 1))        # (B*S, D)
    batch_ids = jnp.repeat(jnp.arange(B), S)                           # (B*S,)
    same = batch_ids[:, None] == batch_ids[None, :]
    mask = jnp.where(same, 0.0, NEG_INF).astype(jnp.float32)           # (B*S, B*S)
    pool = jnp.where(jnp.arange(B)[:, None] == batch_ids[None, :],
                     1.0 / S, 0.0).astype(jnp.float32)                 # (B, B*S)
    out_pad = fused_forward(x.reshape(B * S, -1), pe_flat, mask, pool, params)
    return out_pad[:, :1]                                              # (B, 1)


# ------------------------- deterministic parameter init -------------------------
def init_params(key):
    keys = iter(jax.random.split(key, 64))

    def nrm(shape, scale=0.1):
        return (scale * jax.random.normal(next(keys), shape)).astype(jnp.float32)

    def stack(make):
        return jnp.stack([make() for _ in range(NUM_LAYERS)], axis=0)

    p = {"w_in": nrm((INPUT_DIM, D_MODEL)), "b_in": nrm((1, D_MODEL))}

    # fused QKV: (L, D, 3D) weights, (L, 1, 3D) biases  (order: q | k | v)
    p["wqkv"] = stack(lambda: jnp.concatenate(
        [nrm((D_MODEL, D_MODEL)) for _ in range(3)], axis=1))
    p["bqkv"] = stack(lambda: jnp.concatenate(
        [nrm((1, D_MODEL)) for _ in range(3)], axis=1))
    p["wo"] = stack(lambda: nrm((D_MODEL, D_MODEL)))
    p["bo"] = stack(lambda: nrm((1, D_MODEL)))
    p["g1"] = jnp.ones((NUM_LAYERS, 1, D_MODEL), jnp.float32)
    p["be1"] = jnp.zeros((NUM_LAYERS, 1, D_MODEL), jnp.float32)
    p["w1"] = stack(lambda: nrm((D_MODEL, DIM_FF)))
    p["bf1"] = stack(lambda: nrm((1, DIM_FF)))
    p["w2"] = stack(lambda: nrm((DIM_FF, D_MODEL)))
    p["bf2"] = stack(lambda: nrm((1, D_MODEL)))
    p["g2"] = jnp.ones((NUM_LAYERS, 1, D_MODEL), jnp.float32)
    p["be2"] = jnp.zeros((NUM_LAYERS, 1, D_MODEL), jnp.float32)

    # MLP head
    in_size = D_MODEL
    mlp_w, mlp_b = [], []
    for units in MLP_UNITS:
        mlp_w.append(nrm((in_size, units)))
        mlp_b.append(nrm((1, units)))
        in_size = units
    p["wm1"], p["bm1"] = mlp_w[0], mlp_b[0]
    p["wm2"], p["bm2"] = mlp_w[1], mlp_b[1]

    # output layer, lane-padded to OUT_PAD columns (only column 0 is meaningful)
    w_out = nrm((in_size, 1))
    b_out = nrm((1, 1))
    p["w_out"] = jnp.pad(w_out, ((0, 0), (0, OUT_PAD - 1)))
    p["b_out"] = jnp.pad(b_out, ((0, 0), (0, OUT_PAD - 1)))
    return p


if __name__ == "__main__":
    key = jax.random.PRNGKey(0)
    pkey, xkey = jax.random.split(key)
    params = init_params(pkey)
    x = jax.random.normal(xkey, (BATCH, SEQ, INPUT_DIM), dtype=jnp.float32)
    out = transformer_forward(x, params)
    jax.block_until_ready(out)
    assert out.shape == (BATCH, 1), out.shape
    print("KERNEL_OK")
</pallas_src>

<mosaic_0001>
module attributes {stable_mosaic.version = 11 : i64} {
  func.func @kernel(%arg0: memref<16x4xf32, #tpu.memory_space<vmem>>, %arg1: memref<16x32xf32, #tpu.memory_space<vmem>>, %arg2: memref<16x16xf32, #tpu.memory_space<vmem>>, %arg3: memref<2x16xf32, #tpu.memory_space<vmem>>, %arg4: memref<4x32xf32, #tpu.memory_space<vmem>>, %arg5: memref<1x32xf32, #tpu.memory_space<vmem>>, %arg6: memref<2x32x96xf32, #tpu.memory_space<vmem>>, %arg7: memref<2x1x96xf32, #tpu.memory_space<vmem>>, %arg8: memref<2x32x32xf32, #tpu.memory_space<vmem>>, %arg9: memref<2x1x32xf32, #tpu.memory_space<vmem>>, %arg10: memref<2x1x32xf32, #tpu.memory_space<vmem>>, %arg11: memref<2x1x32xf32, #tpu.memory_space<vmem>>, %arg12: memref<2x32x64xf32, #tpu.memory_space<vmem>>, %arg13: memref<2x1x64xf32, #tpu.memory_space<vmem>>, %arg14: memref<2x64x32xf32, #tpu.memory_space<vmem>>, %arg15: memref<2x1x32xf32, #tpu.memory_space<vmem>>, %arg16: memref<2x1x32xf32, #tpu.memory_space<vmem>>, %arg17: memref<2x1x32xf32, #tpu.memory_space<vmem>>, %arg18: memref<32x32xf32, #tpu.memory_space<vmem>>, %arg19: memref<1x32xf32, #tpu.memory_space<vmem>>, %arg20: memref<32x16xf32, #tpu.memory_space<vmem>>, %arg21: memref<1x16xf32, #tpu.memory_space<vmem>>, %arg22: memref<16x128xf32, #tpu.memory_space<vmem>>, %arg23: memref<1x128xf32, #tpu.memory_space<vmem>>, %arg24: memref<2x128xf32, #tpu.memory_space<vmem>>) attributes {dimension_semantics = [], scalar_prefetch = 0 : i64, scratch_operands = 0 : i64, tpu.core_type = #tpu.core_type<tc>} {
    %c0 = arith.constant 0 : index
    %c0_0 = arith.constant 0 : index
    %0 = vector.load %arg0[%c0, %c0_0] : memref<16x4xf32, #tpu.memory_space<vmem>>, vector<16x4xf32>
    %c0_1 = arith.constant 0 : index
    %c0_2 = arith.constant 0 : index
    %1 = vector.load %arg4[%c0_1, %c0_2] : memref<4x32xf32, #tpu.memory_space<vmem>>, vector<4x32xf32>
    %cst = arith.constant dense<0.000000e+00> : vector<16x32xf32>
    %2 = tpu.matmul %0, %1, %cst {dimension_numbers = #tpu.dot_dimension_numbers<[1], [0], [0], [1], [0, 0, 1, 1], [], []>} : vector<16x4xf32>, vector<4x32xf32>, vector<16x32xf32> -> vector<16x32xf32>
    %c0_3 = arith.constant 0 : index
    %c0_4 = arith.constant 0 : index
    %3 = vector.load %arg5[%c0_3, %c0_4] : memref<1x32xf32, #tpu.memory_space<vmem>>, vector<1x32xf32>
    %4 = vector.broadcast %3 : vector<1x32xf32> to vector<16x32xf32>
    %5 = arith.addf %2, %4 : vector<16x32xf32>
    %c0_5 = arith.constant 0 : index
    %c0_6 = arith.constant 0 : index
    %6 = vector.load %arg1[%c0_5, %c0_6] : memref<16x32xf32, #tpu.memory_space<vmem>>, vector<16x32xf32>
    %7 = arith.addf %5, %6 : vector<16x32xf32>
    %c0_7 = arith.constant 0 : index
    %c0_8 = arith.constant 0 : index
    %8 = vector.load %arg2[%c0_7, %c0_8] : memref<16x16xf32, #tpu.memory_space<vmem>>, vector<16x16xf32>
    %c0_9 = arith.constant 0 : index
    %c0_10 = arith.constant 0 : index
    %c0_11 = arith.constant 0 : index
    %9 = vector.load %arg6[%c0_9, %c0_10, %c0_11] : memref<2x32x96xf32, #tpu.memory_space<vmem>>, vector<1x32x96xf32>
    %10 = vector.shape_cast %9 : vector<1x32x96xf32> to vector<32x96xf32>
    %c0_12 = arith.constant 0 : index
    %c0_13 = arith.constant 0 : index
    %c0_14 = arith.constant 0 : index
    %11 = vector.load %arg7[%c0_12, %c0_13, %c0_14] : memref<2x1x96xf32, #tpu.memory_space<vmem>>, vector<1x1x96xf32>
    %12 = vector.shape_cast %11 : vector<1x1x96xf32> to vector<1x96xf32>
    %c0_15 = arith.constant 0 : index
    %c0_16 = arith.constant 0 : index
    %c0_17 = arith.constant 0 : index
    %13 = vector.load %arg8[%c0_15, %c0_16, %c0_17] : memref<2x32x32xf32, #tpu.memory_space<vmem>>, vector<1x32x32xf32>
    %14 = vector.shape_cast %13 : vector<1x32x32xf32> to vector<32x32xf32>
    %c0_18 = arith.constant 0 : index
    %c0_19 = arith.constant 0 : index
    %c0_20 = arith.constant 0 : index
    %15 = vector.load %arg9[%c0_18, %c0_19, %c0_20] : memref<2x1x32xf32, #tpu.memory_space<vmem>>, vector<1x1x32xf32>
    %16 = vector.shape_cast %15 : vector<1x1x32xf32> to vector<1x32xf32>
    %c0_21 = arith.constant 0 : index
    %c0_22 = arith.constant 0 : index
    %c0_23 = arith.constant 0 : index
    %17 = vector.load %arg10[%c0_21, %c0_22, %c0_23] : memref<2x1x32xf32, #tpu.memory_space<vmem>>, vector<1x1x32xf32>
    %18 = vector.shape_cast %17 : vector<1x1x32xf32> to vector<1x32xf32>
    %c0_24 = arith.constant 0 : index
    %c0_25 = arith.constant 0 : index
    %c0_26 = arith.constant 0 : index
    %19 = vector.load %arg11[%c0_24, %c0_25, %c0_26] : memref<2x1x32xf32, #tpu.memory_space<vmem>>, vector<1x1x32xf32>
    %20 = vector.shape_cast %19 : vector<1x1x32xf32> to vector<1x32xf32>
    %c0_27 = arith.constant 0 : index
    %c0_28 = arith.constant 0 : index
    %c0_29 = arith.constant 0 : index
    %21 = vector.load %arg12[%c0_27, %c0_28, %c0_29] : memref<2x32x64xf32, #tpu.memory_space<vmem>>, vector<1x32x64xf32>
    %22 = vector.shape_cast %21 : vector<1x32x64xf32> to vector<32x64xf32>
    %c0_30 = arith.constant 0 : index
    %c0_31 = arith.constant 0 : index
    %c0_32 = arith.constant 0 : index
    %23 = vector.load %arg13[%c0_30, %c0_31, %c0_32] : memref<2x1x64xf32, #tpu.memory_space<vmem>>, vector<1x1x64xf32>
    %24 = vector.shape_cast %23 : vector<1x1x64xf32> to vector<1x64xf32>
    %c0_33 = arith.constant 0 : index
    %c0_34 = arith.constant 0 : index
    %c0_35 = arith.constant 0 : index
    %25 = vector.load %arg14[%c0_33, %c0_34, %c0_35] : memref<2x64x32xf32, #tpu.memory_space<vmem>>, vector<1x64x32xf32>
    %26 = vector.shape_cast %25 : vector<1x64x32xf32> to vector<64x32xf32>
    %c0_36 = arith.constant 0 : index
    %c0_37 = arith.constant 0 : index
    %c0_38 = arith.constant 0 : index
    %27 = vector.load %arg15[%c0_36, %c0_37, %c0_38] : memref<2x1x32xf32, #tpu.memory_space<vmem>>, vector<1x1x32xf32>
    %28 = vector.shape_cast %27 : vector<1x1x32xf32> to vector<1x32xf32>
    %c0_39 = arith.constant 0 : index
    %c0_40 = arith.constant 0 : index
    %c0_41 = arith.constant 0 : index
    %29 = vector.load %arg16[%c0_39, %c0_40, %c0_41] : memref<2x1x32xf32, #tpu.memory_space<vmem>>, vector<1x1x32xf32>
    %30 = vector.shape_cast %29 : vector<1x1x32xf32> to vector<1x32xf32>
    %c0_42 = arith.constant 0 : index
    %c0_43 = arith.constant 0 : index
    %c0_44 = arith.constant 0 : index
    %31 = vector.load %arg17[%c0_42, %c0_43, %c0_44] : memref<2x1x32xf32, #tpu.memory_space<vmem>>, vector<1x1x32xf32>
    %32 = vector.shape_cast %31 : vector<1x1x32xf32> to vector<1x32xf32>
    %cst_45 = arith.constant dense<0.000000e+00> : vector<16x96xf32>
    %33 = tpu.matmul %7, %10, %cst_45 {dimension_numbers = #tpu.dot_dimension_numbers<[1], [0], [0], [1], [0, 0, 1, 1], [], []>} : vector<16x32xf32>, vector<32x96xf32>, vector<16x96xf32> -> vector<16x96xf32>
    %34 = vector.broadcast %12 : vector<1x96xf32> to vector<16x96xf32>
    %35 = arith.addf %33, %34 : vector<16x96xf32>
    %cst_46 = arith.constant 0.000000e+00 : f32
    %36 = vector.broadcast %cst_46 : f32 to vector<16x32xf32>
    %37 = vector.extract_strided_slice %35 {offsets = [0, 0], sizes = [16, 8], strides = [1, 1]} : vector<16x96xf32> to vector<16x8xf32>
    %38 = vector.extract_strided_slice %35 {offsets = [0, 32], sizes = [16, 8], strides = [1, 1]} : vector<16x96xf32> to vector<16x8xf32>
    %39 = vector.extract_strided_slice %35 {offsets = [0, 64], sizes = [16, 8], strides = [1, 1]} : vector<16x96xf32> to vector<16x8xf32>
    %cst_47 = arith.constant dense<0.000000e+00> : vector<16x16xf32>
    %40 = tpu.matmul %37, %38, %cst_47 {dimension_numbers = #tpu.dot_dimension_numbers<[1], [1], [0], [0], [0, 0, 1, 0], [], []>} : vector<16x8xf32>, vector<16x8xf32>, vector<16x16xf32> -> vector<16x16xf32>
    %cst_48 = arith.constant 0.353553385 : f32
    %41 = vector.broadcast %cst_48 : f32 to vector<16x16xf32>
    %42 = arith.mulf %40, %41 : vector<16x16xf32>
    %43 = arith.addf %42, %8 : vector<16x16xf32>
    %cst_49 = arith.constant dense<0xFF800000> : vector<16xf32>
    %44 = vector.multi_reduction <maximumf>, %43, %cst_49 [1] : vector<16x16xf32> to vector<16xf32>
    %45 = vector.shape_cast %44 : vector<16xf32> to vector<16x1xf32>
    %46 = vector.broadcast %45 : vector<16x1xf32> to vector<16x16xf32>
    %47 = arith.subf %43, %46 : vector<16x16xf32>
    %48 = math.exp %47 : vector<16x16xf32>
    %cst_50 = arith.constant dense<0.000000e+00> : vector<16xf32>
    %49 = vector.multi_reduction <add>, %48, %cst_50 [1] : vector<16x16xf32> to vector<16xf32>
    %50 = vector.shape_cast %49 : vector<16xf32> to vector<16x1xf32>
    %51 = tpu.reciprocal %50 {approx = true} : vector<16x1xf32> -> vector<16x1xf32>
    %52 = vector.broadcast %51 : vector<16x1xf32> to vector<16x16xf32>
    %53 = arith.mulf %48, %52 : vector<16x16xf32>
    %cst_51 = arith.constant dense<0.000000e+00> : vector<16x8xf32>
    %54 = tpu.matmul %53, %39, %cst_51 {dimension_numbers = #tpu.dot_dimension_numbers<[1], [0], [0], [1], [0, 0, 1, 1], [], []>} : vector<16x16xf32>, vector<16x8xf32>, vector<16x8xf32> -> vector<16x8xf32>
    %55 = vector.extract_strided_slice %14 {offsets = [0, 0], sizes = [8, 32], strides = [1, 1]} : vector<32x32xf32> to vector<8x32xf32>
    %cst_52 = arith.constant dense<0.000000e+00> : vector<16x32xf32>
    %56 = tpu.matmul %54, %55, %cst_52 {dimension_numbers = #tpu.dot_dimension_numbers<[1], [0], [0], [1], [0, 0, 1, 1], [], []>} : vector<16x8xf32>, vector<8x32xf32>, vector<16x32xf32> -> vector<16x32xf32>
    %57 = arith.addf %36, %56 : vector<16x32xf32>
    %58 = vector.extract_strided_slice %35 {offsets = [0, 8], sizes = [16, 8], strides = [1, 1]} : vector<16x96xf32> to vector<16x8xf32>
    %59 = vector.extract_strided_slice %35 {offsets = [0, 40], sizes = [16, 8], strides = [1, 1]} : vector<16x96xf32> to vector<16x8xf32>
    %60 = vector.extract_strided_slice %35 {offsets = [0, 72], sizes = [16, 8], strides = [1, 1]} : vector<16x96xf32> to vector<16x8xf32>
    %cst_53 = arith.constant dense<0.000000e+00> : vector<16x16xf32>
    %61 = tpu.matmul %58, %59, %cst_53 {dimension_numbers = #tpu.dot_dimension_numbers<[1], [1], [0], [0], [0, 0, 1, 0], [], []>} : vector<16x8xf32>, vector<16x8xf32>, vector<16x16xf32> -> vector<16x16xf32>
    %cst_54 = arith.constant 0.353553385 : f32
    %62 = vector.broadcast %cst_54 : f32 to vector<16x16xf32>
    %63 = arith.mulf %61, %62 : vector<16x16xf32>
    %64 = arith.addf %63, %8 : vector<16x16xf32>
    %cst_55 = arith.constant dense<0xFF800000> : vector<16xf32>
    %65 = vector.multi_reduction <maximumf>, %64, %cst_55 [1] : vector<16x16xf32> to vector<16xf32>
    %66 = vector.shape_cast %65 : vector<16xf32> to vector<16x1xf32>
    %67 = vector.broadcast %66 : vector<16x1xf32> to vector<16x16xf32>
    %68 = arith.subf %64, %67 : vector<16x16xf32>
    %69 = math.exp %68 : vector<16x16xf32>
    %cst_56 = arith.constant dense<0.000000e+00> : vector<16xf32>
    %70 = vector.multi_reduction <add>, %69, %cst_56 [1] : vector<16x16xf32> to vector<16xf32>
    %71 = vector.shape_cast %70 : vector<16xf32> to vector<16x1xf32>
    %72 = tpu.reciprocal %71 {approx = true} : vector<16x1xf32> -> vector<16x1xf32>
    %73 = vector.broadcast %72 : vector<16x1xf32> to vector<16x16xf32>
    %74 = arith.mulf %69, %73 : vector<16x16xf32>
    %cst_57 = arith.constant dense<0.000000e+00> : vector<16x8xf32>
    %75 = tpu.matmul %74, %60, %cst_57 {dimension_numbers = #tpu.dot_dimension_numbers<[1], [0], [0], [1], [0, 0, 1, 1], [], []>} : vector<16x16xf32>, vector<16x8xf32>, vector<16x8xf32> -> vector<16x8xf32>
    %76 = vector.extract_strided_slice %14 {offsets = [8, 0], sizes = [8, 32], strides = [1, 1]} : vector<32x32xf32> to vector<8x32xf32>
    %cst_58 = arith.constant dense<0.000000e+00> : vector<16x32xf32>
    %77 = tpu.matmul %75, %76, %cst_58 {dimension_numbers = #tpu.dot_dimension_numbers<[1], [0], [0], [1], [0, 0, 1, 1], [], []>} : vector<16x8xf32>, vector<8x32xf32>, vector<16x32xf32> -> vector<16x32xf32>
    %78 = arith.addf %57, %77 : vector<16x32xf32>
    %79 = vector.extract_strided_slice %35 {offsets = [0, 16], sizes = [16, 8], strides = [1, 1]} : vector<16x96xf32> to vector<16x8xf32>
    %80 = vector.extract_strided_slice %35 {offsets = [0, 48], sizes = [16, 8], strides = [1, 1]} : vector<16x96xf32> to vector<16x8xf32>
    %81 = vector.extract_strided_slice %35 {offsets = [0, 80], sizes = [16, 8], strides = [1, 1]} : vector<16x96xf32> to vector<16x8xf32>
    %cst_59 = arith.constant dense<0.000000e+00> : vector<16x16xf32>
    %82 = tpu.matmul %79, %80, %cst_59 {dimension_numbers = #tpu.dot_dimension_numbers<[1], [1], [0], [0], [0, 0, 1, 0], [], []>} : vector<16x8xf32>, vector<16x8xf32>, vector<16x16xf32> -> vector<16x16xf32>
    %cst_60 = arith.constant 0.353553385 : f32
    %83 = vector.broadcast %cst_60 : f32 to vector<16x16xf32>
    %84 = arith.mulf %82, %83 : vector<16x16xf32>
    %85 = arith.addf %84, %8 : vector<16x16xf32>
    %cst_61 = arith.constant dense<0xFF800000> : vector<16xf32>
    %86 = vector.multi_reduction <maximumf>, %85, %cst_61 [1] : vector<16x16xf32> to vector<16xf32>
    %87 = vector.shape_cast %86 : vector<16xf32> to vector<16x1xf32>
    %88 = vector.broadcast %87 : vector<16x1xf32> to vector<16x16xf32>
    %89 = arith.subf %85, %88 : vector<16x16xf32>
    %90 = math.exp %89 : vector<16x16xf32>
    %cst_62 = arith.constant dense<0.000000e+00> : vector<16xf32>
    %91 = vector.multi_reduction <add>, %90, %cst_62 [1] : vector<16x16xf32> to vector<16xf32>
    %92 = vector.shape_cast %91 : vector<16xf32> to vector<16x1xf32>
    %93 = tpu.reciprocal %92 {approx = true} : vector<16x1xf32> -> vector<16x1xf32>
    %94 = vector.broadcast %93 : vector<16x1xf32> to vector<16x16xf32>
    %95 = arith.mulf %90, %94 : vector<16x16xf32>
    %cst_63 = arith.constant dense<0.000000e+00> : vector<16x8xf32>
    %96 = tpu.matmul %95, %81, %cst_63 {dimension_numbers = #tpu.dot_dimension_numbers<[1], [0], [0], [1], [0, 0, 1, 1], [], []>} : vector<16x16xf32>, vector<16x8xf32>, vector<16x8xf32> -> vector<16x8xf32>
    %97 = vector.extract_strided_slice %14 {offsets = [16, 0], sizes = [8, 32], strides = [1, 1]} : vector<32x32xf32> to vector<8x32xf32>
    %cst_64 = arith.constant dense<0.000000e+00> : vector<16x32xf32>
    %98 = tpu.matmul %96, %97, %cst_64 {dimension_numbers = #tpu.dot_dimension_numbers<[1], [0], [0], [1], [0, 0, 1, 1], [], []>} : vector<16x8xf32>, vector<8x32xf32>, vector<16x32xf32> -> vector<16x32xf32>
    %99 = arith.addf %78, %98 : vector<16x32xf32>
    %100 = vector.extract_strided_slice %35 {offsets = [0, 24], sizes = [16, 8], strides = [1, 1]} : vector<16x96xf32> to vector<16x8xf32>
    %101 = vector.extract_strided_slice %35 {offsets = [0, 56], sizes = [16, 8], strides = [1, 1]} : vector<16x96xf32> to vector<16x8xf32>
    %102 = vector.extract_strided_slice %35 {offsets = [0, 88], sizes = [16, 8], strides = [1, 1]} : vector<16x96xf32> to vector<16x8xf32>
    %cst_65 = arith.constant dense<0.000000e+00> : vector<16x16xf32>
    %103 = tpu.matmul %100, %101, %cst_65 {dimension_numbers = #tpu.dot_dimension_numbers<[1], [1], [0], [0], [0, 0, 1, 0], [], []>} : vector<16x8xf32>, vector<16x8xf32>, vector<16x16xf32> -> vector<16x16xf32>
    %cst_66 = arith.constant 0.353553385 : f32
    %104 = vector.broadcast %cst_66 : f32 to vector<16x16xf32>
    %105 = arith.mulf %103, %104 : vector<16x16xf32>
    %106 = arith.addf %105, %8 : vector<16x16xf32>
    %cst_67 = arith.constant dense<0xFF800000> : vector<16xf32>
    %107 = vector.multi_reduction <maximumf>, %106, %cst_67 [1] : vector<16x16xf32> to vector<16xf32>
    %108 = vector.shape_cast %107 : vector<16xf32> to vector<16x1xf32>
    %109 = vector.broadcast %108 : vector<16x1xf32> to vector<16x16xf32>
    %110 = arith.subf %106, %109 : vector<16x16xf32>
    %111 = math.exp %110 : vector<16x16xf32>
    %cst_68 = arith.constant dense<0.000000e+00> : vector<16xf32>
    %112 = vector.multi_reduction <add>, %111, %cst_68 [1] : vector<16x16xf32> to vector<16xf32>
    %113 = vector.shape_cast %112 : vector<16xf32> to vector<16x1xf32>
    %114 = tpu.reciprocal %113 {approx = true} : vector<16x1xf32> -> vector<16x1xf32>
    %115 = vector.broadcast %114 : vector<16x1xf32> to vector<16x16xf32>
    %116 = arith.mulf %111, %115 : vector<16x16xf32>
    %cst_69 = arith.constant dense<0.000000e+00> : vector<16x8xf32>
    %117 = tpu.matmul %116, %102, %cst_69 {dimension_numbers = #tpu.dot_dimension_numbers<[1], [0], [0], [1], [0, 0, 1, 1], [], []>} : vector<16x16xf32>, vector<16x8xf32>, vector<16x8xf32> -> vector<16x8xf32>
    %118 = vector.extract_strided_slice %14 {offsets = [24, 0], sizes = [8, 32], strides = [1, 1]} : vector<32x32xf32> to vector<8x32xf32>
    %cst_70 = arith.constant dense<0.000000e+00> : vector<16x32xf32>
    %119 = tpu.matmul %117, %118, %cst_70 {dimension_numbers = #tpu.dot_dimension_numbers<[1], [0], [0], [1], [0, 0, 1, 1], [], []>} : vector<16x8xf32>, vector<8x32xf32>, vector<16x32xf32> -> vector<16x32xf32>
    %120 = arith.addf %99, %119 : vector<16x32xf32>
    %121 = vector.broadcast %16 : vector<1x32xf32> to vector<16x32xf32>
    %122 = arith.addf %120, %121 : vector<16x32xf32>
    %123 = arith.addf %7, %122 : vector<16x32xf32>
    %cst_71 = arith.constant dense<0.000000e+00> : vector<16xf32>
    %124 = vector.multi_reduction <add>, %123, %cst_71 [1] : vector<16x32xf32> to vector<16xf32>
    %125 = vector.shape_cast %124 : vector<16xf32> to vector<16x1xf32>
    %cst_72 = arith.constant 3.125000e-02 : f32
    %126 = vector.broadcast %cst_72 : f32 to vector<16x1xf32>
    %127 = arith.mulf %125, %126 : vector<16x1xf32>
    %128 = vector.broadcast %127 : vector<16x1xf32> to vector<16x32xf32>
    %129 = arith.subf %123, %128 : vector<16x32xf32>
    %130 = arith.mulf %129, %129 : vector<16x32xf32>
    %cst_73 = arith.constant dense<0.000000e+00> : vector<16xf32>
    %131 = vector.multi_reduction <add>, %130, %cst_73 [1] : vector<16x32xf32> to vector<16xf32>
    %132 = vector.shape_cast %131 : vector<16xf32> to vector<16x1xf32>
    %cst_74 = arith.constant 3.125000e-02 : f32
    %133 = vector.broadcast %cst_74 : f32 to vector<16x1xf32>
    %134 = arith.mulf %132, %133 : vector<16x1xf32>
    %cst_75 = arith.constant 9.99999974E-6 : f32
    %135 = vector.broadcast %cst_75 : f32 to vector<16x1xf32>
    %136 = arith.addf %134, %135 : vector<16x1xf32>
    %137 = math.rsqrt %136 : vector<16x1xf32>
    %138 = vector.broadcast %137 : vector<16x1xf32> to vector<16x32xf32>
    %139 = arith.mulf %129, %138 : vector<16x32xf32>
    %140 = vector.broadcast %18 : vector<1x32xf32> to vector<16x32xf32>
    %141 = arith.mulf %139, %140 : vector<16x32xf32>
    %142 = vector.broadcast %20 : vector<1x32xf32> to vector<16x32xf32>
    %143 = arith.addf %141, %142 : vector<16x32xf32>
    %cst_76 = arith.constant dense<0.000000e+00> : vector<16x64xf32>
    %144 = tpu.matmul %143, %22, %cst_76 {dimension_numbers = #tpu.dot_dimension_numbers<[1], [0], [0], [1], [0, 0, 1, 1], [], []>} : vector<16x32xf32>, vector<32x64xf32>, vector<16x64xf32> -> vector<16x64xf32>
    %145 = vector.broadcast %24 : vector<1x64xf32> to vector<16x64xf32>
    %146 = arith.addf %144, %145 : vector<16x64xf32>
    %cst_77 = arith.constant 0.000000e+00 : f32
    %147 = vector.broadcast %cst_77 : f32 to vector<16x64xf32>
    %148 = arith.maximumf %146, %147 : vector<16x64xf32>
    %cst_78 = arith.constant dense<0.000000e+00> : vector<16x32xf32>
    %149 = tpu.matmul %148, %26, %cst_78 {dimension_numbers = #tpu.dot_dimension_numbers<[1], [0], [0], [1], [0, 0, 1, 1], [], []>} : vector<16x64xf32>, vector<64x32xf32>, vector<16x32xf32> -> vector<16x32xf32>
    %150 = vector.broadcast %28 : vector<1x32xf32> to vector<16x32xf32>
    %151 = arith.addf %149, %150 : vector<16x32xf32>
    %152 = arith.addf %143, %151 : vector<16x32xf32>
    %cst_79 = arith.constant dense<0.000000e+00> : vector<16xf32>
    %153 = vector.multi_reduction <add>, %152, %cst_79 [1] : vector<16x32xf32> to vector<16xf32>
    %154 = vector.shape_cast %153 : vector<16xf32> to vector<16x1xf32>
    %cst_80 = arith.constant 3.125000e-02 : f32
    %155 = vector.broadcast %cst_80 : f32 to vector<16x1xf32>
    %156 = arith.mulf %154, %155 : vector<16x1xf32>
    %157 = vector.broadcast %156 : vector<16x1xf32> to vector<16x32xf32>
    %158 = arith.subf %152, %157 : vector<16x32xf32>
    %159 = arith.mulf %158, %158 : vector<16x32xf32>
    %cst_81 = arith.constant dense<0.000000e+00> : vector<16xf32>
    %160 = vector.multi_reduction <add>, %159, %cst_81 [1] : vector<16x32xf32> to vector<16xf32>
    %161 = vector.shape_cast %160 : vector<16xf32> to vector<16x1xf32>
    %cst_82 = arith.constant 3.125000e-02 : f32
    %162 = vector.broadcast %cst_82 : f32 to vector<16x1xf32>
    %163 = arith.mulf %161, %162 : vector<16x1xf32>
    %cst_83 = arith.constant 9.99999974E-6 : f32
    %164 = vector.broadcast %cst_83 : f32 to vector<16x1xf32>
    %165 = arith.addf %163, %164 : vector<16x1xf32>
    %166 = math.rsqrt %165 : vector<16x1xf32>
    %167 = vector.broadcast %166 : vector<16x1xf32> to vector<16x32xf32>
    %168 = arith.mulf %158, %167 : vector<16x32xf32>
    %169 = vector.broadcast %30 : vector<1x32xf32> to vector<16x32xf32>
    %170 = arith.mulf %168, %169 : vector<16x32xf32>
    %171 = vector.broadcast %32 : vector<1x32xf32> to vector<16x32xf32>
    %172 = arith.addf %170, %171 : vector<16x32xf32>
    %c1 = arith.constant 1 : index
    %c0_84 = arith.constant 0 : index
    %c0_85 = arith.constant 0 : index
    %173 = vector.load %arg6[%c1, %c0_84, %c0_85] : memref<2x32x96xf32, #tpu.memory_space<vmem>>, vector<1x32x96xf32>
    %174 = vector.shape_cast %173 : vector<1x32x96xf32> to vector<32x96xf32>
    %c1_86 = arith.constant 1 : index
    %c0_87 = arith.constant 0 : index
    %c0_88 = arith.constant 0 : index
    %175 = vector.load %arg7[%c1_86, %c0_87, %c0_88] : memref<2x1x96xf32, #tpu.memory_space<vmem>>, vector<1x1x96xf32>
    %176 = vector.shape_cast %175 : vector<1x1x96xf32> to vector<1x96xf32>
    %c1_89 = arith.constant 1 : index
    %c0_90 = arith.constant 0 : index
    %c0_91 = arith.constant 0 : index
    %177 = vector.load %arg8[%c1_89, %c0_90, %c0_91] : memref<2x32x32xf32, #tpu.memory_space<vmem>>, vector<1x32x32xf32>
    %178 = vector.shape_cast %177 : vector<1x32x32xf32> to vector<32x32xf32>
    %c1_92 = arith.constant 1 : index
    %c0_93 = arith.constant 0 : index
    %c0_94 = arith.constant 0 : index
    %179 = vector.load %arg9[%c1_92, %c0_93, %c0_94] : memref<2x1x32xf32, #tpu.memory_space<vmem>>, vector<1x1x32xf32>
    %180 = vector.shape_cast %179 : vector<1x1x32xf32> to vector<1x32xf32>
    %c1_95 = arith.constant 1 : index
    %c0_96 = arith.constant 0 : index
    %c0_97 = arith.constant 0 : index
    %181 = vector.load %arg10[%c1_95, %c0_96, %c0_97] : memref<2x1x32xf32, #tpu.memory_space<vmem>>, vector<1x1x32xf32>
    %182 = vector.shape_cast %181 : vector<1x1x32xf32> to vector<1x32xf32>
    %c1_98 = arith.constant 1 : index
    %c0_99 = arith.constant 0 : index
    %c0_100 = arith.constant 0 : index
    %183 = vector.load %arg11[%c1_98, %c0_99, %c0_100] : memref<2x1x32xf32, #tpu.memory_space<vmem>>, vector<1x1x32xf32>
    %184 = vector.shape_cast %183 : vector<1x1x32xf32> to vector<1x32xf32>
    %c1_101 = arith.constant 1 : index
    %c0_102 = arith.constant 0 : index
    %c0_103 = arith.constant 0 : index
    %185 = vector.load %arg12[%c1_101, %c0_102, %c0_103] : memref<2x32x64xf32, #tpu.memory_space<vmem>>, vector<1x32x64xf32>
    %186 = vector.shape_cast %185 : vector<1x32x64xf32> to vector<32x64xf32>
    %c1_104 = arith.constant 1 : index
    %c0_105 = arith.constant 0 : index
    %c0_106 = arith.constant 0 : index
    %187 = vector.load %arg13[%c1_104, %c0_105, %c0_106] : memref<2x1x64xf32, #tpu.memory_space<vmem>>, vector<1x1x64xf32>
    %188 = vector.shape_cast %187 : vector<1x1x64xf32> to vector<1x64xf32>
    %c1_107 = arith.constant 1 : index
    %c0_108 = arith.constant 0 : index
    %c0_109 = arith.constant 0 : index
    %189 = vector.load %arg14[%c1_107, %c0_108, %c0_109] : memref<2x64x32xf32, #tpu.memory_space<vmem>>, vector<1x64x32xf32>
    %190 = vector.shape_cast %189 : vector<1x64x32xf32> to vector<64x32xf32>
    %c1_110 = arith.constant 1 : index
    %c0_111 = arith.constant 0 : index
    %c0_112 = arith.constant 0 : index
    %191 = vector.load %arg15[%c1_110, %c0_111, %c0_112] : memref<2x1x32xf32, #tpu.memory_space<vmem>>, vector<1x1x32xf32>
    %192 = vector.shape_cast %191 : vector<1x1x32xf32> to vector<1x32xf32>
    %c1_113 = arith.constant 1 : index
    %c0_114 = arith.constant 0 : index
    %c0_115 = arith.constant 0 : index
    %193 = vector.load %arg16[%c1_113, %c0_114, %c0_115] : memref<2x1x32xf32, #tpu.memory_space<vmem>>, vector<1x1x32xf32>
    %194 = vector.shape_cast %193 : vector<1x1x32xf32> to vector<1x32xf32>
    %c1_116 = arith.constant 1 : index
    %c0_117 = arith.constant 0 : index
    %c0_118 = arith.constant 0 : index
    %195 = vector.load %arg17[%c1_116, %c0_117, %c0_118] : memref<2x1x32xf32, #tpu.memory_space<vmem>>, vector<1x1x32xf32>
    %196 = vector.shape_cast %195 : vector<1x1x32xf32> to vector<1x32xf32>
    %cst_119 = arith.constant dense<0.000000e+00> : vector<16x96xf32>
    %197 = tpu.matmul %172, %174, %cst_119 {dimension_numbers = #tpu.dot_dimension_numbers<[1], [0], [0], [1], [0, 0, 1, 1], [], []>} : vector<16x32xf32>, vector<32x96xf32>, vector<16x96xf32> -> vector<16x96xf32>
    %198 = vector.broadcast %176 : vector<1x96xf32> to vector<16x96xf32>
    %199 = arith.addf %197, %198 : vector<16x96xf32>
    %cst_120 = arith.constant 0.000000e+00 : f32
    %200 = vector.broadcast %cst_120 : f32 to vector<16x32xf32>
    %201 = vector.extract_strided_slice %199 {offsets = [0, 0], sizes = [16, 8], strides = [1, 1]} : vector<16x96xf32> to vector<16x8xf32>
    %202 = vector.extract_strided_slice %199 {offsets = [0, 32], sizes = [16, 8], strides = [1, 1]} : vector<16x96xf32> to vector<16x8xf32>
    %203 = vector.extract_strided_slice %199 {offsets = [0, 64], sizes = [16, 8], strides = [1, 1]} : vector<16x96xf32> to vector<16x8xf32>
    %cst_121 = arith.constant dense<0.000000e+00> : vector<16x16xf32>
    %204 = tpu.matmul %201, %202, %cst_121 {dimension_numbers = #tpu.dot_dimension_numbers<[1], [1], [0], [0], [0, 0, 1, 0], [], []>} : vector<16x8xf32>, vector<16x8xf32>, vector<16x16xf32> -> vector<16x16xf32>
    %cst_122 = arith.constant 0.353553385 : f32
    %205 = vector.broadcast %cst_122 : f32 to vector<16x16xf32>
    %206 = arith.mulf %204, %205 : vector<16x16xf32>
    %207 = arith.addf %206, %8 : vector<16x16xf32>
    %cst_123 = arith.constant dense<0xFF800000> : vector<16xf32>
    %208 = vector.multi_reduction <maximumf>, %207, %cst_123 [1] : vector<16x16xf32> to vector<16xf32>
    %209 = vector.shape_cast %208 : vector<16xf32> to vector<16x1xf32>
    %210 = vector.broadcast %209 : vector<16x1xf32> to vector<16x16xf32>
    %211 = arith.subf %207, %210 : vector<16x16xf32>
    %212 = math.exp %211 : vector<16x16xf32>
    %cst_124 = arith.constant dense<0.000000e+00> : vector<16xf32>
    %213 = vector.multi_reduction <add>, %212, %cst_124 [1] : vector<16x16xf32> to vector<16xf32>
    %214 = vector.shape_cast %213 : vector<16xf32> to vector<16x1xf32>
    %215 = tpu.reciprocal %214 {approx = true} : vector<16x1xf32> -> vector<16x1xf32>
    %216 = vector.broadcast %215 : vector<16x1xf32> to vector<16x16xf32>
    %217 = arith.mulf %212, %216 : vector<16x16xf32>
    %cst_125 = arith.constant dense<0.000000e+00> : vector<16x8xf32>
    %218 = tpu.matmul %217, %203, %cst_125 {dimension_numbers = #tpu.dot_dimension_numbers<[1], [0], [0], [1], [0, 0, 1, 1], [], []>} : vector<16x16xf32>, vector<16x8xf32>, vector<16x8xf32> -> vector<16x8xf32>
    %219 = vector.extract_strided_slice %178 {offsets = [0, 0], sizes = [8, 32], strides = [1, 1]} : vector<32x32xf32> to vector<8x32xf32>
    %cst_126 = arith.constant dense<0.000000e+00> : vector<16x32xf32>
    %220 = tpu.matmul %218, %219, %cst_126 {dimension_numbers = #tpu.dot_dimension_numbers<[1], [0], [0], [1], [0, 0, 1, 1], [], []>} : vector<16x8xf32>, vector<8x32xf32>, vector<16x32xf32> -> vector<16x32xf32>
    %221 = arith.addf %200, %220 : vector<16x32xf32>
    %222 = vector.extract_strided_slice %199 {offsets = [0, 8], sizes = [16, 8], strides = [1, 1]} : vector<16x96xf32> to vector<16x8xf32>
    %223 = vector.extract_strided_slice %199 {offsets = [0, 40], sizes = [16, 8], strides = [1, 1]} : vector<16x96xf32> to vector<16x8xf32>
    %224 = vector.extract_strided_slice %199 {offsets = [0, 72], sizes = [16, 8], strides = [1, 1]} : vector<16x96xf32> to vector<16x8xf32>
    %cst_127 = arith.constant dense<0.000000e+00> : vector<16x16xf32>
    %225 = tpu.matmul %222, %223, %cst_127 {dimension_numbers = #tpu.dot_dimension_numbers<[1], [1], [0], [0], [0, 0, 1, 0], [], []>} : vector<16x8xf32>, vector<16x8xf32>, vector<16x16xf32> -> vector<16x16xf32>
    %cst_128 = arith.constant 0.353553385 : f32
    %226 = vector.broadcast %cst_128 : f32 to vector<16x16xf32>
    %227 = arith.mulf %225, %226 : vector<16x16xf32>
    %228 = arith.addf %227, %8 : vector<16x16xf32>
    %cst_129 = arith.constant dense<0xFF800000> : vector<16xf32>
    %229 = vector.multi_reduction <maximumf>, %228, %cst_129 [1] : vector<16x16xf32> to vector<16xf32>
    %230 = vector.shape_cast %229 : vector<16xf32> to vector<16x1xf32>
    %231 = vector.broadcast %230 : vector<16x1xf32> to vector<16x16xf32>
    %232 = arith.subf %228, %231 : vector<16x16xf32>
    %233 = math.exp %232 : vector<16x16xf32>
    %cst_130 = arith.constant dense<0.000000e+00> : vector<16xf32>
    %234 = vector.multi_reduction <add>, %233, %cst_130 [1] : vector<16x16xf32> to vector<16xf32>
    %235 = vector.shape_cast %234 : vector<16xf32> to vector<16x1xf32>
    %236 = tpu.reciprocal %235 {approx = true} : vector<16x1xf32> -> vector<16x1xf32>
    %237 = vector.broadcast %236 : vector<16x1xf32> to vector<16x16xf32>
    %238 = arith.mulf %233, %237 : vector<16x16xf32>
    %cst_131 = arith.constant dense<0.000000e+00> : vector<16x8xf32>
    %239 = tpu.matmul %238, %224, %cst_131 {dimension_numbers = #tpu.dot_dimension_numbers<[1], [0], [0], [1], [0, 0, 1, 1], [], []>} : vector<16x16xf32>, vector<16x8xf32>, vector<16x8xf32> -> vector<16x8xf32>
    %240 = vector.extract_strided_slice %178 {offsets = [8, 0], sizes = [8, 32], strides = [1, 1]} : vector<32x32xf32> to vector<8x32xf32>
    %cst_132 = arith.constant dense<0.000000e+00> : vector<16x32xf32>
    %241 = tpu.matmul %239, %240, %cst_132 {dimension_numbers = #tpu.dot_dimension_numbers<[1], [0], [0], [1], [0, 0, 1, 1], [], []>} : vector<16x8xf32>, vector<8x32xf32>, vector<16x32xf32> -> vector<16x32xf32>
    %242 = arith.addf %221, %241 : vector<16x32xf32>
    %243 = vector.extract_strided_slice %199 {offsets = [0, 16], sizes = [16, 8], strides = [1, 1]} : vector<16x96xf32> to vector<16x8xf32>
    %244 = vector.extract_strided_slice %199 {offsets = [0, 48], sizes = [16, 8], strides = [1, 1]} : vector<16x96xf32> to vector<16x8xf32>
    %245 = vector.extract_strided_slice %199 {offsets = [0, 80], sizes = [16, 8], strides = [1, 1]} : vector<16x96xf32> to vector<16x8xf32>
    %cst_133 = arith.constant dense<0.000000e+00> : vector<16x16xf32>
    %246 = tpu.matmul %243, %244, %cst_133 {dimension_numbers = #tpu.dot_dimension_numbers<[1], [1], [0], [0], [0, 0, 1, 0], [], []>} : vector<16x8xf32>, vector<16x8xf32>, vector<16x16xf32> -> vector<16x16xf32>
    %cst_134 = arith.constant 0.353553385 : f32
    %247 = vector.broadcast %cst_134 : f32 to vector<16x16xf32>
    %248 = arith.mulf %246, %247 : vector<16x16xf32>
    %249 = arith.addf %248, %8 : vector<16x16xf32>
    %cst_135 = arith.constant dense<0xFF800000> : vector<16xf32>
    %250 = vector.multi_reduction <maximumf>, %249, %cst_135 [1] : vector<16x16xf32> to vector<16xf32>
    %251 = vector.shape_cast %250 : vector<16xf32> to vector<16x1xf32>
    %252 = vector.broadcast %251 : vector<16x1xf32> to vector<16x16xf32>
    %253 = arith.subf %249, %252 : vector<16x16xf32>
    %254 = math.exp %253 : vector<16x16xf32>
    %cst_136 = arith.constant dense<0.000000e+00> : vector<16xf32>
    %255 = vector.multi_reduction <add>, %254, %cst_136 [1] : vector<16x16xf32> to vector<16xf32>
    %256 = vector.shape_cast %255 : vector<16xf32> to vector<16x1xf32>
    %257 = tpu.reciprocal %256 {approx = true} : vector<16x1xf32> -> vector<16x1xf32>
    %258 = vector.broadcast %257 : vector<16x1xf32> to vector<16x16xf32>
    %259 = arith.mulf %254, %258 : vector<16x16xf32>
    %cst_137 = arith.constant dense<0.000000e+00> : vector<16x8xf32>
    %260 = tpu.matmul %259, %245, %cst_137 {dimension_numbers = #tpu.dot_dimension_numbers<[1], [0], [0], [1], [0, 0, 1, 1], [], []>} : vector<16x16xf32>, vector<16x8xf32>, vector<16x8xf32> -> vector<16x8xf32>
    %261 = vector.extract_strided_slice %178 {offsets = [16, 0], sizes = [8, 32], strides = [1, 1]} : vector<32x32xf32> to vector<8x32xf32>
    %cst_138 = arith.constant dense<0.000000e+00> : vector<16x32xf32>
    %262 = tpu.matmul %260, %261, %cst_138 {dimension_numbers = #tpu.dot_dimension_numbers<[1], [0], [0], [1], [0, 0, 1, 1], [], []>} : vector<16x8xf32>, vector<8x32xf32>, vector<16x32xf32> -> vector<16x32xf32>
    %263 = arith.addf %242, %262 : vector<16x32xf32>
    %264 = vector.extract_strided_slice %199 {offsets = [0, 24], sizes = [16, 8], strides = [1, 1]} : vector<16x96xf32> to vector<16x8xf32>
    %265 = vector.extract_strided_slice %199 {offsets = [0, 56], sizes = [16, 8], strides = [1, 1]} : vector<16x96xf32> to vector<16x8xf32>
    %266 = vector.extract_strided_slice %199 {offsets = [0, 88], sizes = [16, 8], strides = [1, 1]} : vector<16x96xf32> to vector<16x8xf32>
    %cst_139 = arith.constant dense<0.000000e+00> : vector<16x16xf32>
    %267 = tpu.matmul %264, %265, %cst_139 {dimension_numbers = #tpu.dot_dimension_numbers<[1], [1], [0], [0], [0, 0, 1, 0], [], []>} : vector<16x8xf32>, vector<16x8xf32>, vector<16x16xf32> -> vector<16x16xf32>
    %cst_140 = arith.constant 0.353553385 : f32
    %268 = vector.broadcast %cst_140 : f32 to vector<16x16xf32>
    %269 = arith.mulf %267, %268 : vector<16x16xf32>
    %270 = arith.addf %269, %8 : vector<16x16xf32>
    %cst_141 = arith.constant dense<0xFF800000> : vector<16xf32>
    %271 = vector.multi_reduction <maximumf>, %270, %cst_141 [1] : vector<16x16xf32> to vector<16xf32>
    %272 = vector.shape_cast %271 : vector<16xf32> to vector<16x1xf32>
    %273 = vector.broadcast %272 : vector<16x1xf32> to vector<16x16xf32>
    %274 = arith.subf %270, %273 : vector<16x16xf32>
    %275 = math.exp %274 : vector<16x16xf32>
    %cst_142 = arith.constant dense<0.000000e+00> : vector<16xf32>
    %276 = vector.multi_reduction <add>, %275, %cst_142 [1] : vector<16x16xf32> to vector<16xf32>
    %277 = vector.shape_cast %276 : vector<16xf32> to vector<16x1xf32>
    %278 = tpu.reciprocal %277 {approx = true} : vector<16x1xf32> -> vector<16x1xf32>
    %279 = vector.broadcast %278 : vector<16x1xf32> to vector<16x16xf32>
    %280 = arith.mulf %275, %279 : vector<16x16xf32>
    %cst_143 = arith.constant dense<0.000000e+00> : vector<16x8xf32>
    %281 = tpu.matmul %280, %266, %cst_143 {dimension_numbers = #tpu.dot_dimension_numbers<[1], [0], [0], [1], [0, 0, 1, 1], [], []>} : vector<16x16xf32>, vector<16x8xf32>, vector<16x8xf32> -> vector<16x8xf32>
    %282 = vector.extract_strided_slice %178 {offsets = [24, 0], sizes = [8, 32], strides = [1, 1]} : vector<32x32xf32> to vector<8x32xf32>
    %cst_144 = arith.constant dense<0.000000e+00> : vector<16x32xf32>
    %283 = tpu.matmul %281, %282, %cst_144 {dimension_numbers = #tpu.dot_dimension_numbers<[1], [0], [0], [1], [0, 0, 1, 1], [], []>} : vector<16x8xf32>, vector<8x32xf32>, vector<16x32xf32> -> vector<16x32xf32>
    %284 = arith.addf %263, %283 : vector<16x32xf32>
    %285 = vector.broadcast %180 : vector<1x32xf32> to vector<16x32xf32>
    %286 = arith.addf %284, %285 : vector<16x32xf32>
    %287 = arith.addf %172, %286 : vector<16x32xf32>
    %cst_145 = arith.constant dense<0.000000e+00> : vector<16xf32>
    %288 = vector.multi_reduction <add>, %287, %cst_145 [1] : vector<16x32xf32> to vector<16xf32>
    %289 = vector.shape_cast %288 : vector<16xf32> to vector<16x1xf32>
    %cst_146 = arith.constant 3.125000e-02 : f32
    %290 = vector.broadcast %cst_146 : f32 to vector<16x1xf32>
    %291 = arith.mulf %289, %290 : vector<16x1xf32>
    %292 = vector.broadcast %291 : vector<16x1xf32> to vector<16x32xf32>
    %293 = arith.subf %287, %292 : vector<16x32xf32>
    %294 = arith.mulf %293, %293 : vector<16x32xf32>
    %cst_147 = arith.constant dense<0.000000e+00> : vector<16xf32>
    %295 = vector.multi_reduction <add>, %294, %cst_147 [1] : vector<16x32xf32> to vector<16xf32>
    %296 = vector.shape_cast %295 : vector<16xf32> to vector<16x1xf32>
    %cst_148 = arith.constant 3.125000e-02 : f32
    %297 = vector.broadcast %cst_148 : f32 to vector<16x1xf32>
    %298 = arith.mulf %296, %297 : vector<16x1xf32>
    %cst_149 = arith.constant 9.99999974E-6 : f32
    %299 = vector.broadcast %cst_149 : f32 to vector<16x1xf32>
    %300 = arith.addf %298, %299 : vector<16x1xf32>
    %301 = math.rsqrt %300 : vector<16x1xf32>
    %302 = vector.broadcast %301 : vector<16x1xf32> to vector<16x32xf32>
    %303 = arith.mulf %293, %302 : vector<16x32xf32>
    %304 = vector.broadcast %182 : vector<1x32xf32> to vector<16x32xf32>
    %305 = arith.mulf %303, %304 : vector<16x32xf32>
    %306 = vector.broadcast %184 : vector<1x32xf32> to vector<16x32xf32>
    %307 = arith.addf %305, %306 : vector<16x32xf32>
    %cst_150 = arith.constant dense<0.000000e+00> : vector<16x64xf32>
    %308 = tpu.matmul %307, %186, %cst_150 {dimension_numbers = #tpu.dot_dimension_numbers<[1], [0], [0], [1], [0, 0, 1, 1], [], []>} : vector<16x32xf32>, vector<32x64xf32>, vector<16x64xf32> -> vector<16x64xf32>
    %309 = vector.broadcast %188 : vector<1x64xf32> to vector<16x64xf32>
    %310 = arith.addf %308, %309 : vector<16x64xf32>
    %cst_151 = arith.constant 0.000000e+00 : f32
    %311 = vector.broadcast %cst_151 : f32 to vector<16x64xf32>
    %312 = arith.maximumf %310, %311 : vector<16x64xf32>
    %cst_152 = arith.constant dense<0.000000e+00> : vector<16x32xf32>
    %313 = tpu.matmul %312, %190, %cst_152 {dimension_numbers = #tpu.dot_dimension_numbers<[1], [0], [0], [1], [0, 0, 1, 1], [], []>} : vector<16x64xf32>, vector<64x32xf32>, vector<16x32xf32> -> vector<16x32xf32>
    %314 = vector.broadcast %192 : vector<1x32xf32> to vector<16x32xf32>
    %315 = arith.addf %313, %314 : vector<16x32xf32>
    %316 = arith.addf %307, %315 : vector<16x32xf32>
    %cst_153 = arith.constant dense<0.000000e+00> : vector<16xf32>
    %317 = vector.multi_reduction <add>, %316, %cst_153 [1] : vector<16x32xf32> to vector<16xf32>
    %318 = vector.shape_cast %317 : vector<16xf32> to vector<16x1xf32>
    %cst_154 = arith.constant 3.125000e-02 : f32
    %319 = vector.broadcast %cst_154 : f32 to vector<16x1xf32>
    %320 = arith.mulf %318, %319 : vector<16x1xf32>
    %321 = vector.broadcast %320 : vector<16x1xf32> to vector<16x32xf32>
    %322 = arith.subf %316, %321 : vector<16x32xf32>
    %323 = arith.mulf %322, %322 : vector<16x32xf32>
    %cst_155 = arith.constant dense<0.000000e+00> : vector<16xf32>
    %324 = vector.multi_reduction <add>, %323, %cst_155 [1] : vector<16x32xf32> to vector<16xf32>
    %325 = vector.shape_cast %324 : vector<16xf32> to vector<16x1xf32>
    %cst_156 = arith.constant 3.125000e-02 : f32
    %326 = vector.broadcast %cst_156 : f32 to vector<16x1xf32>
    %327 = arith.mulf %325, %326 : vector<16x1xf32>
    %cst_157 = arith.constant 9.99999974E-6 : f32
    %328 = vector.broadcast %cst_157 : f32 to vector<16x1xf32>
    %329 = arith.addf %327, %328 : vector<16x1xf32>
    %330 = math.rsqrt %329 : vector<16x1xf32>
    %331 = vector.broadcast %330 : vector<16x1xf32> to vector<16x32xf32>
    %332 = arith.mulf %322, %331 : vector<16x32xf32>
    %333 = vector.broadcast %194 : vector<1x32xf32> to vector<16x32xf32>
    %334 = arith.mulf %332, %333 : vector<16x32xf32>
    %335 = vector.broadcast %196 : vector<1x32xf32> to vector<16x32xf32>
    %336 = arith.addf %334, %335 : vector<16x32xf32>
    %c0_158 = arith.constant 0 : index
    %c0_159 = arith.constant 0 : index
    %337 = vector.load %arg3[%c0_158, %c0_159] : memref<2x16xf32, #tpu.memory_space<vmem>>, vector<2x16xf32>
    %cst_160 = arith.constant dense<0.000000e+00> : vector<2x32xf32>
    %338 = tpu.matmul %337, %336, %cst_160 {dimension_numbers = #tpu.dot_dimension_numbers<[1], [0], [0], [1], [0, 0, 1, 1], [], []>} : vector<2x16xf32>, vector<16x32xf32>, vector<2x32xf32> -> vector<2x32xf32>
    %c0_161 = arith.constant 0 : index
    %c0_162 = arith.constant 0 : index
    %339 = vector.load %arg18[%c0_161, %c0_162] : memref<32x32xf32, #tpu.memory_space<vmem>>, vector<32x32xf32>
    %cst_163 = arith.constant dense<0.000000e+00> : vector<2x32xf32>
    %340 = tpu.matmul %338, %339, %cst_163 {dimension_numbers = #tpu.dot_dimension_numbers<[1], [0], [0], [1], [0, 0, 1, 1], [], []>} : vector<2x32xf32>, vector<32x32xf32>, vector<2x32xf32> -> vector<2x32xf32>
    %c0_164 = arith.constant 0 : index
    %c0_165 = arith.constant 0 : index
    %341 = vector.load %arg19[%c0_164, %c0_165] : memref<1x32xf32, #tpu.memory_space<vmem>>, vector<1x32xf32>
    %342 = vector.broadcast %341 : vector<1x32xf32> to vector<2x32xf32>
    %343 = arith.addf %340, %342 : vector<2x32xf32>
    %cst_166 = arith.constant 0.000000e+00 : f32
    %344 = vector.broadcast %cst_166 : f32 to vector<2x32xf32>
    %345 = arith.maximumf %343, %344 : vector<2x32xf32>
    %c0_167 = arith.constant 0 : index
    %c0_168 = arith.constant 0 : index
    %346 = vector.load %arg20[%c0_167, %c0_168] : memref<32x16xf32, #tpu.memory_space<vmem>>, vector<32x16xf32>
    %cst_169 = arith.constant dense<0.000000e+00> : vector<2x16xf32>
    %347 = tpu.matmul %345, %346, %cst_169 {dimension_numbers = #tpu.dot_dimension_numbers<[1], [0], [0], [1], [0, 0, 1, 1], [], []>} : vector<2x32xf32>, vector<32x16xf32>, vector<2x16xf32> -> vector<2x16xf32>
    %c0_170 = arith.constant 0 : index
    %c0_171 = arith.constant 0 : index
    %348 = vector.load %arg21[%c0_170, %c0_171] : memref<1x16xf32, #tpu.memory_space<vmem>>, vector<1x16xf32>
    %349 = vector.broadcast %348 : vector<1x16xf32> to vector<2x16xf32>
    %350 = arith.addf %347, %349 : vector<2x16xf32>
    %cst_172 = arith.constant 0.000000e+00 : f32
    %351 = vector.broadcast %cst_172 : f32 to vector<2x16xf32>
    %352 = arith.maximumf %350, %351 : vector<2x16xf32>
    %c0_173 = arith.constant 0 : index
    %c0_174 = arith.constant 0 : index
    %353 = vector.load %arg22[%c0_173, %c0_174] : memref<16x128xf32, #tpu.memory_space<vmem>>, vector<16x128xf32>
    %cst_175 = arith.constant dense<0.000000e+00> : vector<2x128xf32>
    %354 = tpu.matmul %352, %353, %cst_175 {dimension_numbers = #tpu.dot_dimension_numbers<[1], [0], [0], [1], [0, 0, 1, 1], [], []>} : vector<2x16xf32>, vector<16x128xf32>, vector<2x128xf32> -> vector<2x128xf32>
    %c0_176 = arith.constant 0 : index
    %c0_177 = arith.constant 0 : index
    %355 = vector.load %arg23[%c0_176, %c0_177] : memref<1x128xf32, #tpu.memory_space<vmem>>, vector<1x128xf32>
    %356 = vector.broadcast %355 : vector<1x128xf32> to vector<2x128xf32>
    %357 = arith.addf %354, %356 : vector<2x128xf32>
    %c0_178 = arith.constant 0 : index
    %c0_179 = arith.constant 0 : index
    %358 = vector.load %arg24[%c0_178, %c0_179] : memref<2x128xf32, #tpu.memory_space<vmem>>, vector<2x128xf32>
    tpu.vector_store %arg24[%c0_178, %c0_179], %357 {strides = array<i32>} : memref<2x128xf32, #tpu.memory_space<vmem>>, vector<2x128xf32>,
    return
  }
}

</mosaic_0001>

<llo_original>
// kernel: eq.15
$region0: #{eq.15}
  %s0 = inlined_call_operand.vmem [shape: s32[2,8], index: 0, kind: input, shape index: {}]
  %s1 = inlined_call_operand.vmem [shape: s32[16], index: 1, kind: output, shape index: {}]
  $region1: #{eq.15} parent=0
    #allocation0 [shape = 'u8[4096]{0}', space=vmem, size = 0x1000, scoped, tag = 'scoped mem for output reshape']
    #allocation1 [shape = 'u8[4096]{0}', space=vmem, size = 0x1000, scoped, tag = 'scoped mem for input reshape']
    %s3 = sshllo.u32 0, 2
    %v4 = vld [vmem:[%s0] sm:%s3]
    %5 = vst [vmem:[#allocation1] sm:%s3] %v4
    %v6 = vld [vmem:[#allocation1] sm:$0x1]
    %vm7 = vcmask 64512
    %8 = vst.msk [vmem:[#allocation0] sm:$0x1] %vm7, %v6
    %s9 = scalar_lea.vmem [#allocation1], 1
    %v10 = vld [vmem:[%s9] sm:$0x1]
    %11 = vrot.lane.b32.xlu0 %v10, 8
    %v12 = vpop.permute.xlu0 %11
    %vm13 = vcmask 130112
    %14 = vst.msk [vmem:[#allocation0] sm:$0x1] %vm13, %v12
    %s16 = sshllo.u32 0, 1
    %v18 = vld [vmem:[#allocation0] sm:%s16]
    %s19 = sshllo.u32 0, 1
    %20 = vst [vmem:[%s1] sm:%s19] %v18

// kernel: transformer_forward.1
$region0: #{transformer_forward.1}
  #allocation0 [shape = 'u32[]', space=smem, size = 0x4, offset = 0x4, fixed_abs, tag = 'smem constant byte address 0x4 - core index']
  #allocation1 [shape = 'u32[144,128]{1,0:T(1,128)}', space=vmem, size = 0x12000, scoped, tag = 'internal scratch']
  %s0 = inlined_call_operand.vmem [shape: f32[16,4], index: 0, kind: input, shape index: {}]
  %s1 = inlined_call_operand.vmem [shape: f32[16,32], index: 1, kind: input, shape index: {}]
  %s2 = inlined_call_operand.vmem [shape: f32[16,16], index: 2, kind: input, shape index: {}]
  %s3 = inlined_call_operand.vmem [shape: f32[2,16], index: 3, kind: input, shape index: {}]
  %s4 = inlined_call_operand.vmem [shape: f32[4,32], index: 4, kind: input, shape index: {}]
  %s5 = inlined_call_operand.vmem [shape: f32[1,32], index: 5, kind: input, shape index: {}]
  %s6 = inlined_call_operand.vmem [shape: f32[2,32,96], index: 6, kind: input, shape index: {}]
  %s7 = inlined_call_operand.vmem [shape: f32[2,1,96], index: 7, kind: input, shape index: {}]
  %s8 = inlined_call_operand.vmem [shape: f32[2,32,32], index: 8, kind: input, shape index: {}]
  %s9 = inlined_call_operand.vmem [shape: f32[2,1,32], index: 9, kind: input, shape index: {}]
  %s10 = inlined_call_operand.vmem [shape: f32[2,1,32], index: 10, kind: input, shape index: {}]
  %s11 = inlined_call_operand.vmem [shape: f32[2,1,32], index: 11, kind: input, shape index: {}]
  %s12 = inlined_call_operand.vmem [shape: f32[2,32,64], index: 12, kind: input, shape index: {}]
  %s13 = inlined_call_operand.vmem [shape: f32[2,1,64], index: 13, kind: input, shape index: {}]
  %s14 = inlined_call_operand.vmem [shape: f32[2,64,32], index: 14, kind: input, shape index: {}]
  %s15 = inlined_call_operand.vmem [shape: f32[2,1,32], index: 15, kind: input, shape index: {}]
  %s16 = inlined_call_operand.vmem [shape: f32[2,1,32], index: 16, kind: input, shape index: {}]
  %s17 = inlined_call_operand.vmem [shape: f32[2,1,32], index: 17, kind: input, shape index: {}]
  %s18 = inlined_call_operand.vmem [shape: f32[32,32], index: 18, kind: input, shape index: {}]
  %s19 = inlined_call_operand.vmem [shape: f32[1,32], index: 19, kind: input, shape index: {}]
  %s20 = inlined_call_operand.vmem [shape: f32[32,16], index: 20, kind: input, shape index: {}]
  %s21 = inlined_call_operand.vmem [shape: f32[1,16], index: 21, kind: input, shape index: {}]
  %s22 = inlined_call_operand.vmem [shape: f32[16,128], index: 22, kind: input, shape index: {}]
  %s23 = inlined_call_operand.vmem [shape: f32[1,128], index: 23, kind: input, shape index: {}]
  %s24 = inlined_call_operand.vmem [shape: f32[2,128], index: 24, kind: output, shape index: {}]
  %s25 = sld [smem:[#allocation0]]
  $region106: #{transformer_forward.1} parent=0
    _
  %s27 = ssub.s32 1, %s25
  %s28 = scalar_select 0, %s27, %s25
  // Predicated region
  $region2: #{transformer_forward.1} parent=0 // pred_check
    _
  $region3: #{transformer_forward.1} parent=0 // pred_check_branch
    %30 = sbr.rel (0) target = $region5
  $region4: #{transformer_forward.1} parent=0 // pred_region
    _
  $region5: #{transformer_forward.1} parent=0 // pred_fallthru
    _
  // Predicated region
  $region6: #{transformer_forward.1} parent=0 // pred_check
    _
  $region7: #{transformer_forward.1} parent=0 // pred_check_branch
    %32 = sbr.rel (0) target = $region9
  $region8: #{transformer_forward.1} parent=0 // pred_region
    _
  $region9: #{transformer_forward.1} parent=0 // pred_fallthru
    _
  // Predicated region
  $region10: #{transformer_forward.1} parent=0 // pred_check
    _
  $region11: #{transformer_forward.1} parent=0 // pred_check_branch
    %34 = sbr.rel (0) target = $region13
  $region12: #{transformer_forward.1} parent=0 // pred_region
    _
  $region13: #{transformer_forward.1} parent=0 // pred_fallthru
    _
  // Predicated region
  $region14: #{transformer_forward.1} parent=0 // pred_check
    _
  $region15: #{transformer_forward.1} parent=0 // pred_check_branch
    %36 = sbr.rel (0) target = $region17
  $region16: #{transformer_forward.1} parent=0 // pred_region
    _
  $region17: #{transformer_forward.1} parent=0 // pred_fallthru
    _
  // Predicated region
  $region18: #{transformer_forward.1} parent=0 // pred_check
    _
  $region19: #{transformer_forward.1} parent=0 // pred_check_branch
    %38 = sbr.rel (0) target = $region21
  $region20: #{transformer_forward.1} parent=0 // pred_region
    _
  $region21: #{transformer_forward.1} parent=0 // pred_fallthru
    _
  // Predicated region
  $region22: #{transformer_forward.1} parent=0 // pred_check
    _
  $region23: #{transformer_forward.1} parent=0 // pred_check_branch
    %40 = sbr.rel (0) target = $region25
  $region24: #{transformer_forward.1} parent=0 // pred_region
    _
  $region25: #{transformer_forward.1} parent=0 // pred_fallthru
    _
  // Predicated region
  $region26: #{transformer_forward.1} parent=0 // pred_check
    _
  $region27: #{transformer_forward.1} parent=0 // pred_check_branch
    %42 = sbr.rel (0) target = $region29
  $region28: #{transformer_forward.1} parent=0 // pred_region
    _
  $region29: #{transformer_forward.1} parent=0 // pred_fallthru
    _
  // Predicated region
  $region30: #{transformer_forward.1} parent=0 // pred_check
    _
  $region31: #{transformer_forward.1} parent=0 // pred_check_branch
    %44 = sbr.rel (0) target = $region33
  $region32: #{transformer_forward.1} parent=0 // pred_region
    _
  $region33: #{transformer_forward.1} parent=0 // pred_fallthru
    _
  // Predicated region
  $region34: #{transformer_forward.1} parent=0 // pred_check
    _
  $region35: #{transformer_forward.1} parent=0 // pred_check_branch
    %46 = sbr.rel (0) target = $region37
  $region36: #{transformer_forward.1} parent=0 // pred_region
    _
  $region37: #{transformer_forward.1} parent=0 // pred_fallthru
    _
  // Predicated region
  $region38: #{transformer_forward.1} parent=0 // pred_check
    _
  $region39: #{transformer_forward.1} parent=0 // pred_check_branch
    %48 = sbr.rel (0) target = $region41
  $region40: #{transformer_forward.1} parent=0 // pred_region
    _
  $region41: #{transformer_forward.1} parent=0 // pred_fallthru
    _
  // Predicated region
  $region42: #{transformer_forward.1} parent=0 // pred_check
    _
  $region43: #{transformer_forward.1} parent=0 // pred_check_branch
    %50 = sbr.rel (0) target = $region45
  $region44: #{transformer_forward.1} parent=0 // pred_region
    _
  $region45: #{transformer_forward.1} parent=0 // pred_fallthru
    _
  // Predicated region
  $region46: #{transformer_forward.1} parent=0 // pred_check
    _
  $region47: #{transformer_forward.1} parent=0 // pred_check_branch
    %52 = sbr.rel (0) target = $region49
  $region48: #{transformer_forward.1} parent=0 // pred_region
    _
  $region49: #{transformer_forward.1} parent=0 // pred_fallthru
    _
  // Predicated region
  $region50: #{transformer_forward.1} parent=0 // pred_check
    _
  $region51: #{transformer_forward.1} parent=0 // pred_check_branch
    %54 = sbr.rel (0) target = $region53
  $region52: #{transformer_forward.1} parent=0 // pred_region
    _
  $region53: #{transformer_forward.1} parent=0 // pred_fallthru
    _
  // Predicated region
  $region54: #{transformer_forward.1} parent=0 // pred_check
    _
  $region55: #{transformer_forward.1} parent=0 // pred_check_branch
    %56 = sbr.rel (0) target = $region57
  $region56: #{transformer_forward.1} parent=0 // pred_region
    _
  $region57: #{transformer_forward.1} parent=0 // pred_fallthru
    _
  // Predicated region
  $region58: #{transformer_forward.1} parent=0 // pred_check
    _
  $region59: #{transformer_forward.1} parent=0 // pred_check_branch
    %58 = sbr.rel (0) target = $region61
  $region60: #{transformer_forward.1} parent=0 // pred_region
    _
  $region61: #{transformer_forward.1} parent=0 // pred_fallthru
    _
  // Predicated region
  $region62: #{transformer_forward.1} parent=0 // pred_check
    _
  $region63: #{transformer_forward.1} parent=0 // pred_check_branch
    %60 = sbr.rel (0) target = $region65
  $region64: #{transformer_forward.1} parent=0 // pred_region
    _
  $region65: #{transformer_forward.1} parent=0 // pred_fallthru
    _
  // Predicated region
  $region66: #{transformer_forward.1} parent=0 // pred_check
    _
  $region67: #{transformer_forward.1} parent=0 // pred_check_branch
    %62 = sbr.rel (0) target = $region69
  $region68: #{transformer_forward.1} parent=0 // pred_region
    _
  $region69: #{transformer_forward.1} parent=0 // pred_fallthru
    _
  // Predicated region
  $region70: #{transformer_forward.1} parent=0 // pred_check
    _
  $region71: #{transformer_forward.1} parent=0 // pred_check_branch
    %64 = sbr.rel (0) target = $region73
  $region72: #{transformer_forward.1} parent=0 // pred_region
    _
  $region73: #{transformer_forward.1} parent=0 // pred_fallthru
    _
  // Predicated region
  $region74: #{transformer_forward.1} parent=0 // pred_check
    _
  $region75: #{transformer_forward.1} parent=0 // pred_check_branch
    %66 = sbr.rel (0) target = $region77
  $region76: #{transformer_forward.1} parent=0 // pred_region
    _
  $region77: #{transformer_forward.1} parent=0 // pred_fallthru
    _
  // Predicated region
  $region78: #{transformer_forward.1} parent=0 // pred_check
    _
  $region79: #{transformer_forward.1} parent=0 // pred_check_branch
    %68 = sbr.rel (0) target = $region81
  $region80: #{transformer_forward.1} parent=0 // pred_region
    _
  $region81: #{transformer_forward.1} parent=0 // pred_fallthru
    _
  // Predicated region
  $region82: #{transformer_forward.1} parent=0 // pred_check
    _
  $region83: #{transformer_forward.1} parent=0 // pred_check_branch
    %70 = sbr.rel (0) target = $region85
  $region84: #{transformer_forward.1} parent=0 // pred_region
    _
  $region85: #{transformer_forward.1} parent=0 // pred_fallthru
    _
  // Predicated region
  $region86: #{transformer_forward.1} parent=0 // pred_check
    _
  $region87: #{transformer_forward.1} parent=0 // pred_check_branch
    %72 = sbr.rel (0) target = $region89
  $region88: #{transformer_forward.1} parent=0 // pred_region
    _
  $region89: #{transformer_forward.1} parent=0 // pred_fallthru
    _
  // Predicated region
  $region90: #{transformer_forward.1} parent=0 // pred_check
    _
  $region91: #{transformer_forward.1} parent=0 // pred_check_branch
    %74 = sbr.rel (0) target = $region93
  $region92: #{transformer_forward.1} parent=0 // pred_region
    _
  $region93: #{transformer_forward.1} parent=0 // pred_fallthru
    _
  // Predicated region
  $region94: #{transformer_forward.1} parent=0 // pred_check
    _
  $region95: #{transformer_forward.1} parent=0 // pred_check_branch
    %76 = sbr.rel (0) target = $region97
  $region96: #{transformer_forward.1} parent=0 // pred_region
    _
  $region97: #{transformer_forward.1} parent=0 // pred_fallthru
    _
  %v77 = vld [vmem:[%s0] sm:$0xff]
  %v78 = vld [vmem:[%s0 + $0x8] sm:$0xff]
  %v79 = vld [vmem:[%s4] sm:$0xf]
  %v80 = vld [vmem:[%s5] sm:$0x1]
  %v82 = vlaneseq
  %v83 = vshrl.u32 %v82, 7
  %v84 = vsub.s32 0, %v83
  %v85 = vrot.slane %v80, %v84
  %vm87 = vcmask 31744
  %v89 = vsel %vm87, %v77, 0
  %v92 = vsel %vm87, %v78, 0
  %vm94 = vcmask 1043456
  %v96 = vsel %vm94, %v79, 0
  %98 = vmatprep.subr.mxu0 0.0
  %99 = vmatpush1.msra.mxu0 %v96
  %100 = vmatprep.subr.mxu0 0.0
  %101 = vmatpush1.msra.mxu0 0.0
  %102 = vmatprep.subr.mxu0 0.0
  %103 = vmatpush1.msra.mxu0 0.0
  %104 = vmatprep.subr.mxu0 0.0
  %105 = vmatpush1.msra.mxu0 0.0
  %106 = vmatprep.subr.mxu0 0.0
  %107 = vmatpush1.msra.mxu0 0.0
  %108 = vmatprep.subr.mxu0 0.0
  %109 = vmatpush1.msra.mxu0 0.0
  %110 = vmatprep.subr.mxu0 0.0
  %111 = vmatpush1.msra.mxu0 0.0
  %112 = vmatprep.subr.mxu0 0.0
  %113 = vmatpush1.msra.mxu0 0.0
  %114 = vmatprep.subr.mxu0 0.0
  %115 = vmatpush1.msra.mxu0 0.0
  %116 = vmatprep.subr.mxu0 0.0
  %117 = vmatpush1.msra.mxu0 0.0
  %118 = vmatprep.subr.mxu0 0.0
  %119 = vmatpush1.msra.mxu0 0.0
  %120 = vmatprep.subr.mxu0 0.0
  %121 = vmatpush1.msra.mxu0 0.0
  %122 = vmatprep.subr.mxu0 0.0
  %123 = vmatpush1.msra.mxu0 0.0
  %124 = vmatprep.subr.mxu0 0.0
  %125 = vmatpush1.msra.mxu0 0.0
  %126 = vmatprep.subr.mxu0 0.0
  %127 = vmatpush1.msra.mxu0 0.0
  %128 = vmatprep.subr.mxu0 0.0
  %129 = vmatpush1.msra.mxu0 0.0
  %130 = vmatprep.subr.mxu0 0.0
  %131 = vmatpush1.msra.mxu0 0.0
  %132 = vmatprep.subr.mxu0 0.0
  %133 = vmatpush1.msra.mxu0 0.0
  %134 = vmatprep.subr.mxu0 0.0
  %135 = vmatpush1.msra.mxu0 0.0
  %136 = vmatprep.subr.mxu0 0.0
  %137 = vmatpush1.msra.mxu0 0.0
  %138 = vmatprep.subr.mxu0 0.0
  %139 = vmatpush1.msra.mxu0 0.0
  %140 = vmatprep.subr.mxu0 0.0
  %141 = vmatpush1.msra.mxu0 0.0
  %142 = vmatprep.subr.mxu0 0.0
  %143 = vmatpush1.msra.mxu0 0.0
  %144 = vmatprep.subr.mxu0 0.0
  %145 = vmatpush1.msra.mxu0 0.0
  %146 = vmatprep.subr.mxu0 0.0
  %147 = vmatpush1.msra.mxu0 0.0
  %148 = vmatprep.subr.mxu0 0.0
  %149 = vmatpush1.msra.mxu0 0.0
  %150 = vmatprep.subr.mxu0 0.0
  %151 = vmatpush1.msra.mxu0 0.0
  %152 = vmatprep.subr.mxu0 0.0
  %153 = vmatpush1.msra.mxu0 0.0
  %154 = vmatprep.subr.mxu0 0.0
  %155 = vmatpush1.msra.mxu0 0.0
  %156 = vmatprep.subr.mxu0 0.0
  %157 = vmatpush1.msra.mxu0 0.0
  %158 = vmatprep.subr.mxu0 0.0
  %159 = vmatpush1.msra.mxu0 0.0
  %160 = vmatprep.subr.mxu0 0.0
  %161 = vmatpush1.msra.mxu0 0.0
  %162 = vmatprep.mubr.f32.mxu0 0.0
  %163 = vmatmul.mubr.f32.gmra.mrb[0].mxu0 %v89
  %v164 = vpop.f32.mrb[0].mxu0
  %v165 = vadd.f32 %v85, %v164
  %v166 = vpop.f32.mrb[0].mxu0
  %167 = vmatprep.mubr.f32.mxu0 0.0
  %168 = vmatmul.mubr.f32.gmra.mrb[0].mxu0 %v92
  %v169 = vpop.f32.mrb[0].mxu0
  %v170 = vadd.f32 %v85, %v169
  %v171 = vpop.f32.mrb[0].mxu0
  %172 = vdwg.mxu0
  %v173 = vld [vmem:[%s1] sm:$0xff]
  %v174 = vld [vmem:[%s1 + $0x8] sm:$0xff]
  %v175 = vadd.f32 %v165, %v173
  %v176 = vadd.f32 %v170, %v174
  %v177 = vld [vmem:[%s2] sm:$0xff]
  %v178 = vld [vmem:[%s2 + $0x8] sm:$0xff]
  %v179 = vld [vmem:[%s6] sm:$0xff]
  %v180 = vld [vmem:[%s6 + $0x8] sm:$0xff]
  %v181 = vld [vmem:[%s6 + $0x10] sm:$0xff]
  %v182 = vld [vmem:[%s6 + $0x18] sm:$0xff]
  %v183 = vld [vmem:[%s7] sm:$0x1]
  %v184 = vld [vmem:[%s8] sm:$0xff]
  %v185 = vld [vmem:[%s8 + $0x8] sm:$0xff]
  %v186 = vld [vmem:[%s8 + $0x10] sm:$0xff]
  %v187 = vld [vmem:[%s8 + $0x18] sm:$0xff]
  %v188 = vld [vmem:[%s9] sm:$0x1]
  %v189 = vld [vmem:[%s10] sm:$0x1]
  %v190 = vld [vmem:[%s11] sm:$0x1]
  %v191 = vld [vmem:[%s12] sm:$0xff]
  %v192 = vld [vmem:[%s12 + $0x8] sm:$0xff]
  %v193 = vld [vmem:[%s12 + $0x10] sm:$0xff]
  %v194 = vld [vmem:[%s12 + $0x18] sm:$0xff]
  %v195 = vld [vmem:[%s13] sm:$0x1]
  %v196 = vld [vmem:[%s14] sm:$0xff]
  %v197 = vld [vmem:[%s14 + $0x8] sm:$0xff]
  %v198 = vld [vmem:[%s14 + $0x10] sm:$0xff]
  %v199 = vld [vmem:[%s14 + $0x18] sm:$0xff]
  %v200 = vld [vmem:[%s14 + $0x20] sm:$0xff]
  %v201 = vld [vmem:[%s14 + $0x28] sm:$0xff]
  %v202 = vld [vmem:[%s14 + $0x30] sm:$0xff]
  %v203 = vld [vmem:[%s14 + $0x38] sm:$0xff]
  %v204 = vld [vmem:[%s15] sm:$0x1]
  %v205 = vld [vmem:[%s16] sm:$0x1]
  %v206 = vld [vmem:[%s17] sm:$0x1]
  %v208 = vlaneseq
  %v209 = vshrl.u32 %v208, 7
  %v210 = vsub.s32 0, %v209
  %v211 = vrot.slane %v183, %v210
  %vm213 = vcmask 261120
  %v215 = vsel %vm213, %v175, 0
  %v218 = vsel %vm213, %v176, 0
  %220 = vmatprep.subr.mxu0 0.0
  %221 = vmatpush1.msra.mxu0 %v179
  %222 = vmatprep.subr.mxu0 0.0
  %223 = vmatpush1.msra.mxu0 %v180
  %224 = vmatprep.subr.mxu0 0.0
  %225 = vmatpush1.msra.mxu0 %v181
  %226 = vmatprep.subr.mxu0 0.0
  %227 = vmatpush1.msra.mxu0 %v182
  %228 = vmatprep.subr.mxu0 0.0
  %229 = vmatpush1.msra.mxu0 0.0
  %230 = vmatprep.subr.mxu0 0.0
  %231 = vmatpush1.msra.mxu0 0.0
  %232 = vmatprep.subr.mxu0 0.0
  %233 = vmatpush1.msra.mxu0 0.0
  %234 = vmatprep.subr.mxu0 0.0
  %235 = vmatpush1.msra.mxu0 0.0
  %236 = vmatprep.subr.mxu0 0.0
  %237 = vmatpush1.msra.mxu0 0.0
  %238 = vmatprep.subr.mxu0 0.0
  %239 = vmatpush1.msra.mxu0 0.0
  %240 = vmatprep.subr.mxu0 0.0
  %241 = vmatpush1.msra.mxu0 0.0
  %242 = vmatprep.subr.mxu0 0.0
  %243 = vmatpush1.msra.mxu0 0.0
  %244 = vmatprep.subr.mxu0 0.0
  %245 = vmatpush1.msra.mxu0 0.0
  %246 = vmatprep.subr.mxu0 0.0
  %247 = vmatpush1.msra.mxu0 0.0
  %248 = vmatprep.subr.mxu0 0.0
  %249 = vmatpush1.msra.mxu0 0.0
  %250 = vmatprep.subr.mxu0 0.0
  %251 = vmatpush1.msra.mxu0 0.0
  %252 = vmatprep.subr.mxu0 0.0
  %253 = vmatpush1.msra.mxu0 0.0
  %254 = vmatprep.subr.mxu0 0.0
  %255 = vmatpush1.msra.mxu0 0.0
  %256 = vmatprep.subr.mxu0 0.0
  %257 = vmatpush1.msra.mxu0 0.0
  %258 = vmatprep.subr.mxu0 0.0
  %259 = vmatpush1.msra.mxu0 0.0
  %260 = vmatprep.subr.mxu0 0.0
  %261 = vmatpush1.msra.mxu0 0.0
  %262 = vmatprep.subr.mxu0 0.0
  %263 = vmatpush1.msra.mxu0 0.0
  %264 = vmatprep.subr.mxu0 0.0
  %265 = vmatpush1.msra.mxu0 0.0
  %266 = vmatprep.subr.mxu0 0.0
  %267 = vmatpush1.msra.mxu0 0.0
  %268 = vmatprep.subr.mxu0 0.0
  %269 = vmatpush1.msra.mxu0 0.0
  %270 = vmatprep.subr.mxu0 0.0
  %271 = vmatpush1.msra.mxu0 0.0
  %272 = vmatprep.subr.mxu0 0.0
  %273 = vmatpush1.msra.mxu0 0.0
  %274 = vmatprep.subr.mxu0 0.0
  %275 = vmatpush1.msra.mxu0 0.0
  %276 = vmatprep.subr.mxu0 0.0
  %277 = vmatpush1.msra.mxu0 0.0
  %278 = vmatprep.subr.mxu0 0.0
  %279 = vmatpush1.msra.mxu0 0.0
  %280 = vmatprep.subr.mxu0 0.0
  %281 = vmatpush1.msra.mxu0 0.0
  %282 = vmatprep.subr.mxu0 0.0
  %283 = vmatpush1.msra.mxu0 0.0
  %284 = vmatprep.mubr.f32.mxu0 0.0
  %285 = vmatmul.mubr.f32.gmra.mrb[0].mxu0 %v215
  %v286 = vpop.f32.mrb[0].mxu0
  %v287 = vadd.f32 %v211, %v286
  %v288 = vpop.f32.mrb[0].mxu0
  %289 = vmatprep.mubr.f32.mxu0 0.0
  %290 = vmatmul.mubr.f32.gmra.mrb[0].mxu0 %v218
  %v291 = vpop.f32.mrb[0].mxu0
  %v292 = vadd.f32 %v211, %v291
  %v293 = vpop.f32.mrb[0].mxu0
  %294 = vdwg.mxu0
  %297 = vrot.lane.b32.xlu0 %v287, 96
  %v298 = vpop.permute.xlu0 %297
  %299 = vrot.lane.b32.xlu0 %v292, 96
  %v300 = vpop.permute.xlu0 %299
  %vm301 = vcmask 64512
  %v302 = vsel %vm301, %v287, 0
  %v304 = vsel %vm301, %v292, 0
  %v306 = vsel %vm301, %v298, 0
  %v308 = vsel %vm301, %v300, 0
  %310 = vmatprep.subr.mxu0 0.0
  %311 = vmatpush1.xpose.msra.mxu0 %v306
  %312 = vmatprep.subr.mxu0 0.0
  %313 = vmatpush1.xpose.msra.mxu0 %v308
  %314 = vmatprep.subr.mxu0 0.0
  %315 = vmatpush1.xpose.msra.mxu0 0.0
  %316 = vmatprep.subr.mxu0 0.0
  %317 = vmatpush1.xpose.msra.mxu0 0.0
  %318 = vmatprep.subr.mxu0 0.0
  %319 = vmatpush1.xpose.msra.mxu0 0.0
  %320 = vmatprep.subr.mxu0 0.0
  %321 = vmatpush1.xpose.msra.mxu0 0.0
  %322 = vmatprep.subr.mxu0 0.0
  %323 = vmatpush1.xpose.msra.mxu0 0.0
  %324 = vmatprep.subr.mxu0 0.0
  %325 = vmatpush1.xpose.msra.mxu0 0.0
  %326 = vmatprep.subr.mxu0 0.0
  %327 = vmatpush1.xpose.msra.mxu0 0.0
  %328 = vmatprep.subr.mxu0 0.0
  %329 = vmatpush1.xpose.msra.mxu0 0.0
  %330 = vmatprep.subr.mxu0 0.0
  %331 = vmatpush1.xpose.msra.mxu0 0.0
  %332 = vmatprep.subr.mxu0 0.0
  %333 = vmatpush1.xpose.msra.mxu0 0.0
  %334 = vmatprep.subr.mxu0 0.0
  %335 = vmatpush1.xpose.msra.mxu0 0.0
  %336 = vmatprep.subr.mxu0 0.0
  %337 = vmatpush1.xpose.msra.mxu0 0.0
  %338 = vmatprep.subr.mxu0 0.0
  %339 = vmatpush1.xpose.msra.mxu0 0.0
  %340 = vmatprep.subr.mxu0 0.0
  %341 = vmatpush1.xpose.msra.mxu0 0.0
  %342 = vmatprep.subr.mxu0 0.0
  %343 = vmatpush1.xpose.msra.mxu0 0.0
  %344 = vmatprep.subr.mxu0 0.0
  %345 = vmatpush1.xpose.msra.mxu0 0.0
  %346 = vmatprep.subr.mxu0 0.0
  %347 = vmatpush1.xpose.msra.mxu0 0.0
  %348 = vmatprep.subr.mxu0 0.0
  %349 = vmatpush1.xpose.msra.mxu0 0.0
  %350 = vmatprep.subr.mxu0 0.0
  %351 = vmatpush1.xpose.msra.mxu0 0.0
  %352 = vmatprep.subr.mxu0 0.0
  %353 = vmatpush1.xpose.msra.mxu0 0.0
  %354 = vmatprep.subr.mxu0 0.0
  %355 = vmatpush1.xpose.msra.mxu0 0.0
  %356 = vmatprep.subr.mxu0 0.0
  %357 = vmatpush1.xpose.msra.mxu0 0.0
  %358 = vmatprep.subr.mxu0 0.0
  %359 = vmatpush1.xpose.msra.mxu0 0.0
  %360 = vmatprep.subr.mxu0 0.0
  %361 = vmatpush1.xpose.msra.mxu0 0.0
  %362 = vmatprep.subr.mxu0 0.0
  %363 = vmatpush1.xpose.msra.mxu0 0.0
  %364 = vmatprep.subr.mxu0 0.0
  %365 = vmatpush1.xpose.msra.mxu0 0.0
  %366 = vmatprep.subr.mxu0 0.0
  %367 = vmatpush1.xpose.msra.mxu0 0.0
  %368 = vmatprep.subr.mxu0 0.0
  %369 = vmatpush1.xpose.msra.mxu0 0.0
  %370 = vmatprep.subr.mxu0 0.0
  %371 = vmatpush1.xpose.msra.mxu0 0.0
  %372 = vmatprep.subr.mxu0 0.0
  %373 = vmatpush1.xpose.msra.mxu0 0.0
  %374 = vmatprep.mubr.f32.mxu0 0.0
  %375 = vmatmul.mubr.f32.gmra.mrb[0].mxu0 %v302
  %v376 = vpop.f32.mrb[0].mxu0
  %v377 = vadd.f32 0.0, %v376
  %v378 = vpop.f32.mrb[0].mxu0
  %379 = vmatprep.mubr.f32.mxu0 0.0
  %380 = vmatmul.mubr.f32.gmra.mrb[0].mxu0 %v304
  %v381 = vpop.f32.mrb[0].mxu0
  %v382 = vadd.f32 0.0, %v381
  %v383 = vpop.f32.mrb[0].mxu0
  %384 = vdwg.mxu0
  %v385 = vmul.f32 %v377, 0.35355338
  %v386 = vmul.f32 %v382, 0.35355338
  %v387 = vadd.f32 %v385, %v177
  %v388 = vadd.f32 %v386, %v178
  %vm389 = vcmask 130048
  %v390 = vsel %vm389, %v387, -inf
  %391 = vmax.xlane.f32.xlu0 %v390
  %v392 = vpop.xlane.xlu0 %391
  %v393 = vsel %vm389, %v388, -inf
  %394 = vmax.xlane.f32.xlu0 %v393
  %v395 = vpop.xlane.xlu0 %394
  %v396 = vsub.f32 %v387, %v392
  %v397 = vsub.f32 %v388, %v395
  %v398 = vmul.f32 %v396, 1.442695
  %v399 = vpow.pop %v398
  %v400 = vmul.f32 %v397, 1.442695
  %v401 = vpow.pop %v400
  %v402 = vsel %vm389, %v399, 0.0
  %403 = vadd.xlane.f32.xlu0 %v402
  %v404 = vpop.xlane.xlu0 %403
  %v405 = vsel %vm389, %v401, 0.0
  %406 = vadd.xlane.f32.xlu0 %v405
  %v407 = vpop.xlane.xlu0 %406
  %v408 = vrcp.pop %v404
  %v409 = vrcp.pop %v407
  %v410 = vmul.f32 %v399, %v408
  %v411 = vmul.f32 %v401, %v409
  %412 = vrot.lane.b32.xlu0 %v287, 64
  %v413 = vpop.permute.xlu0 %412
  %414 = vrot.lane.b32.xlu0 %v292, 64
  %v415 = vpop.permute.xlu0 %414
  %v419 = vsel %vm389, %v410, 0
  %v422 = vsel %vm389, %v411, 0
  %424 = vmatprep.subr.mxu0 0.0
  %425 = vmatpush1.msra.mxu0 %v413
  %426 = vmatprep.subr.mxu0 0.0
  %427 = vmatpush1.msra.mxu0 %v415
  %428 = vmatprep.subr.mxu0 0.0
  %429 = vmatpush1.msra.mxu0 0.0
  %430 = vmatprep.subr.mxu0 0.0
  %431 = vmatpush1.msra.mxu0 0.0
  %432 = vmatprep.subr.mxu0 0.0
  %433 = vmatpush1.msra.mxu0 0.0
  %434 = vmatprep.subr.mxu0 0.0
  %435 = vmatpush1.msra.mxu0 0.0
  %436 = vmatprep.subr.mxu0 0.0
  %437 = vmatpush1.msra.mxu0 0.0
  %438 = vmatprep.subr.mxu0 0.0
  %439 = vmatpush1.msra.mxu0 0.0
  %440 = vmatprep.subr.mxu0 0.0
  %441 = vmatpush1.msra.mxu0 0.0
  %442 = vmatprep.subr.mxu0 0.0
  %443 = vmatpush1.msra.mxu0 0.0
  %444 = vmatprep.subr.mxu0 0.0
  %445 = vmatpush1.msra.mxu0 0.0
  %446 = vmatprep.subr.mxu0 0.0
  %447 = vmatpush1.msra.mxu0 0.0
  %448 = vmatprep.subr.mxu0 0.0
  %449 = vmatpush1.msra.mxu0 0.0
  %450 = vmatprep.subr.mxu0 0.0
  %451 = vmatpush1.msra.mxu0 0.0
  %452 = vmatprep.subr.mxu0 0.0
  %453 = vmatpush1.msra.mxu0 0.0
  %454 = vmatprep.subr.mxu0 0.0
  %455 = vmatpush1.msra.mxu0 0.0
  %456 = vmatprep.subr.mxu0 0.0
  %457 = vmatpush1.msra.mxu0 0.0
  %458 = vmatprep.subr.mxu0 0.0
  %459 = vmatpush1.msra.mxu0 0.0
  %460 = vmatprep.subr.mxu0 0.0
  %461 = vmatpush1.msra.mxu0 0.0
  %462 = vmatprep.subr.mxu0 0.0
  %463 = vmatpush1.msra.mxu0 0.0
  %464 = vmatprep.subr.mxu0 0.0
  %465 = vmatpush1.msra.mxu0 0.0
  %466 = vmatprep.subr.mxu0 0.0
  %467 = vmatpush1.msra.mxu0 0.0
  %468 = vmatprep.subr.mxu0 0.0
  %469 = vmatpush1.msra.mxu0 0.0
  %470 = vmatprep.subr.mxu0 0.0
  %471 = vmatpush1.msra.mxu0 0.0
  %472 = vmatprep.subr.mxu0 0.0
  %473 = vmatpush1.msra.mxu0 0.0
  %474 = vmatprep.subr.mxu0 0.0
  %475 = vmatpush1.msra.mxu0 0.0
  %476 = vmatprep.subr.mxu0 0.0
  %477 = vmatpush1.msra.mxu0 0.0
  %478 = vmatprep.subr.mxu0 0.0
  %479 = vmatpush1.msra.mxu0 0.0
  %480 = vmatprep.subr.mxu0 0.0
  %481 = vmatpush1.msra.mxu0 0.0
  %482 = vmatprep.subr.mxu0 0.0
  %483 = vmatpush1.msra.mxu0 0.0
  %484 = vmatprep.subr.mxu0 0.0
  %485 = vmatpush1.msra.mxu0 0.0
  %486 = vmatprep.subr.mxu0 0.0
  %487 = vmatpush1.msra.mxu0 0.0
  %488 = vmatprep.mubr.f32.mxu0 0.0
  %489 = vmatmul.mubr.f32.gmra.mrb[0].mxu0 %v419
  %v490 = vpop.f32.mrb[0].mxu0
  %v491 = vadd.f32 0.0, %v490
  %v492 = vpop.f32.mrb[0].mxu0
  %493 = vmatprep.mubr.f32.mxu0 0.0
  %494 = vmatmul.mubr.f32.gmra.mrb[0].mxu0 %v422
  %v495 = vpop.f32.mrb[0].mxu0
  %v496 = vadd.f32 0.0, %v495
  %v497 = vpop.f32.mrb[0].mxu0
  %498 = vdwg.mxu0
  %499 = vrot.lane.b32.xlu0 %v287, 120
  %v500 = vpop.permute.xlu0 %499
  %501 = vrot.lane.b32.xlu0 %v292, 120
  %v502 = vpop.permute.xlu0 %501
  %503 = vrot.lane.b32.xlu0 %v287, 88
  %v504 = vpop.permute.xlu0 %503
  %505 = vrot.lane.b32.xlu0 %v292, 88
  %v506 = vpop.permute.xlu0 %505
  %v507 = vsel %vm301, %v500, 0
  %v509 = vsel %vm301, %v502, 0
  %v511 = vsel %vm301, %v504, 0
  %v513 = vsel %vm301, %v506, 0
  %515 = vmatprep.subr.mxu0 0.0
  %516 = vmatpush1.xpose.msra.mxu0 %v511
  %517 = vmatprep.subr.mxu0 0.0
  %518 = vmatpush1.xpose.msra.mxu0 %v513
  %519 = vmatprep.subr.mxu0 0.0
  %520 = vmatpush1.xpose.msra.mxu0 0.0
  %521 = vmatprep.subr.mxu0 0.0
  %522 = vmatpush1.xpose.msra.mxu0 0.0
  %523 = vmatprep.subr.mxu0 0.0
  %524 = vmatpush1.xpose.msra.mxu0 0.0
  %525 = vmatprep.subr.mxu0 0.0
  %526 = vmatpush1.xpose.msra.mxu0 0.0
  %527 = vmatprep.subr.mxu0 0.0
  %528 = vmatpush1.xpose.msra.mxu0 0.0
  %529 = vmatprep.subr.mxu0 0.0
  %530 = vmatpush1.xpose.msra.mxu0 0.0
  %531 = vmatprep.subr.mxu0 0.0
  %532 = vmatpush1.xpose.msra.mxu0 0.0
  %533 = vmatprep.subr.mxu0 0.0
  %534 = vmatpush1.xpose.msra.mxu0 0.0
  %535 = vmatprep.subr.mxu0 0.0
  %536 = vmatpush1.xpose.msra.mxu0 0.0
  %537 = vmatprep.subr.mxu0 0.0
  %538 = vmatpush1.xpose.msra.mxu0 0.0
  %539 = vmatprep.subr.mxu0 0.0
  %540 = vmatpush1.xpose.msra.mxu0 0.0
  %541 = vmatprep.subr.mxu0 0.0
  %542 = vmatpush1.xpose.msra.mxu0 0.0
  %543 = vmatprep.subr.mxu0 0.0
  %544 = vmatpush1.xpose.msra.mxu0 0.0
  %545 = vmatprep.subr.mxu0 0.0
  %546 = vmatpush1.xpose.msra.mxu0 0.0
  %547 = vmatprep.subr.mxu0 0.0
  %548 = vmatpush1.xpose.msra.mxu0 0.0
  %549 = vmatprep.subr.mxu0 0.0
  %550 = vmatpush1.xpose.msra.mxu0 0.0
  %551 = vmatprep.subr.mxu0 0.0
  %552 = vmatpush1.xpose.msra.mxu0 0.0
  %553 = vmatprep.subr.mxu0 0.0
  %554 = vmatpush1.xpose.msra.mxu0 0.0
  %555 = vmatprep.subr.mxu0 0.0
  %556 = vmatpush1.xpose.msra.mxu0 0.0
  %557 = vmatprep.subr.mxu0 0.0
  %558 = vmatpush1.xpose.msra.mxu0 0.0
  %559 = vmatprep.subr.mxu0 0.0
  %560 = vmatpush1.xpose.msra.mxu0 0.0
  %561 = vmatprep.subr.mxu0 0.0
  %562 = vmatpush1.xpose.msra.mxu0 0.0
  %563 = vmatprep.subr.mxu0 0.0
  %564 = vmatpush1.xpose.msra.mxu0 0.0
  %565 = vmatprep.subr.mxu0 0.0
  %566 = vmatpush1.xpose.msra.mxu0 0.0
  %567 = vmatprep.subr.mxu0 0.0
  %568 = vmatpush1.xpose.msra.mxu0 0.0
  %569 = vmatprep.subr.mxu0 0.0
  %570 = vmatpush1.xpose.msra.mxu0 0.0
  %571 = vmatprep.subr.mxu0 0.0
  %572 = vmatpush1.xpose.msra.mxu0 0.0
  %573 = vmatprep.subr.mxu0 0.0
  %574 = vmatpush1.xpose.msra.mxu0 0.0
  %575 = vmatprep.subr.mxu0 0.0
  %576 = vmatpush1.xpose.msra.mxu0 0.0
  %577 = vmatprep.subr.mxu0 0.0
  %578 = vmatpush1.xpose.msra.mxu0 0.0
  %579 = vmatprep.mubr.f32.mxu0 0.0
  %580 = vmatmul.mubr.f32.gmra.mrb[0].mxu0 %v507
  %v581 = vpop.f32.mrb[0].mxu0
  %v582 = vadd.f32 0.0, %v581
  %v583 = vpop.f32.mrb[0].mxu0
  %584 = vmatprep.mubr.f32.mxu0 0.0
  %585 = vmatmul.mubr.f32.gmra.mrb[0].mxu0 %v509
  %v586 = vpop.f32.mrb[0].mxu0
  %v587 = vadd.f32 0.0, %v586
  %v588 = vpop.f32.mrb[0].mxu0
  %589 = vdwg.mxu0
  %v590 = vmul.f32 %v582, 0.35355338
  %v591 = vmul.f32 %v587, 0.35355338
  %v592 = vadd.f32 %v590, %v177
  %v593 = vadd.f32 %v591, %v178
  %v594 = vsel %vm389, %v592, -inf
  %595 = vmax.xlane.f32.xlu0 %v594
  %v596 = vpop.xlane.xlu0 %595
  %v597 = vsel %vm389, %v593, -inf
  %598 = vmax.xlane.f32.xlu0 %v597
  %v599 = vpop.xlane.xlu0 %598
  %v600 = vsub.f32 %v592, %v596
  %v601 = vsub.f32 %v593, %v599
  %v602 = vmul.f32 %v600, 1.442695
  %v603 = vpow.pop %v602
  %v604 = vmul.f32 %v601, 1.442695
  %v605 = vpow.pop %v604
  %v606 = vsel %vm389, %v603, 0.0
  %607 = vadd.xlane.f32.xlu0 %v606
  %v608 = vpop.xlane.xlu0 %607
  %v609 = vsel %vm389, %v605, 0.0
  %610 = vadd.xlane.f32.xlu0 %v609
  %v611 = vpop.xlane.xlu0 %610
  %v612 = vrcp.pop %v608
  %v613 = vrcp.pop %v611
  %v614 = vmul.f32 %v603, %v612
  %v615 = vmul.f32 %v605, %v613
  %616 = vrot.lane.b32.xlu0 %v287, 56
  %v617 = vpop.permute.xlu0 %616
  %618 = vrot.lane.b32.xlu0 %v292, 56
  %v619 = vpop.permute.xlu0 %618
  %v623 = vsel %vm389, %v614, 0
  %v626 = vsel %vm389, %v615, 0
  %628 = vmatprep.subr.mxu0 0.0
  %629 = vmatpush1.msra.mxu0 %v617
  %630 = vmatprep.subr.mxu0 0.0
  %631 = vmatpush1.msra.mxu0 %v619
  %632 = vmatprep.subr.mxu0 0.0
  %633 = vmatpush1.msra.mxu0 0.0
  %634 = vmatprep.subr.mxu0 0.0
  %635 = vmatpush1.msra.mxu0 0.0
  %636 = vmatprep.subr.mxu0 0.0
  %637 = vmatpush1.msra.mxu0 0.0
  %638 = vmatprep.subr.mxu0 0.0
  %639 = vmatpush1.msra.mxu0 0.0
  %640 = vmatprep.subr.mxu0 0.0
  %641 = vmatpush1.msra.mxu0 0.0
  %642 = vmatprep.subr.mxu0 0.0
  %643 = vmatpush1.msra.mxu0 0.0
  %644 = vmatprep.subr.mxu0 0.0
  %645 = vmatpush1.msra.mxu0 0.0
  %646 = vmatprep.subr.mxu0 0.0
  %647 = vmatpush1.msra.mxu0 0.0
  %648 = vmatprep.subr.mxu0 0.0
  %649 = vmatpush1.msra.mxu0 0.0
  %650 = vmatprep.subr.mxu0 0.0
  %651 = vmatpush1.msra.mxu0 0.0
  %652 = vmatprep.subr.mxu0 0.0
  %653 = vmatpush1.msra.mxu0 0.0
  %654 = vmatprep.subr.mxu0 0.0
  %655 = vmatpush1.msra.mxu0 0.0
  %656 = vmatprep.subr.mxu0 0.0
  %657 = vmatpush1.msra.mxu0 0.0
  %658 = vmatprep.subr.mxu0 0.0
  %659 = vmatpush1.msra.mxu0 0.0
  %660 = vmatprep.subr.mxu0 0.0
  %661 = vmatpush1.msra.mxu0 0.0
  %662 = vmatprep.subr.mxu0 0.0
  %663 = vmatpush1.msra.mxu0 0.0
  %664 = vmatprep.subr.mxu0 0.0
  %665 = vmatpush1.msra.mxu0 0.0
  %666 = vmatprep.subr.mxu0 0.0
  %667 = vmatpush1.msra.mxu0 0.0
  %668 = vmatprep.subr.mxu0 0.0
  %669 = vmatpush1.msra.mxu0 0.0
  %670 = vmatprep.subr.mxu0 0.0
  %671 = vmatpush1.msra.mxu0 0.0
  %672 = vmatprep.subr.mxu0 0.0
  %673 = vmatpush1.msra.mxu0 0.0
  %674 = vmatprep.subr.mxu0 0.0
  %675 = vmatpush1.msra.mxu0 0.0
  %676 = vmatprep.subr.mxu0 0.0
  %677 = vmatpush1.msra.mxu0 0.0
  %678 = vmatprep.subr.mxu0 0.0
  %679 = vmatpush1.msra.mxu0 0.0
  %680 = vmatprep.subr.mxu0 0.0
  %681 = vmatpush1.msra.mxu0 0.0
  %682 = vmatprep.subr.mxu0 0.0
  %683 = vmatpush1.msra.mxu0 0.0
  %684 = vmatprep.subr.mxu0 0.0
  %685 = vmatpush1.msra.mxu0 0.0
  %686 = vmatprep.subr.mxu0 0.0
  %687 = vmatpush1.msra.mxu0 0.0
  %688 = vmatprep.subr.mxu0 0.0
  %689 = vmatpush1.msra.mxu0 0.0
  %690 = vmatprep.subr.mxu0 0.0
  %691 = vmatpush1.msra.mxu0 0.0
  %692 = vmatprep.mubr.f32.mxu0 0.0
  %693 = vmatmul.mubr.f32.gmra.mrb[0].mxu0 %v623
  %v694 = vpop.f32.mrb[0].mxu0
  %v695 = vadd.f32 0.0, %v694
  %v696 = vpop.f32.mrb[0].mxu0
  %697 = vmatprep.mubr.f32.mxu0 0.0
  %698 = vmatmul.mubr.f32.gmra.mrb[0].mxu0 %v626
  %v699 = vpop.f32.mrb[0].mxu0
  %v700 = vadd.f32 0.0, %v699
  %v701 = vpop.f32.mrb[0].mxu0
  %702 = vdwg.mxu0
  %v704 = vsel %vm301, %v695, 0
  %v707 = vsel %vm301, %v700, 0
  %709 = vmatprep.subr.mxu0 0.0
  %710 = vmatpush1.msra.mxu0 %v185
  %711 = vmatprep.subr.mxu0 0.0
  %712 = vmatpush1.msra.mxu0 0.0
  %713 = vmatprep.subr.mxu0 0.0
  %714 = vmatpush1.msra.mxu0 0.0
  %715 = vmatprep.subr.mxu0 0.0
  %716 = vmatpush1.msra.mxu0 0.0
  %717 = vmatprep.subr.mxu0 0.0
  %718 = vmatpush1.msra.mxu0 0.0
  %719 = vmatprep.subr.mxu0 0.0
  %720 = vmatpush1.msra.mxu0 0.0
  %721 = vmatprep.subr.mxu0 0.0
  %722 = vmatpush1.msra.mxu0 0.0
  %723 = vmatprep.subr.mxu0 0.0
  %724 = vmatpush1.msra.mxu0 0.0
  %725 = vmatprep.subr.mxu0 0.0
  %726 = vmatpush1.msra.mxu0 0.0
  %727 = vmatprep.subr.mxu0 0.0
  %728 = vmatpush1.msra.mxu0 0.0
  %729 = vmatprep.subr.mxu0 0.0
  %730 = vmatpush1.msra.mxu0 0.0
  %731 = vmatprep.subr.mxu0 0.0
  %732 = vmatpush1.msra.mxu0 0.0
  %733 = vmatprep.subr.mxu0 0.0
  %734 = vmatpush1.msra.mxu0 0.0
  %735 = vmatprep.subr.mxu0 0.0
  %736 = vmatpush1.msra.mxu0 0.0
  %737 = vmatprep.subr.mxu0 0.0
  %738 = vmatpush1.msra.mxu0 0.0
  %739 = vmatprep.subr.mxu0 0.0
  %740 = vmatpush1.msra.mxu0 0.0
  %741 = vmatprep.subr.mxu0 0.0
  %742 = vmatpush1.msra.mxu0 0.0
  %743 = vmatprep.subr.mxu0 0.0
  %744 = vmatpush1.msra.mxu0 0.0
  %745 = vmatprep.subr.mxu0 0.0
  %746 = vmatpush1.msra.mxu0 0.0
  %747 = vmatprep.subr.mxu0 0.0
  %748 = vmatpush1.msra.mxu0 0.0
  %749 = vmatprep.subr.mxu0 0.0
  %750 = vmatpush1.msra.mxu0 0.0
  %751 = vmatprep.subr.mxu0 0.0
  %752 = vmatpush1.msra.mxu0 0.0
  %753 = vmatprep.subr.mxu0 0.0
  %754 = vmatpush1.msra.mxu0 0.0
  %755 = vmatprep.subr.mxu0 0.0
  %756 = vmatpush1.msra.mxu0 0.0
  %757 = vmatprep.subr.mxu0 0.0
  %758 = vmatpush1.msra.mxu0 0.0
  %759 = vmatprep.subr.mxu0 0.0
  %760 = vmatpush1.msra.mxu0 0.0
  %761 = vmatprep.subr.mxu0 0.0
  %762 = vmatpush1.msra.mxu0 0.0
  %763 = vmatprep.subr.mxu0 0.0
  %764 = vmatpush1.msra.mxu0 0.0
  %765 = vmatprep.subr.mxu0 0.0
  %766 = vmatpush1.msra.mxu0 0.0
  %767 = vmatprep.subr.mxu0 0.0
  %768 = vmatpush1.msra.mxu0 0.0
  %769 = vmatprep.subr.mxu0 0.0
  %770 = vmatpush1.msra.mxu0 0.0
  %771 = vmatprep.subr.mxu0 0.0
  %772 = vmatpush1.msra.mxu0 0.0
  %773 = vmatprep.mubr.f32.mxu0 0.0
  %774 = vmatmul.mubr.f32.gmra.mrb[0].mxu0 %v704
  %v775 = vpop.f32.mrb[0].mxu0
  %v776 = vadd.f32 0.0, %v775
  %v777 = vpop.f32.mrb[0].mxu0
  %778 = vmatprep.mubr.f32.mxu0 0.0
  %779 = vmatmul.mubr.f32.gmra.mrb[0].mxu0 %v707
  %v780 = vpop.f32.mrb[0].mxu0
  %v781 = vadd.f32 0.0, %v780
  %v782 = vpop.f32.mrb[0].mxu0
  %783 = vdwg.mxu0
  %v785 = vsel %vm301, %v491, 0
  %v788 = vsel %vm301, %v496, 0
  %790 = vmatprep.subr.mxu0 0.0
  %791 = vmatpush1.msra.mxu0 %v184
  %792 = vmatprep.subr.mxu0 0.0
  %793 = vmatpush1.msra.mxu0 0.0
  %794 = vmatprep.subr.mxu0 0.0
  %795 = vmatpush1.msra.mxu0 0.0
  %796 = vmatprep.subr.mxu0 0.0
  %797 = vmatpush1.msra.mxu0 0.0
  %798 = vmatprep.subr.mxu0 0.0
  %799 = vmatpush1.msra.mxu0 0.0
  %800 = vmatprep.subr.mxu0 0.0
  %801 = vmatpush1.msra.mxu0 0.0
  %802 = vmatprep.subr.mxu0 0.0
  %803 = vmatpush1.msra.mxu0 0.0
  %804 = vmatprep.subr.mxu0 0.0
  %805 = vmatpush1.msra.mxu0 0.0
  %806 = vmatprep.subr.mxu0 0.0
  %807 = vmatpush1.msra.mxu0 0.0
  %808 = vmatprep.subr.mxu0 0.0
  %809 = vmatpush1.msra.mxu0 0.0
  %810 = vmatprep.subr.mxu0 0.0
  %811 = vmatpush1.msra.mxu0 0.0
  %812 = vmatprep.subr.mxu0 0.0
  %813 = vmatpush1.msra.mxu0 0.0
  %814 = vmatprep.subr.mxu0 0.0
  %815 = vmatpush1.msra.mxu0 0.0
  %816 = vmatprep.subr.mxu0 0.0
  %817 = vmatpush1.msra.mxu0 0.0
  %818 = vmatprep.subr.mxu0 0.0
  %819 = vmatpush1.msra.mxu0 0.0
  %820 = vmatprep.subr.mxu0 0.0
  %821 = vmatpush1.msra.mxu0 0.0
  %822 = vmatprep.subr.mxu0 0.0
  %823 = vmatpush1.msra.mxu0 0.0
  %824 = vmatprep.subr.mxu0 0.0
  %825 = vmatpush1.msra.mxu0 0.0
  %826 = vmatprep.subr.mxu0 0.0
  %827 = vmatpush1.msra.mxu0 0.0
  %828 = vmatprep.subr.mxu0 0.0
  %829 = vmatpush1.msra.mxu0 0.0
  %830 = vmatprep.subr.mxu0 0.0
  %831 = vmatpush1.msra.mxu0 0.0
  %832 = vmatprep.subr.mxu0 0.0
  %833 = vmatpush1.msra.mxu0 0.0
  %834 = vmatprep.subr.mxu0 0.0
  %835 = vmatpush1.msra.mxu0 0.0
  %836 = vmatprep.subr.mxu0 0.0
  %837 = vmatpush1.msra.mxu0 0.0
  %838 = vmatprep.subr.mxu0 0.0
  %839 = vmatpush1.msra.mxu0 0.0
  %840 = vmatprep.subr.mxu0 0.0
  %841 = vmatpush1.msra.mxu0 0.0
  %842 = vmatprep.subr.mxu0 0.0
  %843 = vmatpush1.msra.mxu0 0.0
  %844 = vmatprep.subr.mxu0 0.0
  %845 = vmatpush1.msra.mxu0 0.0
  %846 = vmatprep.subr.mxu0 0.0
  %847 = vmatpush1.msra.mxu0 0.0
  %848 = vmatprep.subr.mxu0 0.0
  %849 = vmatpush1.msra.mxu0 0.0
  %850 = vmatprep.subr.mxu0 0.0
  %851 = vmatpush1.msra.mxu0 0.0
  %852 = vmatprep.subr.mxu0 0.0
  %853 = vmatpush1.msra.mxu0 0.0
  %854 = vmatprep.mubr.f32.mxu0 0.0
  %855 = vmatmul.mubr.f32.gmra.mrb[0].mxu0 %v785
  %v856 = vpop.f32.mrb[0].mxu0
  %v857 = vadd.f32 %v776, %v856
  %v858 = vpop.f32.mrb[0].mxu0
  %859 = vmatprep.mubr.f32.mxu0 0.0
  %860 = vmatmul.mubr.f32.gmra.mrb[0].mxu0 %v788
  %v861 = vpop.f32.mrb[0].mxu0
  %v862 = vadd.f32 %v781, %v861
  %v863 = vpop.f32.mrb[0].mxu0
  %864 = vdwg.mxu0
  %865 = vrot.lane.b32.xlu0 %v287, 112
  %v866 = vpop.permute.xlu0 %865
  %867 = vrot.lane.b32.xlu0 %v292, 112
  %v868 = vpop.permute.xlu0 %867
  %869 = vrot.lane.b32.xlu0 %v287, 80
  %v870 = vpop.permute.xlu0 %869
  %871 = vrot.lane.b32.xlu0 %v292, 80
  %v872 = vpop.permute.xlu0 %871
  %v873 = vsel %vm301, %v866, 0
  %v875 = vsel %vm301, %v868, 0
  %v877 = vsel %vm301, %v870, 0
  %v879 = vsel %vm301, %v872, 0
  %881 = vmatprep.subr.mxu0 0.0
  %882 = vmatpush1.xpose.msra.mxu0 %v877
  %883 = vmatprep.subr.mxu0 0.0
  %884 = vmatpush1.xpose.msra.mxu0 %v879
  %885 = vmatprep.subr.mxu0 0.0
  %886 = vmatpush1.xpose.msra.mxu0 0.0
  %887 = vmatprep.subr.mxu0 0.0
  %888 = vmatpush1.xpose.msra.mxu0 0.0
  %889 = vmatprep.subr.mxu0 0.0
  %890 = vmatpush1.xpose.msra.mxu0 0.0
  %891 = vmatprep.subr.mxu0 0.0
  %892 = vmatpush1.xpose.msra.mxu0 0.0
  %893 = vmatprep.subr.mxu0 0.0
  %894 = vmatpush1.xpose.msra.mxu0 0.0
  %895 = vmatprep.subr.mxu0 0.0
  %896 = vmatpush1.xpose.msra.mxu0 0.0
  %897 = vmatprep.subr.mxu0 0.0
  %898 = vmatpush1.xpose.msra.mxu0 0.0
  %899 = vmatprep.subr.mxu0 0.0
  %900 = vmatpush1.xpose.msra.mxu0 0.0
  %901 = vmatprep.subr.mxu0 0.0
  %902 = vmatpush1.xpose.msra.mxu0 0.0
  %903 = vmatprep.subr.mxu0 0.0
  %904 = vmatpush1.xpose.msra.mxu0 0.0
  %905 = vmatprep.subr.mxu0 0.0
  %906 = vmatpush1.xpose.msra.mxu0 0.0
  %907 = vmatprep.subr.mxu0 0.0
  %908 = vmatpush1.xpose.msra.mxu0 0.0
  %909 = vmatprep.subr.mxu0 0.0
  %910 = vmatpush1.xpose.msra.mxu0 0.0
  %911 = vmatprep.subr.mxu0 0.0
  %912 = vmatpush1.xpose.msra.mxu0 0.0
  %913 = vmatprep.subr.mxu0 0.0
  %914 = vmatpush1.xpose.msra.mxu0 0.0
  %915 = vmatprep.subr.mxu0 0.0
  %916 = vmatpush1.xpose.msra.mxu0 0.0
  %917 = vmatprep.subr.mxu0 0.0
  %918 = vmatpush1.xpose.msra.mxu0 0.0
  %919 = vmatprep.subr.mxu0 0.0
  %920 = vmatpush1.xpose.msra.mxu0 0.0
  %921 = vmatprep.subr.mxu0 0.0
  %922 = vmatpush1.xpose.msra.mxu0 0.0
  %923 = vmatprep.subr.mxu0 0.0
  %924 = vmatpush1.xpose.msra.mxu0 0.0
  %925 = vmatprep.subr.mxu0 0.0
  %926 = vmatpush1.xpose.msra.mxu0 0.0
  %927 = vmatprep.subr.mxu0 0.0
  %928 = vmatpush1.xpose.msra.mxu0 0.0
  %929 = vmatprep.subr.mxu0 0.0
  %930 = vmatpush1.xpose.msra.mxu0 0.0
  %931 = vmatprep.subr.mxu0 0.0
  %932 = vmatpush1.xpose.msra.mxu0 0.0
  %933 = vmatprep.subr.mxu0 0.0
  %934 = vmatpush1.xpose.msra.mxu0 0.0
  %935 = vmatprep.subr.mxu0 0.0
  %936 = vmatpush1.xpose.msra.mxu0 0.0
  %937 = vmatprep.subr.mxu0 0.0
  %938 = vmatpush1.xpose.msra.mxu0 0.0
  %939 = vmatprep.subr.mxu0 0.0
  %940 = vmatpush1.xpose.msra.mxu0 0.0
  %941 = vmatprep.subr.mxu0 0.0
  %942 = vmatpush1.xpose.msra.mxu0 0.0
  %943 = vmatprep.subr.mxu0 0.0
  %944 = vmatpush1.xpose.msra.mxu0 0.0
  %945 = vmatprep.mubr.f32.mxu0 0.0
  %946 = vmatmul.mubr.f32.gmra.mrb[0].mxu0 %v873
  %v947 = vpop.f32.mrb[0].mxu0
  %v948 = vadd.f32 0.0, %v947
  %v949 = vpop.f32.mrb[0].mxu0
  %950 = vmatprep.mubr.f32.mxu0 0.0
  %951 = vmatmul.mubr.f32.gmra.mrb[0].mxu0 %v875
  %v952 = vpop.f32.mrb[0].mxu0
  %v953 = vadd.f32 0.0, %v952
  %v954 = vpop.f32.mrb[0].mxu0
  %955 = vdwg.mxu0
  %v956 = vmul.f32 %v948, 0.35355338
  %v957 = vmul.f32 %v953, 0.35355338
  %v958 = vadd.f32 %v956, %v177
  %v959 = vadd.f32 %v957, %v178
  %v960 = vsel %vm389, %v958, -inf
  %961 = vmax.xlane.f32.xlu0 %v960
  %v962 = vpop.xlane.xlu0 %961
  %v963 = vsel %vm389, %v959, -inf
  %964 = vmax.xlane.f32.xlu0 %v963
  %v965 = vpop.xlane.xlu0 %964
  %v966 = vsub.f32 %v958, %v962
  %v967 = vsub.f32 %v959, %v965
  %v968 = vmul.f32 %v966, 1.442695
  %v969 = vpow.pop %v968
  %v970 = vmul.f32 %v967, 1.442695
  %v971 = vpow.pop %v970
  %v972 = vsel %vm389, %v969, 0.0
  %973 = vadd.xlane.f32.xlu0 %v972
  %v974 = vpop.xlane.xlu0 %973
  %v975 = vsel %vm389, %v971, 0.0
  %976 = vadd.xlane.f32.xlu0 %v975
  %v977 = vpop.xlane.xlu0 %976
  %v978 = vrcp.pop %v974
  %v979 = vrcp.pop %v977
  %v980 = vmul.f32 %v969, %v978
  %v981 = vmul.f32 %v971, %v979
  %982 = vrot.lane.b32.xlu0 %v287, 48
  %v983 = vpop.permute.xlu0 %982
  %984 = vrot.lane.b32.xlu0 %v292, 48
  %v985 = vpop.permute.xlu0 %984
  %v989 = vsel %vm389, %v980, 0
  %v992 = vsel %vm389, %v981, 0
  %994 = vmatprep.subr.mxu0 0.0
  %995 = vmatpush1.msra.mxu0 %v983
  %996 = vmatprep.subr.mxu0 0.0
  %997 = vmatpush1.msra.mxu0 %v985
  %998 = vmatprep.subr.mxu0 0.0
  %999 = vmatpush1.msra.mxu0 0.0
  %1000 = vmatprep.subr.mxu0 0.0
  %1001 = vmatpush1.msra.mxu0 0.0
  %1002 = vmatprep.subr.mxu0 0.0
  %1003 = vmatpush1.msra.mxu0 0.0
  %1004 = vmatprep.subr.mxu0 0.0
  %1005 = vmatpush1.msra.mxu0 0.0
  %1006 = vmatprep.subr.mxu0 0.0
  %1007 = vmatpush1.msra.mxu0 0.0
  %1008 = vmatprep.subr.mxu0 0.0
  %1009 = vmatpush1.msra.mxu0 0.0
  %1010 = vmatprep.subr.mxu0 0.0
  %1011 = vmatpush1.msra.mxu0 0.0
  %1012 = vmatprep.subr.mxu0 0.0
  %1013 = vmatpush1.msra.mxu0 0.0
  %1014 = vmatprep.subr.mxu0 0.0
  %1015 = vmatpush1.msra.mxu0 0.0
  %1016 = vmatprep.subr.mxu0 0.0
  %1017 = vmatpush1.msra.mxu0 0.0
  %1018 = vmatprep.subr.mxu0 0.0
  %1019 = vmatpush1.msra.mxu0 0.0
  %1020 = vmatprep.subr.mxu0 0.0
  %1021 = vmatpush1.msra.mxu0 0.0
  %1022 = vmatprep.subr.mxu0 0.0
  %1023 = vmatpush1.msra.mxu0 0.0
  %1024 = vmatprep.subr.mxu0 0.0
  %1025 = vmatpush1.msra.mxu0 0.0
  %1026 = vmatprep.subr.mxu0 0.0
  %1027 = vmatpush1.msra.mxu0 0.0
  %1028 = vmatprep.subr.mxu0 0.0
  %1029 = vmatpush1.msra.mxu0 0.0
  %1030 = vmatprep.subr.mxu0 0.0
  %1031 = vmatpush1.msra.mxu0 0.0
  %1032 = vmatprep.subr.mxu0 0.0
  %1033 = vmatpush1.msra.mxu0 0.0
  %1034 = vmatprep.subr.mxu0 0.0
  %1035 = vmatpush1.msra.mxu0 0.0
  %1036 = vmatprep.subr.mxu0 0.0
  %1037 = vmatpush1.msra.mxu0 0.0
  %1038 = vmatprep.subr.mxu0 0.0
  %1039 = vmatpush1.msra.mxu0 0.0
  %1040 = vmatprep.subr.mxu0 0.0
  %1041 = vmatpush1.msra.mxu0 0.0
  %1042 = vmatprep.subr.mxu0 0.0
  %1043 = vmatpush1.msra.mxu0 0.0
  %1044 = vmatprep.subr.mxu0 0.0
  %1045 = vmatpush1.msra.mxu0 0.0
  %1046 = vmatprep.subr.mxu0 0.0
  %1047 = vmatpush1.msra.mxu0 0.0
  %1048 = vmatprep.subr.mxu0 0.0
  %1049 = vmatpush1.msra.mxu0 0.0
  %1050 = vmatprep.subr.mxu0 0.0
  %1051 = vmatpush1.msra.mxu0 0.0
  %1052 = vmatprep.subr.mxu0 0.0
  %1053 = vmatpush1.msra.mxu0 0.0
  %1054 = vmatprep.subr.mxu0 0.0
  %1055 = vmatpush1.msra.mxu0 0.0
  %1056 = vmatprep.subr.mxu0 0.0
  %1057 = vmatpush1.msra.mxu0 0.0
  %1058 = vmatprep.mubr.f32.mxu0 0.0
  %1059 = vmatmul.mubr.f32.gmra.mrb[0].mxu0 %v989
  %v1060 = vpop.f32.mrb[0].mxu0
  %v1061 = vadd.f32 0.0, %v1060
  %v1062 = vpop.f32.mrb[0].mxu0
  %1063 = vmatprep.mubr.f32.mxu0 0.0
  %1064 = vmatmul.mubr.f32.gmra.mrb[0].mxu0 %v992
  %v1065 = vpop.f32.mrb[0].mxu0
  %v1066 = vadd.f32 0.0, %v1065
  %v1067 = vpop.f32.mrb[0].mxu0
  %1068 = vdwg.mxu0
  %v1070 = vsel %vm301, %v1061, 0
  %v1073 = vsel %vm301, %v1066, 0
  %1075 = vmatprep.subr.mxu0 0.0
  %1076 = vmatpush1.msra.mxu0 %v186
  %1077 = vmatprep.subr.mxu0 0.0
  %1078 = vmatpush1.msra.mxu0 0.0
  %1079 = vmatprep.subr.mxu0 0.0
  %1080 = vmatpush1.msra.mxu0 0.0
  %1081 = vmatprep.subr.mxu0 0.0
  %1082 = vmatpush1.msra.mxu0 0.0
  %1083 = vmatprep.subr.mxu0 0.0
  %1084 = vmatpush1.msra.mxu0 0.0
  %1085 = vmatprep.subr.mxu0 0.0
  %1086 = vmatpush1.msra.mxu0 0.0
  %1087 = vmatprep.subr.mxu0 0.0
  %1088 = vmatpush1.msra.mxu0 0.0
  %1089 = vmatprep.subr.mxu0 0.0
  %1090 = vmatpush1.msra.mxu0 0.0
  %1091 = vmatprep.subr.mxu0 0.0
  %1092 = vmatpush1.msra.mxu0 0.0
  %1093 = vmatprep.subr.mxu0 0.0
  %1094 = vmatpush1.msra.mxu0 0.0
  %1095 = vmatprep.subr.mxu0 0.0
  %1096 = vmatpush1.msra.mxu0 0.0
  %1097 = vmatprep.subr.mxu0 0.0
  %1098 = vmatpush1.msra.mxu0 0.0
  %1099 = vmatprep.subr.mxu0 0.0
  %1100 = vmatpush1.msra.mxu0 0.0
  %1101 = vmatprep.subr.mxu0 0.0
  %1102 = vmatpush1.msra.mxu0 0.0
  %1103 = vmatprep.subr.mxu0 0.0
  %1104 = vmatpush1.msra.mxu0 0.0
  %1105 = vmatprep.subr.mxu0 0.0
  %1106 = vmatpush1.msra.mxu0 0.0
  %1107 = vmatprep.subr.mxu0 0.0
  %1108 = vmatpush1.msra.mxu0 0.0
  %1109 = vmatprep.subr.mxu0 0.0
  %1110 = vmatpush1.msra.mxu0 0.0
  %1111 = vmatprep.subr.mxu0 0.0
  %1112 = vmatpush1.msra.mxu0 0.0
  %1113 = vmatprep.subr.mxu0 0.0
  %1114 = vmatpush1.msra.mxu0 0.0
  %1115 = vmatprep.subr.mxu0 0.0
  %1116 = vmatpush1.msra.mxu0 0.0
  %1117 = vmatprep.subr.mxu0 0.0
  %1118 = vmatpush1.msra.mxu0 0.0
  %1119 = vmatprep.subr.mxu0 0.0
  %1120 = vmatpush1.msra.mxu0 0.0
  %1121 = vmatprep.subr.mxu0 0.0
  %1122 = vmatpush1.msra.mxu0 0.0
  %1123 = vmatprep.subr.mxu0 0.0
  %1124 = vmatpush1.msra.mxu0 0.0
  %1125 = vmatprep.subr.mxu0 0.0
  %1126 = vmatpush1.msra.mxu0 0.0
  %1127 = vmatprep.subr.mxu0 0.0
  %1128 = vmatpush1.msra.mxu0 0.0
  %1129 = vmatprep.subr.mxu0 0.0
  %1130 = vmatpush1.msra.mxu0 0.0
  %1131 = vmatprep.subr.mxu0 0.0
  %1132 = vmatpush1.msra.mxu0 0.0
  %1133 = vmatprep.subr.mxu0 0.0
  %1134 = vmatpush1.msra.mxu0 0.0
  %1135 = vmatprep.subr.mxu0 0.0
  %1136 = vmatpush1.msra.mxu0 0.0
  %1137 = vmatprep.subr.mxu0 0.0
  %1138 = vmatpush1.msra.mxu0 0.0
  %1139 = vmatprep.mubr.f32.mxu0 0.0
  %1140 = vmatmul.mubr.f32.gmra.mrb[0].mxu0 %v1070
  %v1141 = vpop.f32.mrb[0].mxu0
  %v1142 = vadd.f32 0.0, %v1141
  %v1143 = vpop.f32.mrb[0].mxu0
  %1144 = vmatprep.mubr.f32.mxu0 0.0
  %1145 = vmatmul.mubr.f32.gmra.mrb[0].mxu0 %v1073
  %v1146 = vpop.f32.mrb[0].mxu0
  %v1147 = vadd.f32 0.0, %v1146
  %v1148 = vpop.f32.mrb[0].mxu0
  %1149 = vdwg.mxu0
  %v1150 = vadd.f32 %v857, %v1142
  %v1151 = vadd.f32 %v862, %v1147
  %1152 = vrot.lane.b32.xlu0 %v287, 104
  %v1153 = vpop.permute.xlu0 %1152
  %1154 = vrot.lane.b32.xlu0 %v292, 104
  %v1155 = vpop.permute.xlu0 %1154
  %1156 = vrot.lane.b32.xlu0 %v287, 72
  %v1157 = vpop.permute.xlu0 %1156
  %1158 = vrot.lane.b32.xlu0 %v292, 72
  %v1159 = vpop.permute.xlu0 %1158
  %v1160 = vsel %vm301, %v1153, 0
  %v1162 = vsel %vm301, %v1155, 0
  %v1164 = vsel %vm301, %v1157, 0
  %v1166 = vsel %vm301, %v1159, 0
  %1168 = vmatprep.subr.mxu0 0.0
  %1169 = vmatpush1.xpose.msra.mxu0 %v1164
  %1170 = vmatprep.subr.mxu0 0.0
  %1171 = vmatpush1.xpose.msra.mxu0 %v1166
  %1172 = vmatprep.subr.mxu0 0.0
  %1173 = vmatpush1.xpose.msra.mxu0 0.0
  %1174 = vmatprep.subr.mxu0 0.0
  %1175 = vmatpush1.xpose.msra.mxu0 0.0
  %1176 = vmatprep.subr.mxu0 0.0
  %1177 = vmatpush1.xpose.msra.mxu0 0.0
  %1178 = vmatprep.subr.mxu0 0.0
  %1179 = vmatpush1.xpose.msra.mxu0 0.0
  %1180 = vmatprep.subr.mxu0 0.0
  %1181 = vmatpush1.xpose.msra.mxu0 0.0
  %1182 = vmatprep.subr.mxu0 0.0
  %1183 = vmatpush1.xpose.msra.mxu0 0.0
  %1184 = vmatprep.subr.mxu0 0.0
  %1185 = vmatpush1.xpose.msra.mxu0 0.0
  %1186 = vmatprep.subr.mxu0 0.0
  %1187 = vmatpush1.xpose.msra.mxu0 0.0
  %1188 = vmatprep.subr.mxu0 0.0
  %1189 = vmatpush1.xpose.msra.mxu0 0.0
  %1190 = vmatprep.subr.mxu0 0.0
  %1191 = vmatpush1.xpose.msra.mxu0 0.0
  %1192 = vmatprep.subr.mxu0 0.0
  %1193 = vmatpush1.xpose.msra.mxu0 0.0
  %1194 = vmatprep.subr.mxu0 0.0
  %1195 = vmatpush1.xpose.msra.mxu0 0.0
  %1196 = vmatprep.subr.mxu0 0.0
  %1197 = vmatpush1.xpose.msra.mxu0 0.0
  %1198 = vmatprep.subr.mxu0 0.0
  %1199 = vmatpush1.xpose.msra.mxu0 0.0
  %1200 = vmatprep.subr.mxu0 0.0
  %1201 = vmatpush1.xpose.msra.mxu0 0.0
  %1202 = vmatprep.subr.mxu0 0.0
  %1203 = vmatpush1.xpose.msra.mxu0 0.0
  %1204 = vmatprep.subr.mxu0 0.0
  %1205 = vmatpush1.xpose.msra.mxu0 0.0
  %1206 = vmatprep.subr.mxu0 0.0
  %1207 = vmatpush1.xpose.msra.mxu0 0.0
  %1208 = vmatprep.subr.mxu0 0.0
  %1209 = vmatpush1.xpose.msra.mxu0 0.0
  %1210 = vmatprep.subr.mxu0 0.0
  %1211 = vmatpush1.xpose.msra.mxu0 0.0
  %1212 = vmatprep.subr.mxu0 0.0
  %1213 = vmatpush1.xpose.msra.mxu0 0.0
  %1214 = vmatprep.subr.mxu0 0.0
  %1215 = vmatpush1.xpose.msra.mxu0 0.0
  %1216 = vmatprep.subr.mxu0 0.0
  %1217 = vmatpush1.xpose.msra.mxu0 0.0
  %1218 = vmatprep.subr.mxu0 0.0
  %1219 = vmatpush1.xpose.msra.mxu0 0.0
  %1220 = vmatprep.subr.mxu0 0.0
  %1221 = vmatpush1.xpose.msra.mxu0 0.0
  %1222 = vmatprep.subr.mxu0 0.0
  %1223 = vmatpush1.xpose.msra.mxu0 0.0
  %1224 = vmatprep.subr.mxu0 0.0
  %1225 = vmatpush1.xpose.msra.mxu0 0.0
  %1226 = vmatprep.subr.mxu0 0.0
  %1227 = vmatpush1.xpose.msra.mxu0 0.0
  %1228 = vmatprep.subr.mxu0 0.0
  %1229 = vmatpush1.xpose.msra.mxu0 0.0
  %1230 = vmatprep.subr.mxu0 0.0
  %1231 = vmatpush1.xpose.msra.mxu0 0.0
  %1232 = vmatprep.mubr.f32.mxu0 0.0
  %1233 = vmatmul.mubr.f32.gmra.mrb[0].mxu0 %v1160
  %v1234 = vpop.f32.mrb[0].mxu0
  %v1235 = vadd.f32 0.0, %v1234
  %v1236 = vpop.f32.mrb[0].mxu0
  %1237 = vmatprep.mubr.f32.mxu0 0.0
  %1238 = vmatmul.mubr.f32.gmra.mrb[0].mxu0 %v1162
  %v1239 = vpop.f32.mrb[0].mxu0
  %v1240 = vadd.f32 0.0, %v1239
  %v1241 = vpop.f32.mrb[0].mxu0
  %1242 = vdwg.mxu0
  %v1243 = vmul.f32 %v1235, 0.35355338
  %v1244 = vmul.f32 %v1240, 0.35355338
  %v1245 = vadd.f32 %v1243, %v177
  %v1246 = vadd.f32 %v1244, %v178
  %v1247 = vsel %vm389, %v1245, -inf
  %1248 = vmax.xlane.f32.xlu0 %v1247
  %v1249 = vpop.xlane.xlu0 %1248
  %v1250 = vsel %vm389, %v1246, -inf
  %1251 = vmax.xlane.f32.xlu0 %v1250
  %v1252 = vpop.xlane.xlu0 %1251
  %v1253 = vsub.f32 %v1245, %v1249
  %v1254 = vsub.f32 %v1246, %v1252
  %v1255 = vmul.f32 %v1253, 1.442695
  %v1256 = vpow.pop %v1255
  %v1257 = vmul.f32 %v1254, 1.442695
  %v1258 = vpow.pop %v1257
  %v1259 = vsel %vm389, %v1256, 0.0
  %1260 = vadd.xlane.f32.xlu0 %v1259
  %v1261 = vpop.xlane.xlu0 %1260
  %v1262 = vsel %vm389, %v1258, 0.0
  %1263 = vadd.xlane.f32.xlu0 %v1262
  %v1264 = vpop.xlane.xlu0 %1263
  %v1265 = vrcp.pop %v1261
  %v1266 = vrcp.pop %v1264
  %v1267 = vmul.f32 %v1256, %v1265
  %v1268 = vmul.f32 %v1258, %v1266
  %1269 = vrot.lane.b32.xlu0 %v287, 40
  %v1270 = vpop.permute.xlu0 %1269
  %1271 = vrot.lane.b32.xlu0 %v292, 40
  %v1272 = vpop.permute.xlu0 %1271
  %v1276 = vsel %vm389, %v1267, 0
  %v1279 = vsel %vm389, %v1268, 0
  %1281 = vmatprep.subr.mxu0 0.0
  %1282 = vmatpush1.msra.mxu0 %v1270
  %1283 = vmatprep.subr.mxu0 0.0
  %1284 = vmatpush1.msra.mxu0 %v1272
  %1285 = vmatprep.subr.mxu0 0.0
  %1286 = vmatpush1.msra.mxu0 0.0
  %1287 = vmatprep.subr.mxu0 0.0
  %1288 = vmatpush1.msra.mxu0 0.0
  %1289 = vmatprep.subr.mxu0 0.0
  %1290 = vmatpush1.msra.mxu0 0.0
  %1291 = vmatprep.subr.mxu0 0.0
  %1292 = vmatpush1.msra.mxu0 0.0
  %1293 = vmatprep.subr.mxu0 0.0
  %1294 = vmatpush1.msra.mxu0 0.0
  %1295 = vmatprep.subr.mxu0 0.0
  %1296 = vmatpush1.msra.mxu0 0.0
  %1297 = vmatprep.subr.mxu0 0.0
  %1298 = vmatpush1.msra.mxu0 0.0
  %1299 = vmatprep.subr.mxu0 0.0
  %1300 = vmatpush1.msra.mxu0 0.0
  %1301 = vmatprep.subr.mxu0 0.0
  %1302 = vmatpush1.msra.mxu0 0.0
  %1303 = vmatprep.subr.mxu0 0.0
  %1304 = vmatpush1.msra.mxu0 0.0
  %1305 = vmatprep.subr.mxu0 0.0
  %1306 = vmatpush1.msra.mxu0 0.0
  %1307 = vmatprep.subr.mxu0 0.0
  %1308 = vmatpush1.msra.mxu0 0.0
  %1309 = vmatprep.subr.mxu0 0.0
  %1310 = vmatpush1.msra.mxu0 0.0
  %1311 = vmatprep.subr.mxu0 0.0
  %1312 = vmatpush1.msra.mxu0 0.0
  %1313 = vmatprep.subr.mxu0 0.0
  %1314 = vmatpush1.msra.mxu0 0.0
  %1315 = vmatprep.subr.mxu0 0.0
  %1316 = vmatpush1.msra.mxu0 0.0
  %1317 = vmatprep.subr.mxu0 0.0
  %1318 = vmatpush1.msra.mxu0 0.0
  %1319 = vmatprep.subr.mxu0 0.0
  %1320 = vmatpush1.msra.mxu0 0.0
  %1321 = vmatprep.subr.mxu0 0.0
  %1322 = vmatpush1.msra.mxu0 0.0
  %1323 = vmatprep.subr.mxu0 0.0
  %1324 = vmatpush1.msra.mxu0 0.0
  %1325 = vmatprep.subr.mxu0 0.0
  %1326 = vmatpush1.msra.mxu0 0.0
  %1327 = vmatprep.subr.mxu0 0.0
  %1328 = vmatpush1.msra.mxu0 0.0
  %1329 = vmatprep.subr.mxu0 0.0
  %1330 = vmatpush1.msra.mxu0 0.0
  %1331 = vmatprep.subr.mxu0 0.0
  %1332 = vmatpush1.msra.mxu0 0.0
  %1333 = vmatprep.subr.mxu0 0.0
  %1334 = vmatpush1.msra.mxu0 0.0
  %1335 = vmatprep.subr.mxu0 0.0
  %1336 = vmatpush1.msra.mxu0 0.0
  %1337 = vmatprep.subr.mxu0 0.0
  %1338 = vmatpush1.msra.mxu0 0.0
  %1339 = vmatprep.subr.mxu0 0.0
  %1340 = vmatpush1.msra.mxu0 0.0
  %1341 = vmatprep.subr.mxu0 0.0
  %1342 = vmatpush1.msra.mxu0 0.0
  %1343 = vmatprep.subr.mxu0 0.0
  %1344 = vmatpush1.msra.mxu0 0.0
  %1345 = vmatprep.mubr.f32.mxu0 0.0
  %1346 = vmatmul.mubr.f32.gmra.mrb[0].mxu0 %v1276
  %v1347 = vpop.f32.mrb[0].mxu0
  %v1348 = vadd.f32 0.0, %v1347
  %v1349 = vpop.f32.mrb[0].mxu0
  %1350 = vmatprep.mubr.f32.mxu0 0.0
  %1351 = vmatmul.mubr.f32.gmra.mrb[0].mxu0 %v1279
  %v1352 = vpop.f32.mrb[0].mxu0
  %v1353 = vadd.f32 0.0, %v1352
  %v1354 = vpop.f32.mrb[0].mxu0
  %1355 = vdwg.mxu0
  %v1357 = vsel %vm301, %v1348, 0
  %v1360 = vsel %vm301, %v1353, 0
  %1362 = vmatprep.subr.mxu0 0.0
  %1363 = vmatpush1.msra.mxu0 %v187
  %1364 = vmatprep.subr.mxu0 0.0
  %1365 = vmatpush1.msra.mxu0 0.0
  %1366 = vmatprep.subr.mxu0 0.0
  %1367 = vmatpush1.msra.mxu0 0.0
  %1368 = vmatprep.subr.mxu0 0.0
  %1369 = vmatpush1.msra.mxu0 0.0
  %1370 = vmatprep.subr.mxu0 0.0
  %1371 = vmatpush1.msra.mxu0 0.0
  %1372 = vmatprep.subr.mxu0 0.0
  %1373 = vmatpush1.msra.mxu0 0.0
  %1374 = vmatprep.subr.mxu0 0.0
  %1375 = vmatpush1.msra.mxu0 0.0
  %1376 = vmatprep.subr.mxu0 0.0
  %1377 = vmatpush1.msra.mxu0 0.0
  %1378 = vmatprep.subr.mxu0 0.0
  %1379 = vmatpush1.msra.mxu0 0.0
  %1380 = vmatprep.subr.mxu0 0.0
  %1381 = vmatpush1.msra.mxu0 0.0
  %1382 = vmatprep.subr.mxu0 0.0
  %1383 = vmatpush1.msra.mxu0 0.0
  %1384 = vmatprep.subr.mxu0 0.0
  %1385 = vmatpush1.msra.mxu0 0.0
  %1386 = vmatprep.subr.mxu0 0.0
  %1387 = vmatpush1.msra.mxu0 0.0
  %1388 = vmatprep.subr.mxu0 0.0
  %1389 = vmatpush1.msra.mxu0 0.0
  %1390 = vmatprep.subr.mxu0 0.0
  %1391 = vmatpush1.msra.mxu0 0.0
  %1392 = vmatprep.subr.mxu0 0.0
  %1393 = vmatpush1.msra.mxu0 0.0
  %1394 = vmatprep.subr.mxu0 0.0
  %1395 = vmatpush1.msra.mxu0 0.0
  %1396 = vmatprep.subr.mxu0 0.0
  %1397 = vmatpush1.msra.mxu0 0.0
  %1398 = vmatprep.subr.mxu0 0.0
  %1399 = vmatpush1.msra.mxu0 0.0
  %1400 = vmatprep.subr.mxu0 0.0
  %1401 = vmatpush1.msra.mxu0 0.0
  %1402 = vmatprep.subr.mxu0 0.0
  %1403 = vmatpush1.msra.mxu0 0.0
  %1404 = vmatprep.subr.mxu0 0.0
  %1405 = vmatpush1.msra.mxu0 0.0
  %1406 = vmatprep.subr.mxu0 0.0
  %1407 = vmatpush1.msra.mxu0 0.0
  %1408 = vmatprep.subr.mxu0 0.0
  %1409 = vmatpush1.msra.mxu0 0.0
  %1410 = vmatprep.subr.mxu0 0.0
  %1411 = vmatpush1.msra.mxu0 0.0
  %1412 = vmatprep.subr.mxu0 0.0
  %1413 = vmatpush1.msra.mxu0 0.0
  %1414 = vmatprep.subr.mxu0 0.0
  %1415 = vmatpush1.msra.mxu0 0.0
  %1416 = vmatprep.subr.mxu0 0.0
  %1417 = vmatpush1.msra.mxu0 0.0
  %1418 = vmatprep.subr.mxu0 0.0
  %1419 = vmatpush1.msra.mxu0 0.0
  %1420 = vmatprep.subr.mxu0 0.0
  %1421 = vmatpush1.msra.mxu0 0.0
  %1422 = vmatprep.subr.mxu0 0.0
  %1423 = vmatpush1.msra.mxu0 0.0
  %1424 = vmatprep.subr.mxu0 0.0
  %1425 = vmatpush1.msra.mxu0 0.0
  %1426 = vmatprep.mubr.f32.mxu0 0.0
  %1427 = vmatmul.mubr.f32.gmra.mrb[0].mxu0 %v1357
  %v1428 = vpop.f32.mrb[0].mxu0
  %v1429 = vadd.f32 0.0, %v1428
  %v1430 = vpop.f32.mrb[0].mxu0
  %1431 = vmatprep.mubr.f32.mxu0 0.0
  %1432 = vmatmul.mubr.f32.gmra.mrb[0].mxu0 %v1360
  %v1433 = vpop.f32.mrb[0].mxu0
  %v1434 = vadd.f32 0.0, %v1433
  %v1435 = vpop.f32.mrb[0].mxu0
  %1436 = vdwg.mxu0
  %v1437 = vadd.f32 %v1150, %v1429
  %v1438 = vadd.f32 %v1151, %v1434
  %v1440 = vlaneseq
  %v1441 = vshrl.u32 %v1440, 7
  %v1442 = vsub.s32 0, %v1441
  %v1443 = vrot.slane %v188, %v1442
  %v1445 = vadd.f32 %v1437, %v1443
  %v1446 = vadd.f32 %v1438, %v1443
  %v1447 = vadd.f32 %v175, %v1445
  %v1448 = vadd.f32 %v176, %v1446
  %v1449 = vsel %vm213, %v1447, 0.0
  %1450 = vadd.xlane.f32.xlu0 %v1449
  %v1451 = vpop.xlane.xlu0 %1450
  %v1452 = vsel %vm213, %v1448, 0.0
  %1453 = vadd.xlane.f32.xlu0 %v1452
  %v1454 = vpop.xlane.xlu0 %1453
  %v1455 = vmul.f32 %v1451, 0.03125
  %v1456 = vmul.f32 %v1454, 0.03125
  %v1457 = vsub.f32 %v1447, %v1455
  %v1458 = vsub.f32 %v1448, %v1456
  %v1459 = vmul.f32 %v1457, %v1457
  %v1460 = vmul.f32 %v1458, %v1458
  %v1461 = vsel %vm213, %v1459, 0.0
  %1462 = vadd.xlane.f32.xlu0 %v1461
  %v1463 = vpop.xlane.xlu0 %1462
  %v1464 = vsel %vm213, %v1460, 0.0
  %1465 = vadd.xlane.f32.xlu0 %v1464
  %v1466 = vpop.xlane.xlu0 %1465
  %v1467 = vmul.f32 %v1463, 0.03125
  %v1468 = vmul.f32 %v1466, 0.03125
  %v1469 = vadd.f32 %v1467, 1e-05
  %v1470 = vadd.f32 %v1468, 1e-05
  %v1471 = vrsqrt.pop %v1469
  %v1472 = vrsqrt.pop %v1470
  %v1473 = vmul.f32 %v1457, %v1471
  %v1474 = vmul.f32 %v1458, %v1472
  %v1476 = vlaneseq
  %v1477 = vshrl.u32 %v1476, 7
  %v1478 = vsub.s32 0, %v1477
  %v1479 = vrot.slane %v189, %v1478
  %v1481 = vmul.f32 %v1473, %v1479
  %v1482 = vmul.f32 %v1474, %v1479
  %v1484 = vlaneseq
  %v1485 = vshrl.u32 %v1484, 7
  %v1486 = vsub.s32 0, %v1485
  %v1487 = vrot.slane %v190, %v1486
  %v1489 = vadd.f32 %v1481, %v1487
  %v1490 = vadd.f32 %v1482, %v1487
  %v1492 = vlaneseq
  %v1493 = vshrl.u32 %v1492, 7
  %v1494 = vsub.s32 0, %v1493
  %v1495 = vrot.slane %v195, %v1494
  %v1498 = vsel %vm213, %v1489, 0
  %v1501 = vsel %vm213, %v1490, 0
  %1503 = vmatprep.subr.mxu0 0.0
  %1504 = vmatpush1.msra.mxu0 %v191
  %1505 = vmatprep.subr.mxu0 0.0
  %1506 = vmatpush1.msra.mxu0 %v192
  %1507 = vmatprep.subr.mxu0 0.0
  %1508 = vmatpush1.msra.mxu0 %v193
  %1509 = vmatprep.subr.mxu0 0.0
  %1510 = vmatpush1.msra.mxu0 %v194
  %1511 = vmatprep.subr.mxu0 0.0
  %1512 = vmatpush1.msra.mxu0 0.0
  %1513 = vmatprep.subr.mxu0 0.0
  %1514 = vmatpush1.msra.mxu0 0.0
  %1515 = vmatprep.subr.mxu0 0.0
  %1516 = vmatpush1.msra.mxu0 0.0
  %1517 = vmatprep.subr.mxu0 0.0
  %1518 = vmatpush1.msra.mxu0 0.0
  %1519 = vmatprep.subr.mxu0 0.0
  %1520 = vmatpush1.msra.mxu0 0.0
  %1521 = vmatprep.subr.mxu0 0.0
  %1522 = vmatpush1.msra.mxu0 0.0
  %1523 = vmatprep.subr.mxu0 0.0
  %1524 = vmatpush1.msra.mxu0 0.0
  %1525 = vmatprep.subr.mxu0 0.0
  %1526 = vmatpush1.msra.mxu0 0.0
  %1527 = vmatprep.subr.mxu0 0.0
  %1528 = vmatpush1.msra.mxu0 0.0
  %1529 = vmatprep.subr.mxu0 0.0
  %1530 = vmatpush1.msra.mxu0 0.0
  %1531 = vmatprep.subr.mxu0 0.0
  %1532 = vmatpush1.msra.mxu0 0.0
  %1533 = vmatprep.subr.mxu0 0.0
  %1534 = vmatpush1.msra.mxu0 0.0
  %1535 = vmatprep.subr.mxu0 0.0
  %1536 = vmatpush1.msra.mxu0 0.0
  %1537 = vmatprep.subr.mxu0 0.0
  %1538 = vmatpush1.msra.mxu0 0.0
  %1539 = vmatprep.subr.mxu0 0.0
  %1540 = vmatpush1.msra.mxu0 0.0
  %1541 = vmatprep.subr.mxu0 0.0
  %1542 = vmatpush1.msra.mxu0 0.0
  %1543 = vmatprep.subr.mxu0 0.0
  %1544 = vmatpush1.msra.mxu0 0.0
  %1545 = vmatprep.subr.mxu0 0.0
  %1546 = vmatpush1.msra.mxu0 0.0
  %1547 = vmatprep.subr.mxu0 0.0
  %1548 = vmatpush1.msra.mxu0 0.0
  %1549 = vmatprep.subr.mxu0 0.0
  %1550 = vmatpush1.msra.mxu0 0.0
  %1551 = vmatprep.subr.mxu0 0.0
  %1552 = vmatpush1.msra.mxu0 0.0
  %1553 = vmatprep.subr.mxu0 0.0
  %1554 = vmatpush1.msra.mxu0 0.0
  %1555 = vmatprep.subr.mxu0 0.0
  %1556 = vmatpush1.msra.mxu0 0.0
  %1557 = vmatprep.subr.mxu0 0.0
  %1558 = vmatpush1.msra.mxu0 0.0
  %1559 = vmatprep.subr.mxu0 0.0
  %1560 = vmatpush1.msra.mxu0 0.0
  %1561 = vmatprep.subr.mxu0 0.0
  %1562 = vmatpush1.msra.mxu0 0.0
  %1563 = vmatprep.subr.mxu0 0.0
  %1564 = vmatpush1.msra.mxu0 0.0
  %1565 = vmatprep.subr.mxu0 0.0
  %1566 = vmatpush1.msra.mxu0 0.0
  %1567 = vmatprep.mubr.f32.mxu0 0.0
  %1568 = vmatmul.mubr.f32.gmra.mrb[0].mxu0 %v1498
  %v1569 = vpop.f32.mrb[0].mxu0
  %v1570 = vadd.f32 %v1495, %v1569
  %v1571 = vpop.f32.mrb[0].mxu0
  %1572 = vmatprep.mubr.f32.mxu0 0.0
  %1573 = vmatmul.mubr.f32.gmra.mrb[0].mxu0 %v1501
  %v1574 = vpop.f32.mrb[0].mxu0
  %v1575 = vadd.f32 %v1495, %v1574
  %v1576 = vpop.f32.mrb[0].mxu0
  %1577 = vdwg.mxu0
  %v1578 = vmax.f32 %v1570, 0.0
  %v1579 = vmax.f32 %v1575, 0.0
  %v1581 = vlaneseq
  %v1582 = vshrl.u32 %v1581, 7
  %v1583 = vsub.s32 0, %v1582
  %v1584 = vrot.slane %v204, %v1583
  %vm1586 = vcmask 523264
  %v1588 = vsel %vm1586, %v1578, 0
  %v1591 = vsel %vm1586, %v1579, 0
  %1593 = vmatprep.subr.mxu0 0.0
  %1594 = vmatpush1.msra.mxu0 %v196
  %1595 = vmatprep.subr.mxu0 0.0
  %1596 = vmatpush1.msra.mxu0 %v197
  %1597 = vmatprep.subr.mxu0 0.0
  %1598 = vmatpush1.msra.mxu0 %v198
  %1599 = vmatprep.subr.mxu0 0.0
  %1600 = vmatpush1.msra.mxu0 %v199
  %1601 = vmatprep.subr.mxu0 0.0
  %1602 = vmatpush1.msra.mxu0 %v200
  %1603 = vmatprep.subr.mxu0 0.0
  %1604 = vmatpush1.msra.mxu0 %v201
  %1605 = vmatprep.subr.mxu0 0.0
  %1606 = vmatpush1.msra.mxu0 %v202
  %1607 = vmatprep.subr.mxu0 0.0
  %1608 = vmatpush1.msra.mxu0 %v203
  %1609 = vmatprep.subr.mxu0 0.0
  %1610 = vmatpush1.msra.mxu0 0.0
  %1611 = vmatprep.subr.mxu0 0.0
  %1612 = vmatpush1.msra.mxu0 0.0
  %1613 = vmatprep.subr.mxu0 0.0
  %1614 = vmatpush1.msra.mxu0 0.0
  %1615 = vmatprep.subr.mxu0 0.0
  %1616 = vmatpush1.msra.mxu0 0.0
  %1617 = vmatprep.subr.mxu0 0.0
  %1618 = vmatpush1.msra.mxu0 0.0
  %1619 = vmatprep.subr.mxu0 0.0
  %1620 = vmatpush1.msra.mxu0 0.0
  %1621 = vmatprep.subr.mxu0 0.0
  %1622 = vmatpush1.msra.mxu0 0.0
  %1623 = vmatprep.subr.mxu0 0.0
  %1624 = vmatpush1.msra.mxu0 0.0
  %1625 = vmatprep.subr.mxu0 0.0
  %1626 = vmatpush1.msra.mxu0 0.0
  %1627 = vmatprep.subr.mxu0 0.0
  %1628 = vmatpush1.msra.mxu0 0.0
  %1629 = vmatprep.subr.mxu0 0.0
  %1630 = vmatpush1.msra.mxu0 0.0
  %1631 = vmatprep.subr.mxu0 0.0
  %1632 = vmatpush1.msra.mxu0 0.0
  %1633 = vmatprep.subr.mxu0 0.0
  %1634 = vmatpush1.msra.mxu0 0.0
  %1635 = vmatprep.subr.mxu0 0.0
  %1636 = vmatpush1.msra.mxu0 0.0
  %1637 = vmatprep.subr.mxu0 0.0
  %1638 = vmatpush1.msra.mxu0 0.0
  %1639 = vmatprep.subr.mxu0 0.0
  %1640 = vmatpush1.msra.mxu0 0.0
  %1641 = vmatprep.subr.mxu0 0.0
  %1642 = vmatpush1.msra.mxu0 0.0
  %1643 = vmatprep.subr.mxu0 0.0
  %1644 = vmatpush1.msra.mxu0 0.0
  %1645 = vmatprep.subr.mxu0 0.0
  %1646 = vmatpush1.msra.mxu0 0.0
  %1647 = vmatprep.subr.mxu0 0.0
  %1648 = vmatpush1.msra.mxu0 0.0
  %1649 = vmatprep.subr.mxu0 0.0
  %1650 = vmatpush1.msra.mxu0 0.0
  %1651 = vmatprep.subr.mxu0 0.0
  %1652 = vmatpush1.msra.mxu0 0.0
  %1653 = vmatprep.subr.mxu0 0.0
  %1654 = vmatpush1.msra.mxu0 0.0
  %1655 = vmatprep.subr.mxu0 0.0
  %1656 = vmatpush1.msra.mxu0 0.0
  %1657 = vmatprep.mubr.f32.mxu0 0.0
  %1658 = vmatmul.mubr.f32.gmra.mrb[0].mxu0 %v1588
  %v1659 = vpop.f32.mrb[0].mxu0
  %v1660 = vadd.f32 %v1584, %v1659
  %v1661 = vpop.f32.mrb[0].mxu0
  %1662 = vmatprep.mubr.f32.mxu0 0.0
  %1663 = vmatmul.mubr.f32.gmra.mrb[0].mxu0 %v1591
  %v1664 = vpop.f32.mrb[0].mxu0
  %v1665 = vadd.f32 %v1584, %v1664
  %v1666 = vpop.f32.mrb[0].mxu0
  %1667 = vdwg.mxu0
  %v1668 = vadd.f32 %v1489, %v1660
  %v1669 = vadd.f32 %v1490, %v1665
  %v1670 = vsel %vm213, %v1668, 0.0
  %1671 = vadd.xlane.f32.xlu0 %v1670
  %v1672 = vpop.xlane.xlu0 %1671
  %v1673 = vsel %vm213, %v1669, 0.0
  %1674 = vadd.xlane.f32.xlu0 %v1673
  %v1675 = vpop.xlane.xlu0 %1674
  %v1676 = vmul.f32 %v1672, 0.03125
  %v1677 = vmul.f32 %v1675, 0.03125
  %v1678 = vsub.f32 %v1668, %v1676
  %v1679 = vsub.f32 %v1669, %v1677
  %v1680 = vmul.f32 %v1678, %v1678
  %v1681 = vmul.f32 %v1679, %v1679
  %v1682 = vsel %vm213, %v1680, 0.0
  %1683 = vadd.xlane.f32.xlu0 %v1682
  %v1684 = vpop.xlane.xlu0 %1683
  %v1685 = vsel %vm213, %v1681, 0.0
  %1686 = vadd.xlane.f32.xlu0 %v1685
  %v1687 = vpop.xlane.xlu0 %1686
  %v1688 = vmul.f32 %v1684, 0.03125
  %v1689 = vmul.f32 %v1687, 0.03125
  %v1690 = vadd.f32 %v1688, 1e-05
  %v1691 = vadd.f32 %v1689, 1e-05
  %v1692 = vrsqrt.pop %v1690
  %v1693 = vrsqrt.pop %v1691
  %v1694 = vmul.f32 %v1678, %v1692
  %v1695 = vmul.f32 %v1679, %v1693
  %v1697 = vlaneseq
  %v1698 = vshrl.u32 %v1697, 7
  %v1699 = vsub.s32 0, %v1698
  %v1700 = vrot.slane %v205, %v1699
  %v1702 = vmul.f32 %v1694, %v1700
  %v1703 = vmul.f32 %v1695, %v1700
  %v1705 = vlaneseq
  %v1706 = vshrl.u32 %v1705, 7
  %v1707 = vsub.s32 0, %v1706
  %v1708 = vrot.slane %v206, %v1707
  %v1710 = vadd.f32 %v1702, %v1708
  %v1711 = vadd.f32 %v1703, %v1708
  %s1712 = scalar_lea.vmem %s6, 32
  %v1713 = vld [vmem:[%s1712] sm:$0xff]
  %v1714 = vld [vmem:[%s1712 + $0x8] sm:$0xff]
  %v1715 = vld [vmem:[%s1712 + $0x10] sm:$0xff]
  %v1716 = vld [vmem:[%s1712 + $0x18] sm:$0xff]
  %s1717 = scalar_lea.vmem %s7, 1
  %v1718 = vld [vmem:[%s1717] sm:$0x1]
  %s1719 = scalar_lea.vmem %s8, 32
  %v1720 = vld [vmem:[%s1719] sm:$0xff]
  %v1721 = vld [vmem:[%s1719 + $0x8] sm:$0xff]
  %v1722 = vld [vmem:[%s1719 + $0x10] sm:$0xff]
  %v1723 = vld [vmem:[%s1719 + $0x18] sm:$0xff]
  %s1724 = scalar_lea.vmem %s9, 1
  %v1725 = vld [vmem:[%s1724] sm:$0x1]
  %s1726 = scalar_lea.vmem %s10, 1
  %v1727 = vld [vmem:[%s1726] sm:$0x1]
  %s1728 = scalar_lea.vmem %s11, 1
  %v1729 = vld [vmem:[%s1728] sm:$0x1]
  %s1730 = scalar_lea.vmem %s12, 32
  %v1731 = vld [vmem:[%s1730] sm:$0xff]
  %v1732 = vld [vmem:[%s1730 + $0x8] sm:$0xff]
  %v1733 = vld [vmem:[%s1730 + $0x10] sm:$0xff]
  %v1734 = vld [vmem:[%s1730 + $0x18] sm:$0xff]
  %s1735 = scalar_lea.vmem %s13, 1
  %v1736 = vld [vmem:[%s1735] sm:$0x1]
  %s1737 = scalar_lea.vmem %s14, 64
  %v1738 = vld [vmem:[%s1737] sm:$0xff]
  %v1739 = vld [vmem:[%s1737 + $0x8] sm:$0xff]
  %v1740 = vld [vmem:[%s1737 + $0x10] sm:$0xff]
  %v1741 = vld [vmem:[%s1737 + $0x18] sm:$0xff]
  %v1742 = vld [vmem:[%s1737 + $0x20] sm:$0xff]
  %v1743 = vld [vmem:[%s1737 + $0x28] sm:$0xff]
  %v1744 = vld [vmem:[%s1737 + $0x30] sm:$0xff]
  %v1745 = vld [vmem:[%s1737 + $0x38] sm:$0xff]
  %s1746 = scalar_lea.vmem %s15, 1
  %v1747 = vld [vmem:[%s1746] sm:$0x1]
  %s1748 = scalar_lea.vmem %s16, 1
  %v1749 = vld [vmem:[%s1748] sm:$0x1]
  %s1750 = scalar_lea.vmem %s17, 1
  %v1751 = vld [vmem:[%s1750] sm:$0x1]
  %v1753 = vlaneseq
  %v1754 = vshrl.u32 %v1753, 7
  %v1755 = vsub.s32 0, %v1754
  %v1756 = vrot.slane %v1718, %v1755
  %v1759 = vsel %vm213, %v1710, 0
  %v1762 = vsel %vm213, %v1711, 0
  %1764 = vmatprep.subr.mxu0 0.0
  %1765 = vmatpush1.msra.mxu0 %v1713
  %1766 = vmatprep.subr.mxu0 0.0
  %1767 = vmatpush1.msra.mxu0 %v1714
  %1768 = vmatprep.subr.mxu0 0.0
  %1769 = vmatpush1.msra.mxu0 %v1715
  %1770 = vmatprep.subr.mxu0 0.0
  %1771 = vmatpush1.msra.mxu0 %v1716
  %1772 = vmatprep.subr.mxu0 0.0
  %1773 = vmatpush1.msra.mxu0 0.0
  %1774 = vmatprep.subr.mxu0 0.0
  %1775 = vmatpush1.msra.mxu0 0.0
  %1776 = vmatprep.subr.mxu0 0.0
  %1777 = vmatpush1.msra.mxu0 0.0
  %1778 = vmatprep.subr.mxu0 0.0
  %1779 = vmatpush1.msra.mxu0 0.0
  %1780 = vmatprep.subr.mxu0 0.0
  %1781 = vmatpush1.msra.mxu0 0.0
  %1782 = vmatprep.subr.mxu0 0.0
  %1783 = vmatpush1.msra.mxu0 0.0
  %1784 = vmatprep.subr.mxu0 0.0
  %1785 = vmatpush1.msra.mxu0 0.0
  %1786 = vmatprep.subr.mxu0 0.0
  %1787 = vmatpush1.msra.mxu0 0.0
  %1788 = vmatprep.subr.mxu0 0.0
  %1789 = vmatpush1.msra.mxu0 0.0
  %1790 = vmatprep.subr.mxu0 0.0
  %1791 = vmatpush1.msra.mxu0 0.0
  %1792 = vmatprep.subr.mxu0 0.0
  %1793 = vmatpush1.msra.mxu0 0.0
  %1794 = vmatprep.subr.mxu0 0.0
  %1795 = vmatpush1.msra.mxu0 0.0
  %1796 = vmatprep.subr.mxu0 0.0
  %1797 = vmatpush1.msra.mxu0 0.0
  %1798 = vmatprep.subr.mxu0 0.0
  %1799 = vmatpush1.msra.mxu0 0.0
  %1800 = vmatprep.subr.mxu0 0.0
  %1801 = vmatpush1.msra.mxu0 0.0
  %1802 = vmatprep.subr.mxu0 0.0
  %1803 = vmatpush1.msra.mxu0 0.0
  %1804 = vmatprep.subr.mxu0 0.0
  %1805 = vmatpush1.msra.mxu0 0.0
  %1806 = vmatprep.subr.mxu0 0.0
  %1807 = vmatpush1.msra.mxu0 0.0
  %1808 = vmatprep.subr.mxu0 0.0
  %1809 = vmatpush1.msra.mxu0 0.0
  %1810 = vmatprep.subr.mxu0 0.0
  %1811 = vmatpush1.msra.mxu0 0.0
  %1812 = vmatprep.subr.mxu0 0.0
  %1813 = vmatpush1.msra.mxu0 0.0
  %1814 = vmatprep.subr.mxu0 0.0
  %1815 = vmatpush1.msra.mxu0 0.0
  %1816 = vmatprep.subr.mxu0 0.0
  %1817 = vmatpush1.msra.mxu0 0.0
  %1818 = vmatprep.subr.mxu0 0.0
  %1819 = vmatpush1.msra.mxu0 0.0
  %1820 = vmatprep.subr.mxu0 0.0
  %1821 = vmatpush1.msra.mxu0 0.0
  %1822 = vmatprep.subr.mxu0 0.0
  %1823 = vmatpush1.msra.mxu0 0.0
  %1824 = vmatprep.subr.mxu0 0.0
  %1825 = vmatpush1.msra.mxu0 0.0
  %1826 = vmatprep.subr.mxu0 0.0
  %1827 = vmatpush1.msra.mxu0 0.0
  %1828 = vmatprep.mubr.f32.mxu0 0.0
  %1829 = vmatmul.mubr.f32.gmra.mrb[0].mxu0 %v1759
  %v1830 = vpop.f32.mrb[0].mxu0
  %v1831 = vadd.f32 %v1756, %v1830
  %v1832 = vpop.f32.mrb[0].mxu0
  %1833 = vmatprep.mubr.f32.mxu0 0.0
  %1834 = vmatmul.mubr.f32.gmra.mrb[0].mxu0 %v1762
  %v1835 = vpop.f32.mrb[0].mxu0
  %v1836 = vadd.f32 %v1756, %v1835
  %v1837 = vpop.f32.mrb[0].mxu0
  %1838 = vdwg.mxu0
  %1841 = vrot.lane.b32.xlu0 %v1831, 96
  %v1842 = vpop.permute.xlu0 %1841
  %1843 = vrot.lane.b32.xlu0 %v1836, 96
  %v1844 = vpop.permute.xlu0 %1843
  %v1845 = vsel %vm301, %v1831, 0
  %v1847 = vsel %vm301, %v1836, 0
  %v1849 = vsel %vm301, %v1842, 0
  %v1851 = vsel %vm301, %v1844, 0
  %1853 = vmatprep.subr.mxu0 0.0
  %1854 = vmatpush1.xpose.msra.mxu0 %v1849
  %1855 = vmatprep.subr.mxu0 0.0
  %1856 = vmatpush1.xpose.msra.mxu0 %v1851
  %1857 = vmatprep.subr.mxu0 0.0
  %1858 = vmatpush1.xpose.msra.mxu0 0.0
  %1859 = vmatprep.subr.mxu0 0.0
  %1860 = vmatpush1.xpose.msra.mxu0 0.0
  %1861 = vmatprep.subr.mxu0 0.0
  %1862 = vmatpush1.xpose.msra.mxu0 0.0
  %1863 = vmatprep.subr.mxu0 0.0
  %1864 = vmatpush1.xpose.msra.mxu0 0.0
  %1865 = vmatprep.subr.mxu0 0.0
  %1866 = vmatpush1.xpose.msra.mxu0 0.0
  %1867 = vmatprep.subr.mxu0 0.0
  %1868 = vmatpush1.xpose.msra.mxu0 0.0
  %1869 = vmatprep.subr.mxu0 0.0
  %1870 = vmatpush1.xpose.msra.mxu0 0.0
  %1871 = vmatprep.subr.mxu0 0.0
  %1872 = vmatpush1.xpose.msra.mxu0 0.0
  %1873 = vmatprep.subr.mxu0 0.0
  %1874 = vmatpush1.xpose.msra.mxu0 0.0
  %1875 = vmatprep.subr.mxu0 0.0
  %1876 = vmatpush1.xpose.msra.mxu0 0.0
  %1877 = vmatprep.subr.mxu0 0.0
  %1878 = vmatpush1.xpose.msra.mxu0 0.0
  %1879 = vmatprep.subr.mxu0 0.0
  %1880 = vmatpush1.xpose.msra.mxu0 0.0
  %1881 = vmatprep.subr.mxu0 0.0
  %1882 = vmatpush1.xpose.msra.mxu0 0.0
  %1883 = vmatprep.subr.mxu0 0.0
  %1884 = vmatpush1.xpose.msra.mxu0 0.0
  %1885 = vmatprep.subr.mxu0 0.0
  %1886 = vmatpush1.xpose.msra.mxu0 0.0
  %1887 = vmatprep.subr.mxu0 0.0
  %1888 = vmatpush1.xpose.msra.mxu0 0.0
  %1889 = vmatprep.subr.mxu0 0.0
  %1890 = vmatpush1.xpose.msra.mxu0 0.0
  %1891 = vmatprep.subr.mxu0 0.0
  %1892 = vmatpush1.xpose.msra.mxu0 0.0
  %1893 = vmatprep.subr.mxu0 0.0
  %1894 = vmatpush1.xpose.msra.mxu0 0.0
  %1895 = vmatprep.subr.mxu0 0.0
  %1896 = vmatpush1.xpose.msra.mxu0 0.0
  %1897 = vmatprep.subr.mxu0 0.0
  %1898 = vmatpush1.xpose.msra.mxu0 0.0
  %1899 = vmatprep.subr.mxu0 0.0
  %1900 = vmatpush1.xpose.msra.mxu0 0.0
  %1901 = vmatprep.subr.mxu0 0.0
  %1902 = vmatpush1.xpose.msra.mxu0 0.0
  %1903 = vmatprep.subr.mxu0 0.0
  %1904 = vmatpush1.xpose.msra.mxu0 0.0
  %1905 = vmatprep.subr.mxu0 0.0
  %1906 = vmatpush1.xpose.msra.mxu0 0.0
  %1907 = vmatprep.subr.mxu0 0.0
  %1908 = vmatpush1.xpose.msra.mxu0 0.0
  %1909 = vmatprep.subr.mxu0 0.0
  %1910 = vmatpush1.xpose.msra.mxu0 0.0
  %1911 = vmatprep.subr.mxu0 0.0
  %1912 = vmatpush1.xpose.msra.mxu0 0.0
  %1913 = vmatprep.subr.mxu0 0.0
  %1914 = vmatpush1.xpose.msra.mxu0 0.0
  %1915 = vmatprep.subr.mxu0 0.0
  %1916 = vmatpush1.xpose.msra.mxu0 0.0
  %1917 = vmatprep.mubr.f32.mxu0 0.0
  %1918 = vmatmul.mubr.f32.gmra.mrb[0].mxu0 %v1845
  %v1919 = vpop.f32.mrb[0].mxu0
  %v1920 = vadd.f32 0.0, %v1919
  %v1921 = vpop.f32.mrb[0].mxu0
  %1922 = vmatprep.mubr.f32.mxu0 0.0
  %1923 = vmatmul.mubr.f32.gmra.mrb[0].mxu0 %v1847
  %v1924 = vpop.f32.mrb[0].mxu0
  %v1925 = vadd.f32 0.0, %v1924
  %v1926 = vpop.f32.mrb[0].mxu0
  %1927 = vdwg.mxu0
  %v1928 = vmul.f32 %v1920, 0.35355338
  %v1929 = vmul.f32 %v1925, 0.35355338
  %v1930 = vadd.f32 %v1928, %v177
  %v1931 = vadd.f32 %v1929, %v178
  %v1932 = vsel %vm389, %v1930, -inf
  %1933 = vmax.xlane.f32.xlu0 %v1932
  %v1934 = vpop.xlane.xlu0 %1933
  %v1935 = vsel %vm389, %v1931, -inf
  %1936 = vmax.xlane.f32.xlu0 %v1935
  %v1937 = vpop.xlane.xlu0 %1936
  %v1938 = vsub.f32 %v1930, %v1934
  %v1939 = vsub.f32 %v1931, %v1937
  %v1940 = vmul.f32 %v1938, 1.442695
  %v1941 = vpow.pop %v1940
  %v1942 = vmul.f32 %v1939, 1.442695
  %v1943 = vpow.pop %v1942
  %v1944 = vsel %vm389, %v1941, 0.0
  %1945 = vadd.xlane.f32.xlu0 %v1944
  %v1946 = vpop.xlane.xlu0 %1945
  %v1947 = vsel %vm389, %v1943, 0.0
  %1948 = vadd.xlane.f32.xlu0 %v1947
  %v1949 = vpop.xlane.xlu0 %1948
  %v1950 = vrcp.pop %v1946
  %v1951 = vrcp.pop %v1949
  %v1952 = vmul.f32 %v1941, %v1950
  %v1953 = vmul.f32 %v1943, %v1951
  %1954 = vrot.lane.b32.xlu0 %v1831, 64
  %v1955 = vpop.permute.xlu0 %1954
  %1956 = vrot.lane.b32.xlu0 %v1836, 64
  %v1957 = vpop.permute.xlu0 %1956
  %v1961 = vsel %vm389, %v1952, 0
  %v1964 = vsel %vm389, %v1953, 0
  %1966 = vmatprep.subr.mxu0 0.0
  %1967 = vmatpush1.msra.mxu0 %v1955
  %1968 = vmatprep.subr.mxu0 0.0
  %1969 = vmatpush1.msra.mxu0 %v1957
  %1970 = vmatprep.subr.mxu0 0.0
  %1971 = vmatpush1.msra.mxu0 0.0
  %1972 = vmatprep.subr.mxu0 0.0
  %1973 = vmatpush1.msra.mxu0 0.0
  %1974 = vmatprep.subr.mxu0 0.0
  %1975 = vmatpush1.msra.mxu0 0.0
  %1976 = vmatprep.subr.mxu0 0.0
  %1977 = vmatpush1.msra.mxu0 0.0
  %1978 = vmatprep.subr.mxu0 0.0
  %1979 = vmatpush1.msra.mxu0 0.0
  %1980 = vmatprep.subr.mxu0 0.0
  %1981 = vmatpush1.msra.mxu0 0.0
  %1982 = vmatprep.subr.mxu0 0.0
  %1983 = vmatpush1.msra.mxu0 0.0
  %1984 = vmatprep.subr.mxu0 0.0
  %1985 = vmatpush1.msra.mxu0 0.0
  %1986 = vmatprep.subr.mxu0 0.0
  %1987 = vmatpush1.msra.mxu0 0.0
  %1988 = vmatprep.subr.mxu0 0.0
  %1989 = vmatpush1.msra.mxu0 0.0
  %1990 = vmatprep.subr.mxu0 0.0
  %1991 = vmatpush1.msra.mxu0 0.0
  %1992 = vmatprep.subr.mxu0 0.0
  %1993 = vmatpush1.msra.mxu0 0.0
  %1994 = vmatprep.subr.mxu0 0.0
  %1995 = vmatpush1.msra.mxu0 0.0
  %1996 = vmatprep.subr.mxu0 0.0
  %1997 = vmatpush1.msra.mxu0 0.0
  %1998 = vmatprep.subr.mxu0 0.0
  %1999 = vmatpush1.msra.mxu0 0.0
  %2000 = vmatprep.subr.mxu0 0.0
  %2001 = vmatpush1.msra.mxu0 0.0
  %2002 = vmatprep.subr.mxu0 0.0
  %2003 = vmatpush1.msra.mxu0 0.0
  %2004 = vmatprep.subr.mxu0 0.0
  %2005 = vmatpush1.msra.mxu0 0.0
  %2006 = vmatprep.subr.mxu0 0.0
  %2007 = vmatpush1.msra.mxu0 0.0
  %2008 = vmatprep.subr.mxu0 0.0
  %2009 = vmatpush1.msra.mxu0 0.0
  %2010 = vmatprep.subr.mxu0 0.0
  %2011 = vmatpush1.msra.mxu0 0.0
  %2012 = vmatprep.subr.mxu0 0.0
  %2013 = vmatpush1.msra.mxu0 0.0
  %2014 = vmatprep.subr.mxu0 0.0
  %2015 = vmatpush1.msra.mxu0 0.0
  %2016 = vmatprep.subr.mxu0 0.0
  %2017 = vmatpush1.msra.mxu0 0.0
  %2018 = vmatprep.subr.mxu0 0.0
  %2019 = vmatpush1.msra.mxu0 0.0
  %2020 = vmatprep.subr.mxu0 0.0
  %2021 = vmatpush1.msra.mxu0 0.0
  %2022 = vmatprep.subr.mxu0 0.0
  %2023 = vmatpush1.msra.mxu0 0.0
  %2024 = vmatprep.subr.mxu0 0.0
  %2025 = vmatpush1.msra.mxu0 0.0
  %2026 = vmatprep.subr.mxu0 0.0
  %2027 = vmatpush1.msra.mxu0 0.0
  %2028 = vmatprep.subr.mxu0 0.0
  %2029 = vmatpush1.msra.mxu0 0.0
  %2030 = vmatprep.mubr.f32.mxu0 0.0
  %2031 = vmatmul.mubr.f32.gmra.mrb[0].mxu0 %v1961
  %v2032 = vpop.f32.mrb[0].mxu0
  %v2033 = vadd.f32 0.0, %v2032
  %v2034 = vpop.f32.mrb[0].mxu0
  %2035 = vmatprep.mubr.f32.mxu0 0.0
  %2036 = vmatmul.mubr.f32.gmra.mrb[0].mxu0 %v1964
  %v2037 = vpop.f32.mrb[0].mxu0
  %v2038 = vadd.f32 0.0, %v2037
  %v2039 = vpop.f32.mrb[0].mxu0
  %2040 = vdwg.mxu0
  %2041 = vrot.lane.b32.xlu0 %v1831, 120
  %v2042 = vpop.permute.xlu0 %2041
  %2043 = vrot.lane.b32.xlu0 %v1836, 120
  %v2044 = vpop.permute.xlu0 %2043
  %2045 = vrot.lane.b32.xlu0 %v1831, 88
  %v2046 = vpop.permute.xlu0 %2045
  %2047 = vrot.lane.b32.xlu0 %v1836, 88
  %v2048 = vpop.permute.xlu0 %2047
  %v2049 = vsel %vm301, %v2042, 0
  %v2051 = vsel %vm301, %v2044, 0
  %v2053 = vsel %vm301, %v2046, 0
  %v2055 = vsel %vm301, %v2048, 0
  %2057 = vmatprep.subr.mxu0 0.0
  %2058 = vmatpush1.xpose.msra.mxu0 %v2053
  %2059 = vmatprep.subr.mxu0 0.0
  %2060 = vmatpush1.xpose.msra.mxu0 %v2055
  %2061 = vmatprep.subr.mxu0 0.0
  %2062 = vmatpush1.xpose.msra.mxu0 0.0
  %2063 = vmatprep.subr.mxu0 0.0
  %2064 = vmatpush1.xpose.msra.mxu0 0.0
  %2065 = vmatprep.subr.mxu0 0.0
  %2066 = vmatpush1.xpose.msra.mxu0 0.0
  %2067 = vmatprep.subr.mxu0 0.0
  %2068 = vmatpush1.xpose.msra.mxu0 0.0
  %2069 = vmatprep.subr.mxu0 0.0
  %2070 = vmatpush1.xpose.msra.mxu0 0.0
  %2071 = vmatprep.subr.mxu0 0.0
  %2072 = vmatpush1.xpose.msra.mxu0 0.0
  %2073 = vmatprep.subr.mxu0 0.0
  %2074 = vmatpush1.xpose.msra.mxu0 0.0
  %2075 = vmatprep.subr.mxu0 0.0
  %2076 = vmatpush1.xpose.msra.mxu0 0.0
  %2077 = vmatprep.subr.mxu0 0.0
  %2078 = vmatpush1.xpose.msra.mxu0 0.0
  %2079 = vmatprep.subr.mxu0 0.0
  %2080 = vmatpush1.xpose.msra.mxu0 0.0
  %2081 = vmatprep.subr.mxu0 0.0
  %2082 = vmatpush1.xpose.msra.mxu0 0.0
  %2083 = vmatprep.subr.mxu0 0.0
  %2084 = vmatpush1.xpose.msra.mxu0 0.0
  %2085 = vmatprep.subr.mxu0 0.0
  %2086 = vmatpush1.xpose.msra.mxu0 0.0
  %2087 = vmatprep.subr.mxu0 0.0
  %2088 = vmatpush1.xpose.msra.mxu0 0.0
  %2089 = vmatprep.subr.mxu0 0.0
  %2090 = vmatpush1.xpose.msra.mxu0 0.0
  %2091 = vmatprep.subr.mxu0 0.0
  %2092 = vmatpush1.xpose.msra.mxu0 0.0
  %2093 = vmatprep.subr.mxu0 0.0
  %2094 = vmatpush1.xpose.msra.mxu0 0.0
  %2095 = vmatprep.subr.mxu0 0.0
  %2096 = vmatpush1.xpose.msra.mxu0 0.0
  %2097 = vmatprep.subr.mxu0 0.0
  %2098 = vmatpush1.xpose.msra.mxu0 0.0
  %2099 = vmatprep.subr.mxu0 0.0
  %2100 = vmatpush1.xpose.msra.mxu0 0.0
  %2101 = vmatprep.subr.mxu0 0.0
  %2102 = vmatpush1.xpose.msra.mxu0 0.0
  %2103 = vmatprep.subr.mxu0 0.0
  %2104 = vmatpush1.xpose.msra.mxu0 0.0
  %2105 = vmatprep.subr.mxu0 0.0
  %2106 = vmatpush1.xpose.msra.mxu0 0.0
  %2107 = vmatprep.subr.mxu0 0.0
  %2108 = vmatpush1.xpose.msra.mxu0 0.0
  %2109 = vmatprep.subr.mxu0 0.0
  %2110 = vmatpush1.xpose.msra.mxu0 0.0
  %2111 = vmatprep.subr.mxu0 0.0
  %2112 = vmatpush1.xpose.msra.mxu0 0.0
  %2113 = vmatprep.subr.mxu0 0.0
  %2114 = vmatpush1.xpose.msra.mxu0 0.0
  %2115 = vmatprep.subr.mxu0 0.0
  %2116 = vmatpush1.xpose.msra.mxu0 0.0
  %2117 = vmatprep.subr.mxu0 0.0
  %2118 = vmatpush1.xpose.msra.mxu0 0.0
  %2119 = vmatprep.subr.mxu0 0.0
  %2120 = vmatpush1.xpose.msra.mxu0 0.0
  %2121 = vmatprep.mubr.f32.mxu0 0.0
  %2122 = vmatmul.mubr.f32.gmra.mrb[0].mxu0 %v2049
  %v2123 = vpop.f32.mrb[0].mxu0
  %v2124 = vadd.f32 0.0, %v2123
  %v2125 = vpop.f32.mrb[0].mxu0
  %2126 = vmatprep.mubr.f32.mxu0 0.0
  %2127 = vmatmul.mubr.f32.gmra.mrb[0].mxu0 %v2051
  %v2128 = vpop.f32.mrb[0].mxu0
  %v2129 = vadd.f32 0.0, %v2128
  %v2130 = vpop.f32.mrb[0].mxu0
  %2131 = vdwg.mxu0
  %v2132 = vmul.f32 %v2124, 0.35355338
  %v2133 = vmul.f32 %v2129, 0.35355338
  %v2134 = vadd.f32 %v2132, %v177
  %v2135 = vadd.f32 %v2133, %v178
  %v2136 = vsel %vm389, %v2134, -inf
  %2137 = vmax.xlane.f32.xlu0 %v2136
  %v2138 = vpop.xlane.xlu0 %2137
  %v2139 = vsel %vm389, %v2135, -inf
  %2140 = vmax.xlane.f32.xlu0 %v2139
  %v2141 = vpop.xlane.xlu0 %2140
  %v2142 = vsub.f32 %v2134, %v2138
  %v2143 = vsub.f32 %v2135, %v2141
  %v2144 = vmul.f32 %v2142, 1.442695
  %v2145 = vpow.pop %v2144
  %v2146 = vmul.f32 %v2143, 1.442695
  %v2147 = vpow.pop %v2146
  %v2148 = vsel %vm389, %v2145, 0.0
  %2149 = vadd.xlane.f32.xlu0 %v2148
  %v2150 = vpop.xlane.xlu0 %2149
  %v2151 = vsel %vm389, %v2147, 0.0
  %2152 = vadd.xlane.f32.xlu0 %v2151
  %v2153 = vpop.xlane.xlu0 %2152
  %v2154 = vrcp.pop %v2150
  %v2155 = vrcp.pop %v2153
  %v2156 = vmul.f32 %v2145, %v2154
  %v2157 = vmul.f32 %v2147, %v2155
  %2158 = vrot.lane.b32.xlu0 %v1831, 56
  %v2159 = vpop.permute.xlu0 %2158
  %2160 = vrot.lane.b32.xlu0 %v1836, 56
  %v2161 = vpop.permute.xlu0 %2160
  %v2165 = vsel %vm389, %v2156, 0
  %v2168 = vsel %vm389, %v2157, 0
  %2170 = vmatprep.subr.mxu0 0.0
  %2171 = vmatpush1.msra.mxu0 %v2159
  %2172 = vmatprep.subr.mxu0 0.0
  %2173 = vmatpush1.msra.mxu0 %v2161
  %2174 = vmatprep.subr.mxu0 0.0
  %2175 = vmatpush1.msra.mxu0 0.0
  %2176 = vmatprep.subr.mxu0 0.0
  %2177 = vmatpush1.msra.mxu0 0.0
  %2178 = vmatprep.subr.mxu0 0.0
  %2179 = vmatpush1.msra.mxu0 0.0
  %2180 = vmatprep.subr.mxu0 0.0
  %2181 = vmatpush1.msra.mxu0 0.0
  %2182 = vmatprep.subr.mxu0 0.0
  %2183 = vmatpush1.msra.mxu0 0.0
  %2184 = vmatprep.subr.mxu0 0.0
  %2185 = vmatpush1.msra.mxu0 0.0
  %2186 = vmatprep.subr.mxu0 0.0
  %2187 = vmatpush1.msra.mxu0 0.0
  %2188 = vmatprep.subr.mxu0 0.0
  %2189 = vmatpush1.msra.mxu0 0.0
  %2190 = vmatprep.subr.mxu0 0.0
  %2191 = vmatpush1.msra.mxu0 0.0
  %2192 = vmatprep.subr.mxu0 0.0
  %2193 = vmatpush1.msra.mxu0 0.0
  %2194 = vmatprep.subr.mxu0 0.0
  %2195 = vmatpush1.msra.mxu0 0.0
  %2196 = vmatprep.subr.mxu0 0.0
  %2197 = vmatpush1.msra.mxu0 0.0
  %2198 = vmatprep.subr.mxu0 0.0
  %2199 = vmatpush1.msra.mxu0 0.0
  %2200 = vmatprep.subr.mxu0 0.0
  %2201 = vmatpush1.msra.mxu0 0.0
  %2202 = vmatprep.subr.mxu0 0.0
  %2203 = vmatpush1.msra.mxu0 0.0
  %2204 = vmatprep.subr.mxu0 0.0
  %2205 = vmatpush1.msra.mxu0 0.0
  %2206 = vmatprep.subr.mxu0 0.0
  %2207 = vmatpush1.msra.mxu0 0.0
  %2208 = vmatprep.subr.mxu0 0.0
  %2209 = vmatpush1.msra.mxu0 0.0
  %2210 = vmatprep.subr.mxu0 0.0
  %2211 = vmatpush1.msra.mxu0 0.0
  %2212 = vmatprep.subr.mxu0 0.0
  %2213 = vmatpush1.msra.mxu0 0.0
  %2214 = vmatprep.subr.mxu0 0.0
  %2215 = vmatpush1.msra.mxu0 0.0
  %2216 = vmatprep.subr.mxu0 0.0
  %2217 = vmatpush1.msra.mxu0 0.0
  %2218 = vmatprep.subr.mxu0 0.0
  %2219 = vmatpush1.msra.mxu0 0.0
  %2220 = vmatprep.subr.mxu0 0.0
  %2221 = vmatpush1.msra.mxu0 0.0
  %2222 = vmatprep.subr.mxu0 0.0
  %2223 = vmatpush1.msra.mxu0 0.0
  %2224 = vmatprep.subr.mxu0 0.0
  %2225 = vmatpush1.msra.mxu0 0.0
  %2226 = vmatprep.subr.mxu0 0.0
  %2227 = vmatpush1.msra.mxu0 0.0
  %2228 = vmatprep.subr.mxu0 0.0
  %2229 = vmatpush1.msra.mxu0 0.0
  %2230 = vmatprep.subr.mxu0 0.0
  %2231 = vmatpush1.msra.mxu0 0.0
  %2232 = vmatprep.subr.mxu0 0.0
  %2233 = vmatpush1.msra.mxu0 0.0
  %2234 = vmatprep.mubr.f32.mxu0 0.0
  %2235 = vmatmul.mubr.f32.gmra.mrb[0].mxu0 %v2165
  %v2236 = vpop.f32.mrb[0].mxu0
  %v2237 = vadd.f32 0.0, %v2236
  %v2238 = vpop.f32.mrb[0].mxu0
  %2239 = vmatprep.mubr.f32.mxu0 0.0
  %2240 = vmatmul.mubr.f32.gmra.mrb[0].mxu0 %v2168
  %v2241 = vpop.f32.mrb[0].mxu0
  %v2242 = vadd.f32 0.0, %v2241
  %v2243 = vpop.f32.mrb[0].mxu0
  %2244 = vdwg.mxu0
  %v2246 = vsel %vm301, %v2237, 0
  %v2249 = vsel %vm301, %v2242, 0
  %2251 = vmatprep.subr.mxu0 0.0
  %2252 = vmatpush1.msra.mxu0 %v1721
  %2253 = vmatprep.subr.mxu0 0.0
  %2254 = vmatpush1.msra.mxu0 0.0
  %2255 = vmatprep.subr.mxu0 0.0
  %2256 = vmatpush1.msra.mxu0 0.0
  %2257 = vmatprep.subr.mxu0 0.0
  %2258 = vmatpush1.msra.mxu0 0.0
  %2259 = vmatprep.subr.mxu0 0.0
  %2260 = vmatpush1.msra.mxu0 0.0
  %2261 = vmatprep.subr.mxu0 0.0
  %2262 = vmatpush1.msra.mxu0 0.0
  %2263 = vmatprep.subr.mxu0 0.0
  %2264 = vmatpush1.msra.mxu0 0.0
  %2265 = vmatprep.subr.mxu0 0.0
  %2266 = vmatpush1.msra.mxu0 0.0
  %2267 = vmatprep.subr.mxu0 0.0
  %2268 = vmatpush1.msra.mxu0 0.0
  %2269 = vmatprep.subr.mxu0 0.0
  %2270 = vmatpush1.msra.mxu0 0.0
  %2271 = vmatprep.subr.mxu0 0.0
  %2272 = vmatpush1.msra.mxu0 0.0
  %2273 = vmatprep.subr.mxu0 0.0
  %2274 = vmatpush1.msra.mxu0 0.0
  %2275 = vmatprep.subr.mxu0 0.0
  %2276 = vmatpush1.msra.mxu0 0.0
  %2277 = vmatprep.subr.mxu0 0.0
  %2278 = vmatpush1.msra.mxu0 0.0
  %2279 = vmatprep.subr.mxu0 0.0
  %2280 = vmatpush1.msra.mxu0 0.0
  %2281 = vmatprep.subr.mxu0 0.0
  %2282 = vmatpush1.msra.mxu0 0.0
  %2283 = vmatprep.subr.mxu0 0.0
  %2284 = vmatpush1.msra.mxu0 0.0
  %2285 = vmatprep.subr.mxu0 0.0
  %2286 = vmatpush1.msra.mxu0 0.0
  %2287 = vmatprep.subr.mxu0 0.0
  %2288 = vmatpush1.msra.mxu0 0.0
  %2289 = vmatprep.subr.mxu0 0.0
  %2290 = vmatpush1.msra.mxu0 0.0
  %2291 = vmatprep.subr.mxu0 0.0
  %2292 = vmatpush1.msra.mxu0 0.0
  %2293 = vmatprep.subr.mxu0 0.0
  %2294 = vmatpush1.msra.mxu0 0.0
  %2295 = vmatprep.subr.mxu0 0.0
  %2296 = vmatpush1.msra.mxu0 0.0
  %2297 = vmatprep.subr.mxu0 0.0
  %2298 = vmatpush1.msra.mxu0 0.0
  %2299 = vmatprep.subr.mxu0 0.0
  %2300 = vmatpush1.msra.mxu0 0.0
  %2301 = vmatprep.subr.mxu0 0.0
  %2302 = vmatpush1.msra.mxu0 0.0
  %2303 = vmatprep.subr.mxu0 0.0
  %2304 = vmatpush1.msra.mxu0 0.0
  %2305 = vmatprep.subr.mxu0 0.0
  %2306 = vmatpush1.msra.mxu0 0.0
  %2307 = vmatprep.subr.mxu0 0.0
  %2308 = vmatpush1.msra.mxu0 0.0
  %2309 = vmatprep.subr.mxu0 0.0
  %2310 = vmatpush1.msra.mxu0 0.0
  %2311 = vmatprep.subr.mxu0 0.0
  %2312 = vmatpush1.msra.mxu0 0.0
  %2313 = vmatprep.subr.mxu0 0.0
  %2314 = vmatpush1.msra.mxu0 0.0
  %2315 = vmatprep.mubr.f32.mxu0 0.0
  %2316 = vmatmul.mubr.f32.gmra.mrb[0].mxu0 %v2246
  %v2317 = vpop.f32.mrb[0].mxu0
  %v2318 = vadd.f32 0.0, %v2317
  %v2319 = vpop.f32.mrb[0].mxu0
  %2320 = vmatprep.mubr.f32.mxu0 0.0
  %2321 = vmatmul.mubr.f32.gmra.mrb[0].mxu0 %v2249
  %v2322 = vpop.f32.mrb[0].mxu0
  %v2323 = vadd.f32 0.0, %v2322
  %v2324 = vpop.f32.mrb[0].mxu0
  %2325 = vdwg.mxu0
  %v2327 = vsel %vm301, %v2033, 0
  %v2330 = vsel %vm301, %v2038, 0
  %2332 = vmatprep.subr.mxu0 0.0
  %2333 = vmatpush1.msra.mxu0 %v1720
  %2334 = vmatprep.subr.mxu0 0.0
  %2335 = vmatpush1.msra.mxu0 0.0
  %2336 = vmatprep.subr.mxu0 0.0
  %2337 = vmatpush1.msra.mxu0 0.0
  %2338 = vmatprep.subr.mxu0 0.0
  %2339 = vmatpush1.msra.mxu0 0.0
  %2340 = vmatprep.subr.mxu0 0.0
  %2341 = vmatpush1.msra.mxu0 0.0
  %2342 = vmatprep.subr.mxu0 0.0
  %2343 = vmatpush1.msra.mxu0 0.0
  %2344 = vmatprep.subr.mxu0 0.0
  %2345 = vmatpush1.msra.mxu0 0.0
  %2346 = vmatprep.subr.mxu0 0.0
  %2347 = vmatpush1.msra.mxu0 0.0
  %2348 = vmatprep.subr.mxu0 0.0
  %2349 = vmatpush1.msra.mxu0 0.0
  %2350 = vmatprep.subr.mxu0 0.0
  %2351 = vmatpush1.msra.mxu0 0.0
  %2352 = vmatprep.subr.mxu0 0.0
  %2353 = vmatpush1.msra.mxu0 0.0
  %2354 = vmatprep.subr.mxu0 0.0
  %2355 = vmatpush1.msra.mxu0 0.0
  %2356 = vmatprep.subr.mxu0 0.0
  %2357 = vmatpush1.msra.mxu0 0.0
  %2358 = vmatprep.subr.mxu0 0.0
  %2359 = vmatpush1.msra.mxu0 0.0
  %2360 = vmatprep.subr.mxu0 0.0
  %2361 = vmatpush1.msra.mxu0 0.0
  %2362 = vmatprep.subr.mxu0 0.0
  %2363 = vmatpush1.msra.mxu0 0.0
  %2364 = vmatprep.subr.mxu0 0.0
  %2365 = vmatpush1.msra.mxu0 0.0
  %2366 = vmatprep.subr.mxu0 0.0
  %2367 = vmatpush1.msra.mxu0 0.0
  %2368 = vmatprep.subr.mxu0 0.0
  %2369 = vmatpush1.msra.mxu0 0.0
  %2370 = vmatprep.subr.mxu0 0.0
  %2371 = vmatpush1.msra.mxu0 0.0
  %2372 = vmatprep.subr.mxu0 0.0
  %2373 = vmatpush1.msra.mxu0 0.0
  %2374 = vmatprep.subr.mxu0 0.0
  %2375 = vmatpush1.msra.mxu0 0.0
  %2376 = vmatprep.subr.mxu0 0.0
  %2377 = vmatpush1.msra.mxu0 0.0
  %2378 = vmatprep.subr.mxu0 0.0
  %2379 = vmatpush1.msra.mxu0 0.0
  %2380 = vmatprep.subr.mxu0 0.0
  %2381 = vmatpush1.msra.mxu0 0.0
  %2382 = vmatprep.subr.mxu0 0.0
  %2383 = vmatpush1.msra.mxu0 0.0
  %2384 = vmatprep.subr.mxu0 0.0
  %2385 = vmatpush1.msra.mxu0 0.0
  %2386 = vmatprep.subr.mxu0 0.0
  %2387 = vmatpush1.msra.mxu0 0.0
  %2388 = vmatprep.subr.mxu0 0.0
  %2389 = vmatpush1.msra.mxu0 0.0
  %2390 = vmatprep.subr.mxu0 0.0
  %2391 = vmatpush1.msra.mxu0 0.0
  %2392 = vmatprep.subr.mxu0 0.0
  %2393 = vmatpush1.msra.mxu0 0.0
  %2394 = vmatprep.subr.mxu0 0.0
  %2395 = vmatpush1.msra.mxu0 0.0
  %2396 = vmatprep.mubr.f32.mxu0 0.0
  %2397 = vmatmul.mubr.f32.gmra.mrb[0].mxu0 %v2327
  %v2398 = vpop.f32.mrb[0].mxu0
  %v2399 = vadd.f32 %v2318, %v2398
  %v2400 = vpop.f32.mrb[0].mxu0
  %2401 = vmatprep.mubr.f32.mxu0 0.0
  %2402 = vmatmul.mubr.f32.gmra.mrb[0].mxu0 %v2330
  %v2403 = vpop.f32.mrb[0].mxu0
  %v2404 = vadd.f32 %v2323, %v2403
  %v2405 = vpop.f32.mrb[0].mxu0
  %2406 = vdwg.mxu0
  %2407 = vrot.lane.b32.xlu0 %v1831, 112
  %v2408 = vpop.permute.xlu0 %2407
  %2409 = vrot.lane.b32.xlu0 %v1836, 112
  %v2410 = vpop.permute.xlu0 %2409
  %2411 = vrot.lane.b32.xlu0 %v1831, 80
  %v2412 = vpop.permute.xlu0 %2411
  %2413 = vrot.lane.b32.xlu0 %v1836, 80
  %v2414 = vpop.permute.xlu0 %2413
  %v2415 = vsel %vm301, %v2408, 0
  %v2417 = vsel %vm301, %v2410, 0
  %v2419 = vsel %vm301, %v2412, 0
  %v2421 = vsel %vm301, %v2414, 0
  %2423 = vmatprep.subr.mxu0 0.0
  %2424 = vmatpush1.xpose.msra.mxu0 %v2419
  %2425 = vmatprep.subr.mxu0 0.0
  %2426 = vmatpush1.xpose.msra.mxu0 %v2421
  %2427 = vmatprep.subr.mxu0 0.0
  %2428 = vmatpush1.xpose.msra.mxu0 0.0
  %2429 = vmatprep.subr.mxu0 0.0
  %2430 = vmatpush1.xpose.msra.mxu0 0.0
  %2431 = vmatprep.subr.mxu0 0.0
  %2432 = vmatpush1.xpose.msra.mxu0 0.0
  %2433 = vmatprep.subr.mxu0 0.0
  %2434 = vmatpush1.xpose.msra.mxu0 0.0
  %2435 = vmatprep.subr.mxu0 0.0
  %2436 = vmatpush1.xpose.msra.mxu0 0.0
  %2437 = vmatprep.subr.mxu0 0.0
  %2438 = vmatpush1.xpose.msra.mxu0 0.0
  %2439 = vmatprep.subr.mxu0 0.0
  %2440 = vmatpush1.xpose.msra.mxu0 0.0
  %2441 = vmatprep.subr.mxu0 0.0
  %2442 = vmatpush1.xpose.msra.mxu0 0.0
  %2443 = vmatprep.subr.mxu0 0.0
  %2444 = vmatpush1.xpose.msra.mxu0 0.0
  %2445 = vmatprep.subr.mxu0 0.0
  %2446 = vmatpush1.xpose.msra.mxu0 0.0
  %2447 = vmatprep.subr.mxu0 0.0
  %2448 = vmatpush1.xpose.msra.mxu0 0.0
  %2449 = vmatprep.subr.mxu0 0.0
  %2450 = vmatpush1.xpose.msra.mxu0 0.0
  %2451 = vmatprep.subr.mxu0 0.0
  %2452 = vmatpush1.xpose.msra.mxu0 0.0
  %2453 = vmatprep.subr.mxu0 0.0
  %2454 = vmatpush1.xpose.msra.mxu0 0.0
  %2455 = vmatprep.subr.mxu0 0.0
  %2456 = vmatpush1.xpose.msra.mxu0 0.0
  %2457 = vmatprep.subr.mxu0 0.0
  %2458 = vmatpush1.xpose.msra.mxu0 0.0
  %2459 = vmatprep.subr.mxu0 0.0
  %2460 = vmatpush1.xpose.msra.mxu0 0.0
  %2461 = vmatprep.subr.mxu0 0.0
  %2462 = vmatpush1.xpose.msra.mxu0 0.0
  %2463 = vmatprep.subr.mxu0 0.0
  %2464 = vmatpush1.xpose.msra.mxu0 0.0
  %2465 = vmatprep.subr.mxu0 0.0
  %2466 = vmatpush1.xpose.msra.mxu0 0.0
  %2467 = vmatprep.subr.mxu0 0.0
  %2468 = vmatpush1.xpose.msra.mxu0 0.0
  %2469 = vmatprep.subr.mxu0 0.0
  %2470 = vmatpush1.xpose.msra.mxu0 0.0
  %2471 = vmatprep.subr.mxu0 0.0
  %2472 = vmatpush1.xpose.msra.mxu0 0.0
  %2473 = vmatprep.subr.mxu0 0.0
  %2474 = vmatpush1.xpose.msra.mxu0 0.0
  %2475 = vmatprep.subr.mxu0 0.0
  %2476 = vmatpush1.xpose.msra.mxu0 0.0
  %2477 = vmatprep.subr.mxu0 0.0
  %2478 = vmatpush1.xpose.msra.mxu0 0.0
  %2479 = vmatprep.subr.mxu0 0.0
  %2480 = vmatpush1.xpose.msra.mxu0 0.0
  %2481 = vmatprep.subr.mxu0 0.0
  %2482 = vmatpush1.xpose.msra.mxu0 0.0
  %2483 = vmatprep.subr.mxu0 0.0
  %2484 = vmatpush1.xpose.msra.mxu0 0.0
  %2485 = vmatprep.subr.mxu0 0.0
  %2486 = vmatpush1.xpose.msra.mxu0 0.0
  %2487 = vmatprep.mubr.f32.mxu0 0.0
  %2488 = vmatmul.mubr.f32.gmra.mrb[0].mxu0 %v2415
  %v2489 = vpop.f32.mrb[0].mxu0
  %v2490 = vadd.f32 0.0, %v2489
  %v2491 = vpop.f32.mrb[0].mxu0
  %2492 = vmatprep.mubr.f32.mxu0 0.0
  %2493 = vmatmul.mubr.f32.gmra.mrb[0].mxu0 %v2417
  %v2494 = vpop.f32.mrb[0].mxu0
  %v2495 = vadd.f32 0.0, %v2494
  %v2496 = vpop.f32.mrb[0].mxu0
  %2497 = vdwg.mxu0
  %v2498 = vmul.f32 %v2490, 0.35355338
  %v2499 = vmul.f32 %v2495, 0.35355338
  %v2500 = vadd.f32 %v2498, %v177
  %v2501 = vadd.f32 %v2499, %v178
  %v2502 = vsel %vm389, %v2500, -inf
  %2503 = vmax.xlane.f32.xlu0 %v2502
  %v2504 = vpop.xlane.xlu0 %2503
  %v2505 = vsel %vm389, %v2501, -inf
  %2506 = vmax.xlane.f32.xlu0 %v2505
  %v2507 = vpop.xlane.xlu0 %2506
  %v2508 = vsub.f32 %v2500, %v2504
  %v2509 = vsub.f32 %v2501, %v2507
  %v2510 = vmul.f32 %v2508, 1.442695
  %v2511 = vpow.pop %v2510
  %v2512 = vmul.f32 %v2509, 1.442695
  %v2513 = vpow.pop %v2512
  %v2514 = vsel %vm389, %v2511, 0.0
  %2515 = vadd.xlane.f32.xlu0 %v2514
  %v2516 = vpop.xlane.xlu0 %2515
  %v2517 = vsel %vm389, %v2513, 0.0
  %2518 = vadd.xlane.f32.xlu0 %v2517
  %v2519 = vpop.xlane.xlu0 %2518
  %v2520 = vrcp.pop %v2516
  %v2521 = vrcp.pop %v2519
  %v2522 = vmul.f32 %v2511, %v2520
  %v2523 = vmul.f32 %v2513, %v2521
  %2524 = vrot.lane.b32.xlu0 %v1831, 48
  %v2525 = vpop.permute.xlu0 %2524
  %2526 = vrot.lane.b32.xlu0 %v1836, 48
  %v2527 = vpop.permute.xlu0 %2526
  %v2531 = vsel %vm389, %v2522, 0
  %v2534 = vsel %vm389, %v2523, 0
  %2536 = vmatprep.subr.mxu0 0.0
  %2537 = vmatpush1.msra.mxu0 %v2525
  %2538 = vmatprep.subr.mxu0 0.0
  %2539 = vmatpush1.msra.mxu0 %v2527
  %2540 = vmatprep.subr.mxu0 0.0
  %2541 = vmatpush1.msra.mxu0 0.0
  %2542 = vmatprep.subr.mxu0 0.0
  %2543 = vmatpush1.msra.mxu0 0.0
  %2544 = vmatprep.subr.mxu0 0.0
  %2545 = vmatpush1.msra.mxu0 0.0
  %2546 = vmatprep.subr.mxu0 0.0
  %2547 = vmatpush1.msra.mxu0 0.0
  %2548 = vmatprep.subr.mxu0 0.0
  %2549 = vmatpush1.msra.mxu0 0.0
  %2550 = vmatprep.subr.mxu0 0.0
  %2551 = vmatpush1.msra.mxu0 0.0
  %2552 = vmatprep.subr.mxu0 0.0
  %2553 = vmatpush1.msra.mxu0 0.0
  %2554 = vmatprep.subr.mxu0 0.0
  %2555 = vmatpush1.msra.mxu0 0.0
  %2556 = vmatprep.subr.mxu0 0.0
  %2557 = vmatpush1.msra.mxu0 0.0
  %2558 = vmatprep.subr.mxu0 0.0
  %2559 = vmatpush1.msra.mxu0 0.0
  %2560 = vmatprep.subr.mxu0 0.0
  %2561 = vmatpush1.msra.mxu0 0.0
  %2562 = vmatprep.subr.mxu0 0.0
  %2563 = vmatpush1.msra.mxu0 0.0
  %2564 = vmatprep.subr.mxu0 0.0
  %2565 = vmatpush1.msra.mxu0 0.0
  %2566 = vmatprep.subr.mxu0 0.0
  %2567 = vmatpush1.msra.mxu0 0.0
  %2568 = vmatprep.subr.mxu0 0.0
  %2569 = vmatpush1.msra.mxu0 0.0
  %2570 = vmatprep.subr.mxu0 0.0
  %2571 = vmatpush1.msra.mxu0 0.0
  %2572 = vmatprep.subr.mxu0 0.0
  %2573 = vmatpush1.msra.mxu0 0.0
  %2574 = vmatprep.subr.mxu0 0.0
  %2575 = vmatpush1.msra.mxu0 0.0
  %2576 = vmatprep.subr.mxu0 0.0
  %2577 = vmatpush1.msra.mxu0 0.0
  %2578 = vmatprep.subr.mxu0 0.0
  %2579 = vmatpush1.msra.mxu0 0.0
  %2580 = vmatprep.subr.mxu0 0.0
  %2581 = vmatpush1.msra.mxu0 0.0
  %2582 = vmatprep.subr.mxu0 0.0
  %2583 = vmatpush1.msra.mxu0 0.0
  %2584 = vmatprep.subr.mxu0 0.0
  %2585 = vmatpush1.msra.mxu0 0.0
  %2586 = vmatprep.subr.mxu0 0.0
  %2587 = vmatpush1.msra.mxu0 0.0
  %2588 = vmatprep.subr.mxu0 0.0
  %2589 = vmatpush1.msra.mxu0 0.0
  %2590 = vmatprep.subr.mxu0 0.0
  %2591 = vmatpush1.msra.mxu0 0.0
  %2592 = vmatprep.subr.mxu0 0.0
  %2593 = vmatpush1.msra.mxu0 0.0
  %2594 = vmatprep.subr.mxu0 0.0
  %2595 = vmatpush1.msra.mxu0 0.0
  %2596 = vmatprep.subr.mxu0 0.0
  %2597 = vmatpush1.msra.mxu0 0.0
  %2598 = vmatprep.subr.mxu0 0.0
  %2599 = vmatpush1.msra.mxu0 0.0
  %2600 = vmatprep.mubr.f32.mxu0 0.0
  %2601 = vmatmul.mubr.f32.gmra.mrb[0].mxu0 %v2531
  %v2602 = vpop.f32.mrb[0].mxu0
  %v2603 = vadd.f32 0.0, %v2602
  %v2604 = vpop.f32.mrb[0].mxu0
  %2605 = vmatprep.mubr.f32.mxu0 0.0
  %2606 = vmatmul.mubr.f32.gmra.mrb[0].mxu0 %v2534
  %v2607 = vpop.f32.mrb[0].mxu0
  %v2608 = vadd.f32 0.0, %v2607
  %v2609 = vpop.f32.mrb[0].mxu0
  %2610 = vdwg.mxu0
  %v2612 = vsel %vm301, %v2603, 0
  %v2615 = vsel %vm301, %v2608, 0
  %2617 = vmatprep.subr.mxu0 0.0
  %2618 = vmatpush1.msra.mxu0 %v1722
  %2619 = vmatprep.subr.mxu0 0.0
  %2620 = vmatpush1.msra.mxu0 0.0
  %2621 = vmatprep.subr.mxu0 0.0
  %2622 = vmatpush1.msra.mxu0 0.0
  %2623 = vmatprep.subr.mxu0 0.0
  %2624 = vmatpush1.msra.mxu0 0.0
  %2625 = vmatprep.subr.mxu0 0.0
  %2626 = vmatpush1.msra.mxu0 0.0
  %2627 = vmatprep.subr.mxu0 0.0
  %2628 = vmatpush1.msra.mxu0 0.0
  %2629 = vmatprep.subr.mxu0 0.0
  %2630 = vmatpush1.msra.mxu0 0.0
  %2631 = vmatprep.subr.mxu0 0.0
  %2632 = vmatpush1.msra.mxu0 0.0
  %2633 = vmatprep.subr.mxu0 0.0
  %2634 = vmatpush1.msra.mxu0 0.0
  %2635 = vmatprep.subr.mxu0 0.0
  %2636 = vmatpush1.msra.mxu0 0.0
  %2637 = vmatprep.subr.mxu0 0.0
  %2638 = vmatpush1.msra.mxu0 0.0
  %2639 = vmatprep.subr.mxu0 0.0
  %2640 = vmatpush1.msra.mxu0 0.0
  %2641 = vmatprep.subr.mxu0 0.0
  %2642 = vmatpush1.msra.mxu0 0.0
  %2643 = vmatprep.subr.mxu0 0.0
  %2644 = vmatpush1.msra.mxu0 0.0
  %2645 = vmatprep.subr.mxu0 0.0
  %2646 = vmatpush1.msra.mxu0 0.0
  %2647 = vmatprep.subr.mxu0 0.0
  %2648 = vmatpush1.msra.mxu0 0.0
  %2649 = vmatprep.subr.mxu0 0.0
  %2650 = vmatpush1.msra.mxu0 0.0
  %2651 = vmatprep.subr.mxu0 0.0
  %2652 = vmatpush1.msra.mxu0 0.0
  %2653 = vmatprep.subr.mxu0 0.0
  %2654 = vmatpush1.msra.mxu0 0.0
  %2655 = vmatprep.subr.mxu0 0.0
  %2656 = vmatpush1.msra.mxu0 0.0
  %2657 = vmatprep.subr.mxu0 0.0
  %2658 = vmatpush1.msra.mxu0 0.0
  %2659 = vmatprep.subr.mxu0 0.0
  %2660 = vmatpush1.msra.mxu0 0.0
  %2661 = vmatprep.subr.mxu0 0.0
  %2662 = vmatpush1.msra.mxu0 0.0
  %2663 = vmatprep.subr.mxu0 0.0
  %2664 = vmatpush1.msra.mxu0 0.0
  %2665 = vmatprep.subr.mxu0 0.0
  %2666 = vmatpush1.msra.mxu0 0.0
  %2667 = vmatprep.subr.mxu0 0.0
  %2668 = vmatpush1.msra.mxu0 0.0
  %2669 = vmatprep.subr.mxu0 0.0
  %2670 = vmatpush1.msra.mxu0 0.0
  %2671 = vmatprep.subr.mxu0 0.0
  %2672 = vmatpush1.msra.mxu0 0.0
  %2673 = vmatprep.subr.mxu0 0.0
  %2674 = vmatpush1.msra.mxu0 0.0
  %2675 = vmatprep.subr.mxu0 0.0
  %2676 = vmatpush1.msra.mxu0 0.0
  %2677 = vmatprep.subr.mxu0 0.0
  %2678 = vmatpush1.msra.mxu0 0.0
  %2679 = vmatprep.subr.mxu0 0.0
  %2680 = vmatpush1.msra.mxu0 0.0
  %2681 = vmatprep.mubr.f32.mxu0 0.0
  %2682 = vmatmul.mubr.f32.gmra.mrb[0].mxu0 %v2612
  %v2683 = vpop.f32.mrb[0].mxu0
  %v2684 = vadd.f32 0.0, %v2683
  %v2685 = vpop.f32.mrb[0].mxu0
  %2686 = vmatprep.mubr.f32.mxu0 0.0
  %2687 = vmatmul.mubr.f32.gmra.mrb[0].mxu0 %v2615
  %v2688 = vpop.f32.mrb[0].mxu0
  %v2689 = vadd.f32 0.0, %v2688
  %v2690 = vpop.f32.mrb[0].mxu0
  %2691 = vdwg.mxu0
  %v2692 = vadd.f32 %v2399, %v2684
  %v2693 = vadd.f32 %v2404, %v2689
  %2694 = vrot.lane.b32.xlu0 %v1831, 104
  %v2695 = vpop.permute.xlu0 %2694
  %2696 = vrot.lane.b32.xlu0 %v1836, 104
  %v2697 = vpop.permute.xlu0 %2696
  %2698 = vrot.lane.b32.xlu0 %v1831, 72
  %v2699 = vpop.permute.xlu0 %2698
  %2700 = vrot.lane.b32.xlu0 %v1836, 72
  %v2701 = vpop.permute.xlu0 %2700
  %v2702 = vsel %vm301, %v2695, 0
  %v2704 = vsel %vm301, %v2697, 0
  %v2706 = vsel %vm301, %v2699, 0
  %v2708 = vsel %vm301, %v2701, 0
  %2710 = vmatprep.subr.mxu0 0.0
  %2711 = vmatpush1.xpose.msra.mxu0 %v2706
  %2712 = vmatprep.subr.mxu0 0.0
  %2713 = vmatpush1.xpose.msra.mxu0 %v2708
  %2714 = vmatprep.subr.mxu0 0.0
  %2715 = vmatpush1.xpose.msra.mxu0 0.0
  %2716 = vmatprep.subr.mxu0 0.0
  %2717 = vmatpush1.xpose.msra.mxu0 0.0
  %2718 = vmatprep.subr.mxu0 0.0
  %2719 = vmatpush1.xpose.msra.mxu0 0.0
  %2720 = vmatprep.subr.mxu0 0.0
  %2721 = vmatpush1.xpose.msra.mxu0 0.0
  %2722 = vmatprep.subr.mxu0 0.0
  %2723 = vmatpush1.xpose.msra.mxu0 0.0
  %2724 = vmatprep.subr.mxu0 0.0
  %2725 = vmatpush1.xpose.msra.mxu0 0.0
  %2726 = vmatprep.subr.mxu0 0.0
  %2727 = vmatpush1.xpose.msra.mxu0 0.0
  %2728 = vmatprep.subr.mxu0 0.0
  %2729 = vmatpush1.xpose.msra.mxu0 0.0
  %2730 = vmatprep.subr.mxu0 0.0
  %2731 = vmatpush1.xpose.msra.mxu0 0.0
  %2732 = vmatprep.subr.mxu0 0.0
  %2733 = vmatpush1.xpose.msra.mxu0 0.0
  %2734 = vmatprep.subr.mxu0 0.0
  %2735 = vmatpush1.xpose.msra.mxu0 0.0
  %2736 = vmatprep.subr.mxu0 0.0
  %2737 = vmatpush1.xpose.msra.mxu0 0.0
  %2738 = vmatprep.subr.mxu0 0.0
  %2739 = vmatpush1.xpose.msra.mxu0 0.0
  %2740 = vmatprep.subr.mxu0 0.0
  %2741 = vmatpush1.xpose.msra.mxu0 0.0
  %2742 = vmatprep.subr.mxu0 0.0
  %2743 = vmatpush1.xpose.msra.mxu0 0.0
  %2744 = vmatprep.subr.mxu0 0.0
  %2745 = vmatpush1.xpose.msra.mxu0 0.0
  %2746 = vmatprep.subr.mxu0 0.0
  %2747 = vmatpush1.xpose.msra.mxu0 0.0
  %2748 = vmatprep.subr.mxu0 0.0
  %2749 = vmatpush1.xpose.msra.mxu0 0.0
  %2750 = vmatprep.subr.mxu0 0.0
  %2751 = vmatpush1.xpose.msra.mxu0 0.0
  %2752 = vmatprep.subr.mxu0 0.0
  %2753 = vmatpush1.xpose.msra.mxu0 0.0
  %2754 = vmatprep.subr.mxu0 0.0
  %2755 = vmatpush1.xpose.msra.mxu0 0.0
  %2756 = vmatprep.subr.mxu0 0.0
  %2757 = vmatpush1.xpose.msra.mxu0 0.0
  %2758 = vmatprep.subr.mxu0 0.0
  %2759 = vmatpush1.xpose.msra.mxu0 0.0
  %2760 = vmatprep.subr.mxu0 0.0
  %2761 = vmatpush1.xpose.msra.mxu0 0.0
  %2762 = vmatprep.subr.mxu0 0.0
  %2763 = vmatpush1.xpose.msra.mxu0 0.0
  %2764 = vmatprep.subr.mxu0 0.0
  %2765 = vmatpush1.xpose.msra.mxu0 0.0
  %2766 = vmatprep.subr.mxu0 0.0
  %2767 = vmatpush1.xpose.msra.mxu0 0.0
  %2768 = vmatprep.subr.mxu0 0.0
  %2769 = vmatpush1.xpose.msra.mxu0 0.0
  %2770 = vmatprep.subr.mxu0 0.0
  %2771 = vmatpush1.xpose.msra.mxu0 0.0
  %2772 = vmatprep.subr.mxu0 0.0
  %2773 = vmatpush1.xpose.msra.mxu0 0.0
  %2774 = vmatprep.mubr.f32.mxu0 0.0
  %2775 = vmatmul.mubr.f32.gmra.mrb[0].mxu0 %v2702
  %v2776 = vpop.f32.mrb[0].mxu0
  %v2777 = vadd.f32 0.0, %v2776
  %v2778 = vpop.f32.mrb[0].mxu0
  %2779 = vmatprep.mubr.f32.mxu0 0.0
  %2780 = vmatmul.mubr.f32.gmra.mrb[0].mxu0 %v2704
  %v2781 = vpop.f32.mrb[0].mxu0
  %v2782 = vadd.f32 0.0, %v2781
  %v2783 = vpop.f32.mrb[0].mxu0
  %2784 = vdwg.mxu0
  %v2785 = vmul.f32 %v2777, 0.35355338
  %v2786 = vmul.f32 %v2782, 0.35355338
  %v2787 = vadd.f32 %v2785, %v177
  %v2788 = vadd.f32 %v2786, %v178
  %v2789 = vsel %vm389, %v2787, -inf
  %2790 = vmax.xlane.f32.xlu0 %v2789
  %v2791 = vpop.xlane.xlu0 %2790
  %v2792 = vsel %vm389, %v2788, -inf
  %2793 = vmax.xlane.f32.xlu0 %v2792
  %v2794 = vpop.xlane.xlu0 %2793
  %v2795 = vsub.f32 %v2787, %v2791
  %v2796 = vsub.f32 %v2788, %v2794
  %v2797 = vmul.f32 %v2795, 1.442695
  %v2798 = vpow.pop %v2797
  %v2799 = vmul.f32 %v2796, 1.442695
  %v2800 = vpow.pop %v2799
  %v2801 = vsel %vm389, %v2798, 0.0
  %2802 = vadd.xlane.f32.xlu0 %v2801
  %v2803 = vpop.xlane.xlu0 %2802
  %v2804 = vsel %vm389, %v2800, 0.0
  %2805 = vadd.xlane.f32.xlu0 %v2804
  %v2806 = vpop.xlane.xlu0 %2805
  %v2807 = vrcp.pop %v2803
  %v2808 = vrcp.pop %v2806
  %v2809 = vmul.f32 %v2798, %v2807
  %v2810 = vmul.f32 %v2800, %v2808
  %2811 = vrot.lane.b32.xlu0 %v1831, 40
  %v2812 = vpop.permute.xlu0 %2811
  %2813 = vrot.lane.b32.xlu0 %v1836, 40
  %v2814 = vpop.permute.xlu0 %2813
  %v2818 = vsel %vm389, %v2809, 0
  %v2821 = vsel %vm389, %v2810, 0
  %2823 = vmatprep.subr.mxu0 0.0
  %2824 = vmatpush1.msra.mxu0 %v2812
  %2825 = vmatprep.subr.mxu0 0.0
  %2826 = vmatpush1.msra.mxu0 %v2814
  %2827 = vmatprep.subr.mxu0 0.0
  %2828 = vmatpush1.msra.mxu0 0.0
  %2829 = vmatprep.subr.mxu0 0.0
  %2830 = vmatpush1.msra.mxu0 0.0
  %2831 = vmatprep.subr.mxu0 0.0
  %2832 = vmatpush1.msra.mxu0 0.0
  %2833 = vmatprep.subr.mxu0 0.0
  %2834 = vmatpush1.msra.mxu0 0.0
  %2835 = vmatprep.subr.mxu0 0.0
  %2836 = vmatpush1.msra.mxu0 0.0
  %2837 = vmatprep.subr.mxu0 0.0
  %2838 = vmatpush1.msra.mxu0 0.0
  %2839 = vmatprep.subr.mxu0 0.0
  %2840 = vmatpush1.msra.mxu0 0.0
  %2841 = vmatprep.subr.mxu0 0.0
  %2842 = vmatpush1.msra.mxu0 0.0
  %2843 = vmatprep.subr.mxu0 0.0
  %2844 = vmatpush1.msra.mxu0 0.0
  %2845 = vmatprep.subr.mxu0 0.0
  %2846 = vmatpush1.msra.mxu0 0.0
  %2847 = vmatprep.subr.mxu0 0.0
  %2848 = vmatpush1.msra.mxu0 0.0
  %2849 = vmatprep.subr.mxu0 0.0
  %2850 = vmatpush1.msra.mxu0 0.0
  %2851 = vmatprep.subr.mxu0 0.0
  %2852 = vmatpush1.msra.mxu0 0.0
  %2853 = vmatprep.subr.mxu0 0.0
  %2854 = vmatpush1.msra.mxu0 0.0
  %2855 = vmatprep.subr.mxu0 0.0
  %2856 = vmatpush1.msra.mxu0 0.0
  %2857 = vmatprep.subr.mxu0 0.0
  %2858 = vmatpush1.msra.mxu0 0.0
  %2859 = vmatprep.subr.mxu0 0.0
  %2860 = vmatpush1.msra.mxu0 0.0
  %2861 = vmatprep.subr.mxu0 0.0
  %2862 = vmatpush1.msra.mxu0 0.0
  %2863 = vmatprep.subr.mxu0 0.0
  %2864 = vmatpush1.msra.mxu0 0.0
  %2865 = vmatprep.subr.mxu0 0.0
  %2866 = vmatpush1.msra.mxu0 0.0
  %2867 = vmatprep.subr.mxu0 0.0
  %2868 = vmatpush1.msra.mxu0 0.0
  %2869 = vmatprep.subr.mxu0 0.0
  %2870 = vmatpush1.msra.mxu0 0.0
  %2871 = vmatprep.subr.mxu0 0.0
  %2872 = vmatpush1.msra.mxu0 0.0
  %2873 = vmatprep.subr.mxu0 0.0
  %2874 = vmatpush1.msra.mxu0 0.0
  %2875 = vmatprep.subr.mxu0 0.0
  %2876 = vmatpush1.msra.mxu0 0.0
  %2877 = vmatprep.subr.mxu0 0.0
  %2878 = vmatpush1.msra.mxu0 0.0
  %2879 = vmatprep.subr.mxu0 0.0
  %2880 = vmatpush1.msra.mxu0 0.0
  %2881 = vmatprep.subr.mxu0 0.0
  %2882 = vmatpush1.msra.mxu0 0.0
  %2883 = vmatprep.subr.mxu0 0.0
  %2884 = vmatpush1.msra.mxu0 0.0
  %2885 = vmatprep.subr.mxu0 0.0
  %2886 = vmatpush1.msra.mxu0 0.0
  %2887 = vmatprep.mubr.f32.mxu0 0.0
  %2888 = vmatmul.mubr.f32.gmra.mrb[0].mxu0 %v2818
  %v2889 = vpop.f32.mrb[0].mxu0
  %v2890 = vadd.f32 0.0, %v2889
  %v2891 = vpop.f32.mrb[0].mxu0
  %2892 = vmatprep.mubr.f32.mxu0 0.0
  %2893 = vmatmul.mubr.f32.gmra.mrb[0].mxu0 %v2821
  %v2894 = vpop.f32.mrb[0].mxu0
  %v2895 = vadd.f32 0.0, %v2894
  %v2896 = vpop.f32.mrb[0].mxu0
  %2897 = vdwg.mxu0
  %v2899 = vsel %vm301, %v2890, 0
  %v2902 = vsel %vm301, %v2895, 0
  %2904 = vmatprep.subr.mxu0 0.0
  %2905 = vmatpush1.msra.mxu0 %v1723
  %2906 = vmatprep.subr.mxu0 0.0
  %2907 = vmatpush1.msra.mxu0 0.0
  %2908 = vmatprep.subr.mxu0 0.0
  %2909 = vmatpush1.msra.mxu0 0.0
  %2910 = vmatprep.subr.mxu0 0.0
  %2911 = vmatpush1.msra.mxu0 0.0
  %2912 = vmatprep.subr.mxu0 0.0
  %2913 = vmatpush1.msra.mxu0 0.0
  %2914 = vmatprep.subr.mxu0 0.0
  %2915 = vmatpush1.msra.mxu0 0.0
  %2916 = vmatprep.subr.mxu0 0.0
  %2917 = vmatpush1.msra.mxu0 0.0
  %2918 = vmatprep.subr.mxu0 0.0
  %2919 = vmatpush1.msra.mxu0 0.0
  %2920 = vmatprep.subr.mxu0 0.0
  %2921 = vmatpush1.msra.mxu0 0.0
  %2922 = vmatprep.subr.mxu0 0.0
  %2923 = vmatpush1.msra.mxu0 0.0
  %2924 = vmatprep.subr.mxu0 0.0
  %2925 = vmatpush1.msra.mxu0 0.0
  %2926 = vmatprep.subr.mxu0 0.0
  %2927 = vmatpush1.msra.mxu0 0.0
  %2928 = vmatprep.subr.mxu0 0.0
  %2929 = vmatpush1.msra.mxu0 0.0
  %2930 = vmatprep.subr.mxu0 0.0
  %2931 = vmatpush1.msra.mxu0 0.0
  %2932 = vmatprep.subr.mxu0 0.0
  %2933 = vmatpush1.msra.mxu0 0.0
  %2934 = vmatprep.subr.mxu0 0.0
  %2935 = vmatpush1.msra.mxu0 0.0
  %2936 = vmatprep.subr.mxu0 0.0
  %2937 = vmatpush1.msra.mxu0 0.0
  %2938 = vmatprep.subr.mxu0 0.0
  %2939 = vmatpush1.msra.mxu0 0.0
  %2940 = vmatprep.subr.mxu0 0.0
  %2941 = vmatpush1.msra.mxu0 0.0
  %2942 = vmatprep.subr.mxu0 0.0
  %2943 = vmatpush1.msra.mxu0 0.0
  %2944 = vmatprep.subr.mxu0 0.0
  %2945 = vmatpush1.msra.mxu0 0.0
  %2946 = vmatprep.subr.mxu0 0.0
  %2947 = vmatpush1.msra.mxu0 0.0
  %2948 = vmatprep.subr.mxu0 0.0
  %2949 = vmatpush1.msra.mxu0 0.0
  %2950 = vmatprep.subr.mxu0 0.0
  %2951 = vmatpush1.msra.mxu0 0.0
  %2952 = vmatprep.subr.mxu0 0.0
  %2953 = vmatpush1.msra.mxu0 0.0
  %2954 = vmatprep.subr.mxu0 0.0
  %2955 = vmatpush1.msra.mxu0 0.0
  %2956 = vmatprep.subr.mxu0 0.0
  %2957 = vmatpush1.msra.mxu0 0.0
  %2958 = vmatprep.subr.mxu0 0.0
  %2959 = vmatpush1.msra.mxu0 0.0
  %2960 = vmatprep.subr.mxu0 0.0
  %2961 = vmatpush1.msra.mxu0 0.0
  %2962 = vmatprep.subr.mxu0 0.0
  %2963 = vmatpush1.msra.mxu0 0.0
  %2964 = vmatprep.subr.mxu0 0.0
  %2965 = vmatpush1.msra.mxu0 0.0
  %2966 = vmatprep.subr.mxu0 0.0
  %2967 = vmatpush1.msra.mxu0 0.0
  %2968 = vmatprep.mubr.f32.mxu0 0.0
  %2969 = vmatmul.mubr.f32.gmra.mrb[0].mxu0 %v2899
  %v2970 = vpop.f32.mrb[0].mxu0
  %v2971 = vadd.f32 0.0, %v2970
  %v2972 = vpop.f32.mrb[0].mxu0
  %2973 = vmatprep.mubr.f32.mxu0 0.0
  %2974 = vmatmul.mubr.f32.gmra.mrb[0].mxu0 %v2902
  %v2975 = vpop.f32.mrb[0].mxu0
  %v2976 = vadd.f32 0.0, %v2975
  %v2977 = vpop.f32.mrb[0].mxu0
  %2978 = vdwg.mxu0
  %v2979 = vadd.f32 %v2692, %v2971
  %v2980 = vadd.f32 %v2693, %v2976
  %v2982 = vlaneseq
  %v2983 = vshrl.u32 %v2982, 7
  %v2984 = vsub.s32 0, %v2983
  %v2985 = vrot.slane %v1725, %v2984
  %v2987 = vadd.f32 %v2979, %v2985
  %v2988 = vadd.f32 %v2980, %v2985
  %v2989 = vadd.f32 %v1710, %v2987
  %v2990 = vadd.f32 %v1711, %v2988
  %v2991 = vsel %vm213, %v2989, 0.0
  %2992 = vadd.xlane.f32.xlu0 %v2991
  %v2993 = vpop.xlane.xlu0 %2992
  %v2994 = vsel %vm213, %v2990, 0.0
  %2995 = vadd.xlane.f32.xlu0 %v2994
  %v2996 = vpop.xlane.xlu0 %2995
  %v2997 = vmul.f32 %v2993, 0.03125
  %v2998 = vmul.f32 %v2996, 0.03125
  %v2999 = vsub.f32 %v2989, %v2997
  %v3000 = vsub.f32 %v2990, %v2998
  %v3001 = vmul.f32 %v2999, %v2999
  %v3002 = vmul.f32 %v3000, %v3000
  %v3003 = vsel %vm213, %v3001, 0.0
  %3004 = vadd.xlane.f32.xlu0 %v3003
  %v3005 = vpop.xlane.xlu0 %3004
  %v3006 = vsel %vm213, %v3002, 0.0
  %3007 = vadd.xlane.f32.xlu0 %v3006
  %v3008 = vpop.xlane.xlu0 %3007
  %v3009 = vmul.f32 %v3005, 0.03125
  %v3010 = vmul.f32 %v3008, 0.03125
  %v3011 = vadd.f32 %v3009, 1e-05
  %v3012 = vadd.f32 %v3010, 1e-05
  %v3013 = vrsqrt.pop %v3011
  %v3014 = vrsqrt.pop %v3012
  %v3015 = vmul.f32 %v2999, %v3013
  %v3016 = vmul.f32 %v3000, %v3014
  %v3018 = vlaneseq
  %v3019 = vshrl.u32 %v3018, 7
  %v3020 = vsub.s32 0, %v3019
  %v3021 = vrot.slane %v1727, %v3020
  %v3023 = vmul.f32 %v3015, %v3021
  %v3024 = vmul.f32 %v3016, %v3021
  %v3026 = vlaneseq
  %v3027 = vshrl.u32 %v3026, 7
  %v3028 = vsub.s32 0, %v3027
  %v3029 = vrot.slane %v1729, %v3028
  %v3031 = vadd.f32 %v3023, %v3029
  %v3032 = vadd.f32 %v3024, %v3029
  %v3034 = vlaneseq
  %v3035 = vshrl.u32 %v3034, 7
  %v3036 = vsub.s32 0, %v3035
  %v3037 = vrot.slane %v1736, %v3036
  %v3040 = vsel %vm213, %v3031, 0
  %v3043 = vsel %vm213, %v3032, 0
  %3045 = vmatprep.subr.mxu0 0.0
  %3046 = vmatpush1.msra.mxu0 %v1731
  %3047 = vmatprep.subr.mxu0 0.0
  %3048 = vmatpush1.msra.mxu0 %v1732
  %3049 = vmatprep.subr.mxu0 0.0
  %3050 = vmatpush1.msra.mxu0 %v1733
  %3051 = vmatprep.subr.mxu0 0.0
  %3052 = vmatpush1.msra.mxu0 %v1734
  %3053 = vmatprep.subr.mxu0 0.0
  %3054 = vmatpush1.msra.mxu0 0.0
  %3055 = vmatprep.subr.mxu0 0.0
  %3056 = vmatpush1.msra.mxu0 0.0
  %3057 = vmatprep.subr.mxu0 0.0
  %3058 = vmatpush1.msra.mxu0 0.0
  %3059 = vmatprep.subr.mxu0 0.0
  %3060 = vmatpush1.msra.mxu0 0.0
  %3061 = vmatprep.subr.mxu0 0.0
  %3062 = vmatpush1.msra.mxu0 0.0
  %3063 = vmatprep.subr.mxu0 0.0
  %3064 = vmatpush1.msra.mxu0 0.0
  %3065 = vmatprep.subr.mxu0 0.0
  %3066 = vmatpush1.msra.mxu0 0.0
  %3067 = vmatprep.subr.mxu0 0.0
  %3068 = vmatpush1.msra.mxu0 0.0
  %3069 = vmatprep.subr.mxu0 0.0
  %3070 = vmatpush1.msra.mxu0 0.0
  %3071 = vmatprep.subr.mxu0 0.0
  %3072 = vmatpush1.msra.mxu0 0.0
  %3073 = vmatprep.subr.mxu0 0.0
  %3074 = vmatpush1.msra.mxu0 0.0
  %3075 = vmatprep.subr.mxu0 0.0
  %3076 = vmatpush1.msra.mxu0 0.0
  %3077 = vmatprep.subr.mxu0 0.0
  %3078 = vmatpush1.msra.mxu0 0.0
  %3079 = vmatprep.subr.mxu0 0.0
  %3080 = vmatpush1.msra.mxu0 0.0
  %3081 = vmatprep.subr.mxu0 0.0
  %3082 = vmatpush1.msra.mxu0 0.0
  %3083 = vmatprep.subr.mxu0 0.0
  %3084 = vmatpush1.msra.mxu0 0.0
  %3085 = vmatprep.subr.mxu0 0.0
  %3086 = vmatpush1.msra.mxu0 0.0
  %3087 = vmatprep.subr.mxu0 0.0
  %3088 = vmatpush1.msra.mxu0 0.0
  %3089 = vmatprep.subr.mxu0 0.0
  %3090 = vmatpush1.msra.mxu0 0.0
  %3091 = vmatprep.subr.mxu0 0.0
  %3092 = vmatpush1.msra.mxu0 0.0
  %3093 = vmatprep.subr.mxu0 0.0
  %3094 = vmatpush1.msra.mxu0 0.0
  %3095 = vmatprep.subr.mxu0 0.0
  %3096 = vmatpush1.msra.mxu0 0.0
  %3097 = vmatprep.subr.mxu0 0.0
  %3098 = vmatpush1.msra.mxu0 0.0
  %3099 = vmatprep.subr.mxu0 0.0
  %3100 = vmatpush1.msra.mxu0 0.0
  %3101 = vmatprep.subr.mxu0 0.0
  %3102 = vmatpush1.msra.mxu0 0.0
  %3103 = vmatprep.subr.mxu0 0.0
  %3104 = vmatpush1.msra.mxu0 0.0
  %3105 = vmatprep.subr.mxu0 0.0
  %3106 = vmatpush1.msra.mxu0 0.0
  %3107 = vmatprep.subr.mxu0 0.0
  %3108 = vmatpush1.msra.mxu0 0.0
  %3109 = vmatprep.mubr.f32.mxu0 0.0
  %3110 = vmatmul.mubr.f32.gmra.mrb[0].mxu0 %v3040
  %v3111 = vpop.f32.mrb[0].mxu0
  %v3112 = vadd.f32 %v3037, %v3111
  %v3113 = vpop.f32.mrb[0].mxu0
  %3114 = vmatprep.mubr.f32.mxu0 0.0
  %3115 = vmatmul.mubr.f32.gmra.mrb[0].mxu0 %v3043
  %v3116 = vpop.f32.mrb[0].mxu0
  %v3117 = vadd.f32 %v3037, %v3116
  %v3118 = vpop.f32.mrb[0].mxu0
  %3119 = vdwg.mxu0
  %v3120 = vmax.f32 %v3112, 0.0
  %v3121 = vmax.f32 %v3117, 0.0
  %v3123 = vlaneseq
  %v3124 = vshrl.u32 %v3123, 7
  %v3125 = vsub.s32 0, %v3124
  %v3126 = vrot.slane %v1747, %v3125
  %v3129 = vsel %vm1586, %v3120, 0
  %v3132 = vsel %vm1586, %v3121, 0
  %3134 = vmatprep.subr.mxu0 0.0
  %3135 = vmatpush1.msra.mxu0 %v1738
  %3136 = vmatprep.subr.mxu0 0.0
  %3137 = vmatpush1.msra.mxu0 %v1739
  %3138 = vmatprep.subr.mxu0 0.0
  %3139 = vmatpush1.msra.mxu0 %v1740
  %3140 = vmatprep.subr.mxu0 0.0
  %3141 = vmatpush1.msra.mxu0 %v1741
  %3142 = vmatprep.subr.mxu0 0.0
  %3143 = vmatpush1.msra.mxu0 %v1742
  %3144 = vmatprep.subr.mxu0 0.0
  %3145 = vmatpush1.msra.mxu0 %v1743
  %3146 = vmatprep.subr.mxu0 0.0
  %3147 = vmatpush1.msra.mxu0 %v1744
  %3148 = vmatprep.subr.mxu0 0.0
  %3149 = vmatpush1.msra.mxu0 %v1745
  %3150 = vmatprep.subr.mxu0 0.0
  %3151 = vmatpush1.msra.mxu0 0.0
  %3152 = vmatprep.subr.mxu0 0.0
  %3153 = vmatpush1.msra.mxu0 0.0
  %3154 = vmatprep.subr.mxu0 0.0
  %3155 = vmatpush1.msra.mxu0 0.0
  %3156 = vmatprep.subr.mxu0 0.0
  %3157 = vmatpush1.msra.mxu0 0.0
  %3158 = vmatprep.subr.mxu0 0.0
  %3159 = vmatpush1.msra.mxu0 0.0
  %3160 = vmatprep.subr.mxu0 0.0
  %3161 = vmatpush1.msra.mxu0 0.0
  %3162 = vmatprep.subr.mxu0 0.0
  %3163 = vmatpush1.msra.mxu0 0.0
  %3164 = vmatprep.subr.mxu0 0.0
  %3165 = vmatpush1.msra.mxu0 0.0
  %3166 = vmatprep.subr.mxu0 0.0
  %3167 = vmatpush1.msra.mxu0 0.0
  %3168 = vmatprep.subr.mxu0 0.0
  %3169 = vmatpush1.msra.mxu0 0.0
  %3170 = vmatprep.subr.mxu0 0.0
  %3171 = vmatpush1.msra.mxu0 0.0
  %3172 = vmatprep.subr.mxu0 0.0
  %3173 = vmatpush1.msra.mxu0 0.0
  %3174 = vmatprep.subr.mxu0 0.0
  %3175 = vmatpush1.msra.mxu0 0.0
  %3176 = vmatprep.subr.mxu0 0.0
  %3177 = vmatpush1.msra.mxu0 0.0
  %3178 = vmatprep.subr.mxu0 0.0
  %3179 = vmatpush1.msra.mxu0 0.0
  %3180 = vmatprep.subr.mxu0 0.0
  %3181 = vmatpush1.msra.mxu0 0.0
  %3182 = vmatprep.subr.mxu0 0.0
  %3183 = vmatpush1.msra.mxu0 0.0
  %3184 = vmatprep.subr.mxu0 0.0
  %3185 = vmatpush1.msra.mxu0 0.0
  %3186 = vmatprep.subr.mxu0 0.0
  %3187 = vmatpush1.msra.mxu0 0.0
  %3188 = vmatprep.subr.mxu0 0.0
  %3189 = vmatpush1.msra.mxu0 0.0
  %3190 = vmatprep.subr.mxu0 0.0
  %3191 = vmatpush1.msra.mxu0 0.0
  %3192 = vmatprep.subr.mxu0 0.0
  %3193 = vmatpush1.msra.mxu0 0.0
  %3194 = vmatprep.subr.mxu0 0.0
  %3195 = vmatpush1.msra.mxu0 0.0
  %3196 = vmatprep.subr.mxu0 0.0
  %3197 = vmatpush1.msra.mxu0 0.0
  %3198 = vmatprep.mubr.f32.mxu0 0.0
  %3199 = vmatmul.mubr.f32.gmra.mrb[0].mxu0 %v3129
  %v3200 = vpop.f32.mrb[0].mxu0
  %v3201 = vadd.f32 %v3126, %v3200
  %v3202 = vpop.f32.mrb[0].mxu0
  %3203 = vmatprep.mubr.f32.mxu0 0.0
  %3204 = vmatmul.mubr.f32.gmra.mrb[0].mxu0 %v3132
  %v3205 = vpop.f32.mrb[0].mxu0
  %v3206 = vadd.f32 %v3126, %v3205
  %v3207 = vpop.f32.mrb[0].mxu0
  %3208 = vdwg.mxu0
  %v3209 = vadd.f32 %v3031, %v3201
  %v3210 = vadd.f32 %v3032, %v3206
  %v3211 = vsel %vm213, %v3209, 0.0
  %3212 = vadd.xlane.f32.xlu0 %v3211
  %v3213 = vpop.xlane.xlu0 %3212
  %v3214 = vsel %vm213, %v3210, 0.0
  %3215 = vadd.xlane.f32.xlu0 %v3214
  %v3216 = vpop.xlane.xlu0 %3215
  %v3217 = vmul.f32 %v3213, 0.03125
  %v3218 = vmul.f32 %v3216, 0.03125
  %v3219 = vsub.f32 %v3209, %v3217
  %v3220 = vsub.f32 %v3210, %v3218
  %v3221 = vmul.f32 %v3219, %v3219
  %v3222 = vmul.f32 %v3220, %v3220
  %v3223 = vsel %vm213, %v3221, 0.0
  %3224 = vadd.xlane.f32.xlu0 %v3223
  %v3225 = vpop.xlane.xlu0 %3224
  %v3226 = vsel %vm213, %v3222, 0.0
  %3227 = vadd.xlane.f32.xlu0 %v3226
  %v3228 = vpop.xlane.xlu0 %3227
  %v3229 = vmul.f32 %v3225, 0.03125
  %v3230 = vmul.f32 %v3228, 0.03125
  %v3231 = vadd.f32 %v3229, 1e-05
  %v3232 = vadd.f32 %v3230, 1e-05
  %v3233 = vrsqrt.pop %v3231
  %v3234 = vrsqrt.pop %v3232
  %v3235 = vmul.f32 %v3219, %v3233
  %v3236 = vmul.f32 %v3220, %v3234
  %v3238 = vlaneseq
  %v3239 = vshrl.u32 %v3238, 7
  %v3240 = vsub.s32 0, %v3239
  %v3241 = vrot.slane %v1749, %v3240
  %v3243 = vmul.f32 %v3235, %v3241
  %v3244 = vmul.f32 %v3236, %v3241
  %v3246 = vlaneseq
  %v3247 = vshrl.u32 %v3246, 7
  %v3248 = vsub.s32 0, %v3247
  %v3249 = vrot.slane %v1751, %v3248
  %v3251 = vadd.f32 %v3243, %v3249
  %v3252 = vadd.f32 %v3244, %v3249
  %v3253 = vld [vmem:[%s3] sm:$0x3]
  %v3255 = vsel %vm389, %v3253, 0
  %3257 = vmatprep.subr.mxu0 0.0
  %3258 = vmatpush1.msra.mxu0 %v3251
  %3259 = vmatprep.subr.mxu0 0.0
  %3260 = vmatpush1.msra.mxu0 %v3252
  %3261 = vmatprep.subr.mxu0 0.0
  %3262 = vmatpush1.msra.mxu0 0.0
  %3263 = vmatprep.subr.mxu0 0.0
  %3264 = vmatpush1.msra.mxu0 0.0
  %3265 = vmatprep.subr.mxu0 0.0
  %3266 = vmatpush1.msra.mxu0 0.0
  %3267 = vmatprep.subr.mxu0 0.0
  %3268 = vmatpush1.msra.mxu0 0.0
  %3269 = vmatprep.subr.mxu0 0.0
  %3270 = vmatpush1.msra.mxu0 0.0
  %3271 = vmatprep.subr.mxu0 0.0
  %3272 = vmatpush1.msra.mxu0 0.0
  %3273 = vmatprep.subr.mxu0 0.0
  %3274 = vmatpush1.msra.mxu0 0.0
  %3275 = vmatprep.subr.mxu0 0.0
  %3276 = vmatpush1.msra.mxu0 0.0
  %3277 = vmatprep.subr.mxu0 0.0
  %3278 = vmatpush1.msra.mxu0 0.0
  %3279 = vmatprep.subr.mxu0 0.0
  %3280 = vmatpush1.msra.mxu0 0.0
  %3281 = vmatprep.subr.mxu0 0.0
  %3282 = vmatpush1.msra.mxu0 0.0
  %3283 = vmatprep.subr.mxu0 0.0
  %3284 = vmatpush1.msra.mxu0 0.0
  %3285 = vmatprep.subr.mxu0 0.0
  %3286 = vmatpush1.msra.mxu0 0.0
  %3287 = vmatprep.subr.mxu0 0.0
  %3288 = vmatpush1.msra.mxu0 0.0
  %3289 = vmatprep.subr.mxu0 0.0
  %3290 = vmatpush1.msra.mxu0 0.0
  %3291 = vmatprep.subr.mxu0 0.0
  %3292 = vmatpush1.msra.mxu0 0.0
  %3293 = vmatprep.subr.mxu0 0.0
  %3294 = vmatpush1.msra.mxu0 0.0
  %3295 = vmatprep.subr.mxu0 0.0
  %3296 = vmatpush1.msra.mxu0 0.0
  %3297 = vmatprep.subr.mxu0 0.0
  %3298 = vmatpush1.msra.mxu0 0.0
  %3299 = vmatprep.subr.mxu0 0.0
  %3300 = vmatpush1.msra.mxu0 0.0
  %3301 = vmatprep.subr.mxu0 0.0
  %3302 = vmatpush1.msra.mxu0 0.0
  %3303 = vmatprep.subr.mxu0 0.0
  %3304 = vmatpush1.msra.mxu0 0.0
  %3305 = vmatprep.subr.mxu0 0.0
  %3306 = vmatpush1.msra.mxu0 0.0
  %3307 = vmatprep.subr.mxu0 0.0
  %3308 = vmatpush1.msra.mxu0 0.0
  %3309 = vmatprep.subr.mxu0 0.0
  %3310 = vmatpush1.msra.mxu0 0.0
  %3311 = vmatprep.subr.mxu0 0.0
  %3312 = vmatpush1.msra.mxu0 0.0
  %3313 = vmatprep.subr.mxu0 0.0
  %3314 = vmatpush1.msra.mxu0 0.0
  %3315 = vmatprep.subr.mxu0 0.0
  %3316 = vmatpush1.msra.mxu0 0.0
  %3317 = vmatprep.subr.mxu0 0.0
  %3318 = vmatpush1.msra.mxu0 0.0
  %3319 = vmatprep.subr.mxu0 0.0
  %3320 = vmatpush1.msra.mxu0 0.0
  %3321 = vmatprep.mubr.f32.mxu0 0.0
  %3322 = vmatmul.mubr.f32.gmra.mrb[0].mxu0 %v3255
  %v3323 = vpop.f32.mrb[0].mxu0
  %v3324 = vadd.f32 0.0, %v3323
  %v3325 = vpop.f32.mrb[0].mxu0
  %3326 = vdwg.mxu0
  %v3327 = vld [vmem:[%s18] sm:$0xff]
  %v3328 = vld [vmem:[%s18 + $0x8] sm:$0xff]
  %v3329 = vld [vmem:[%s18 + $0x10] sm:$0xff]
  %v3330 = vld [vmem:[%s18 + $0x18] sm:$0xff]
  %v3331 = vld [vmem:[%s19] sm:$0x1]
  %v3333 = vlaneseq
  %v3334 = vshrl.u32 %v3333, 7
  %v3335 = vsub.s32 0, %v3334
  %v3336 = vrot.slane %v3331, %v3335
  %v3339 = vsel %vm213, %v3324, 0
  %3341 = vmatprep.subr.mxu0 0.0
  %3342 = vmatpush1.msra.mxu0 %v3327
  %3343 = vmatprep.subr.mxu0 0.0
  %3344 = vmatpush1.msra.mxu0 %v3328
  %3345 = vmatprep.subr.mxu0 0.0
  %3346 = vmatpush1.msra.mxu0 %v3329
  %3347 = vmatprep.subr.mxu0 0.0
  %3348 = vmatpush1.msra.mxu0 %v3330
  %3349 = vmatprep.subr.mxu0 0.0
  %3350 = vmatpush1.msra.mxu0 0.0
  %3351 = vmatprep.subr.mxu0 0.0
  %3352 = vmatpush1.msra.mxu0 0.0
  %3353 = vmatprep.subr.mxu0 0.0
  %3354 = vmatpush1.msra.mxu0 0.0
  %3355 = vmatprep.subr.mxu0 0.0
  %3356 = vmatpush1.msra.mxu0 0.0
  %3357 = vmatprep.subr.mxu0 0.0
  %3358 = vmatpush1.msra.mxu0 0.0
  %3359 = vmatprep.subr.mxu0 0.0
  %3360 = vmatpush1.msra.mxu0 0.0
  %3361 = vmatprep.subr.mxu0 0.0
  %3362 = vmatpush1.msra.mxu0 0.0
  %3363 = vmatprep.subr.mxu0 0.0
  %3364 = vmatpush1.msra.mxu0 0.0
  %3365 = vmatprep.subr.mxu0 0.0
  %3366 = vmatpush1.msra.mxu0 0.0
  %3367 = vmatprep.subr.mxu0 0.0
  %3368 = vmatpush1.msra.mxu0 0.0
  %3369 = vmatprep.subr.mxu0 0.0
  %3370 = vmatpush1.msra.mxu0 0.0
  %3371 = vmatprep.subr.mxu0 0.0
  %3372 = vmatpush1.msra.mxu0 0.0
  %3373 = vmatprep.subr.mxu0 0.0
  %3374 = vmatpush1.msra.mxu0 0.0
  %3375 = vmatprep.subr.mxu0 0.0
  %3376 = vmatpush1.msra.mxu0 0.0
  %3377 = vmatprep.subr.mxu0 0.0
  %3378 = vmatpush1.msra.mxu0 0.0
  %3379 = vmatprep.subr.mxu0 0.0
  %3380 = vmatpush1.msra.mxu0 0.0
  %3381 = vmatprep.subr.mxu0 0.0
  %3382 = vmatpush1.msra.mxu0 0.0
  %3383 = vmatprep.subr.mxu0 0.0
  %3384 = vmatpush1.msra.mxu0 0.0
  %3385 = vmatprep.subr.mxu0 0.0
  %3386 = vmatpush1.msra.mxu0 0.0
  %3387 = vmatprep.subr.mxu0 0.0
  %3388 = vmatpush1.msra.mxu0 0.0
  %3389 = vmatprep.subr.mxu0 0.0
  %3390 = vmatpush1.msra.mxu0 0.0
  %3391 = vmatprep.subr.mxu0 0.0
  %3392 = vmatpush1.msra.mxu0 0.0
  %3393 = vmatprep.subr.mxu0 0.0
  %3394 = vmatpush1.msra.mxu0 0.0
  %3395 = vmatprep.subr.mxu0 0.0
  %3396 = vmatpush1.msra.mxu0 0.0
  %3397 = vmatprep.subr.mxu0 0.0
  %3398 = vmatpush1.msra.mxu0 0.0
  %3399 = vmatprep.subr.mxu0 0.0
  %3400 = vmatpush1.msra.mxu0 0.0
  %3401 = vmatprep.subr.mxu0 0.0
  %3402 = vmatpush1.msra.mxu0 0.0
  %3403 = vmatprep.subr.mxu0 0.0
  %3404 = vmatpush1.msra.mxu0 0.0
  %3405 = vmatprep.mubr.f32.mxu0 0.0
  %3406 = vmatmul.mubr.f32.gmra.mrb[0].mxu0 %v3339
  %v3407 = vpop.f32.mrb[0].mxu0
  %v3408 = vadd.f32 %v3336, %v3407
  %v3409 = vpop.f32.mrb[0].mxu0
  %3410 = vdwg.mxu0
  %v3411 = vmax.f32 %v3408, 0.0
  %v3412 = vld [vmem:[%s20] sm:$0xff]
  %v3413 = vld [vmem:[%s20 + $0x8] sm:$0xff]
  %v3414 = vld [vmem:[%s20 + $0x10] sm:$0xff]
  %v3415 = vld [vmem:[%s20 + $0x18] sm:$0xff]
  %v3416 = vld [vmem:[%s21] sm:$0x1]
  %v3418 = vlaneseq
  %v3419 = vshrl.u32 %v3418, 7
  %v3420 = vsub.s32 0, %v3419
  %v3421 = vrot.slane %v3416, %v3420
  %v3424 = vsel %vm213, %v3411, 0
  %3426 = vmatprep.subr.mxu0 0.0
  %3427 = vmatpush1.msra.mxu0 %v3412
  %3428 = vmatprep.subr.mxu0 0.0
  %3429 = vmatpush1.msra.mxu0 %v3413
  %3430 = vmatprep.subr.mxu0 0.0
  %3431 = vmatpush1.msra.mxu0 %v3414
  %3432 = vmatprep.subr.mxu0 0.0
  %3433 = vmatpush1.msra.mxu0 %v3415
  %3434 = vmatprep.subr.mxu0 0.0
  %3435 = vmatpush1.msra.mxu0 0.0
  %3436 = vmatprep.subr.mxu0 0.0
  %3437 = vmatpush1.msra.mxu0 0.0
  %3438 = vmatprep.subr.mxu0 0.0
  %3439 = vmatpush1.msra.mxu0 0.0
  %3440 = vmatprep.subr.mxu0 0.0
  %3441 = vmatpush1.msra.mxu0 0.0
  %3442 = vmatprep.subr.mxu0 0.0
  %3443 = vmatpush1.msra.mxu0 0.0
  %3444 = vmatprep.subr.mxu0 0.0
  %3445 = vmatpush1.msra.mxu0 0.0
  %3446 = vmatprep.subr.mxu0 0.0
  %3447 = vmatpush1.msra.mxu0 0.0
  %3448 = vmatprep.subr.mxu0 0.0
  %3449 = vmatpush1.msra.mxu0 0.0
  %3450 = vmatprep.subr.mxu0 0.0
  %3451 = vmatpush1.msra.mxu0 0.0
  %3452 = vmatprep.subr.mxu0 0.0
  %3453 = vmatpush1.msra.mxu0 0.0
  %3454 = vmatprep.subr.mxu0 0.0
  %3455 = vmatpush1.msra.mxu0 0.0
  %3456 = vmatprep.subr.mxu0 0.0
  %3457 = vmatpush1.msra.mxu0 0.0
  %3458 = vmatprep.subr.mxu0 0.0
  %3459 = vmatpush1.msra.mxu0 0.0
  %3460 = vmatprep.subr.mxu0 0.0
  %3461 = vmatpush1.msra.mxu0 0.0
  %3462 = vmatprep.subr.mxu0 0.0
  %3463 = vmatpush1.msra.mxu0 0.0
  %3464 = vmatprep.subr.mxu0 0.0
  %3465 = vmatpush1.msra.mxu0 0.0
  %3466 = vmatprep.subr.mxu0 0.0
  %3467 = vmatpush1.msra.mxu0 0.0
  %3468 = vmatprep.subr.mxu0 0.0
  %3469 = vmatpush1.msra.mxu0 0.0
  %3470 = vmatprep.subr.mxu0 0.0
  %3471 = vmatpush1.msra.mxu0 0.0
  %3472 = vmatprep.subr.mxu0 0.0
  %3473 = vmatpush1.msra.mxu0 0.0
  %3474 = vmatprep.subr.mxu0 0.0
  %3475 = vmatpush1.msra.mxu0 0.0
  %3476 = vmatprep.subr.mxu0 0.0
  %3477 = vmatpush1.msra.mxu0 0.0
  %3478 = vmatprep.subr.mxu0 0.0
  %3479 = vmatpush1.msra.mxu0 0.0
  %3480 = vmatprep.subr.mxu0 0.0
  %3481 = vmatpush1.msra.mxu0 0.0
  %3482 = vmatprep.subr.mxu0 0.0
  %3483 = vmatpush1.msra.mxu0 0.0
  %3484 = vmatprep.subr.mxu0 0.0
  %3485 = vmatpush1.msra.mxu0 0.0
  %3486 = vmatprep.subr.mxu0 0.0
  %3487 = vmatpush1.msra.mxu0 0.0
  %3488 = vmatprep.subr.mxu0 0.0
  %3489 = vmatpush1.msra.mxu0 0.0
  %3490 = vmatprep.mubr.f32.mxu0 0.0
  %3491 = vmatmul.mubr.f32.gmra.mrb[0].mxu0 %v3424
  %v3492 = vpop.f32.mrb[0].mxu0
  %v3493 = vadd.f32 %v3421, %v3492
  %v3494 = vpop.f32.mrb[0].mxu0
  %3495 = vdwg.mxu0
  %v3496 = vmax.f32 %v3493, 0.0
  %v3497 = vld [vmem:[%s22] sm:$0xff]
  %v3498 = vld [vmem:[%s22 + $0x8] sm:$0xff]
  %v3499 = vld [vmem:[%s23] sm:$0x1]
  %v3501 = vlaneseq
  %v3502 = vshrl.u32 %v3501, 7
  %v3503 = vsub.s32 0, %v3502
  %v3504 = vrot.slane %v3499, %v3503
  %v3507 = vsel %vm389, %v3496, 0
  %3509 = vmatprep.subr.mxu0 0.0
  %3510 = vmatpush1.msra.mxu0 %v3497
  %3511 = vmatprep.subr.mxu0 0.0
  %3512 = vmatpush1.msra.mxu0 %v3498
  %3513 = vmatprep.subr.mxu0 0.0
  %3514 = vmatpush1.msra.mxu0 0.0
  %3515 = vmatprep.subr.mxu0 0.0
  %3516 = vmatpush1.msra.mxu0 0.0
  %3517 = vmatprep.subr.mxu0 0.0
  %3518 = vmatpush1.msra.mxu0 0.0
  %3519 = vmatprep.subr.mxu0 0.0
  %3520 = vmatpush1.msra.mxu0 0.0
  %3521 = vmatprep.subr.mxu0 0.0
  %3522 = vmatpush1.msra.mxu0 0.0
  %3523 = vmatprep.subr.mxu0 0.0
  %3524 = vmatpush1.msra.mxu0 0.0
  %3525 = vmatprep.subr.mxu0 0.0
  %3526 = vmatpush1.msra.mxu0 0.0
  %3527 = vmatprep.subr.mxu0 0.0
  %3528 = vmatpush1.msra.mxu0 0.0
  %3529 = vmatprep.subr.mxu0 0.0
  %3530 = vmatpush1.msra.mxu0 0.0
  %3531 = vmatprep.subr.mxu0 0.0
  %3532 = vmatpush1.msra.mxu0 0.0
  %3533 = vmatprep.subr.mxu0 0.0
  %3534 = vmatpush1.msra.mxu0 0.0
  %3535 = vmatprep.subr.mxu0 0.0
  %3536 = vmatpush1.msra.mxu0 0.0
  %3537 = vmatprep.subr.mxu0 0.0
  %3538 = vmatpush1.msra.mxu0 0.0
  %3539 = vmatprep.subr.mxu0 0.0
  %3540 = vmatpush1.msra.mxu0 0.0
  %3541 = vmatprep.subr.mxu0 0.0
  %3542 = vmatpush1.msra.mxu0 0.0
  %3543 = vmatprep.subr.mxu0 0.0
  %3544 = vmatpush1.msra.mxu0 0.0
  %3545 = vmatprep.subr.mxu0 0.0
  %3546 = vmatpush1.msra.mxu0 0.0
  %3547 = vmatprep.subr.mxu0 0.0
  %3548 = vmatpush1.msra.mxu0 0.0
  %3549 = vmatprep.subr.mxu0 0.0
  %3550 = vmatpush1.msra.mxu0 0.0
  %3551 = vmatprep.subr.mxu0 0.0
  %3552 = vmatpush1.msra.mxu0 0.0
  %3553 = vmatprep.subr.mxu0 0.0
  %3554 = vmatpush1.msra.mxu0 0.0
  %3555 = vmatprep.subr.mxu0 0.0
  %3556 = vmatpush1.msra.mxu0 0.0
  %3557 = vmatprep.subr.mxu0 0.0
  %3558 = vmatpush1.msra.mxu0 0.0
  %3559 = vmatprep.subr.mxu0 0.0
  %3560 = vmatpush1.msra.mxu0 0.0
  %3561 = vmatprep.subr.mxu0 0.0
  %3562 = vmatpush1.msra.mxu0 0.0
  %3563 = vmatprep.subr.mxu0 0.0
  %3564 = vmatpush1.msra.mxu0 0.0
  %3565 = vmatprep.subr.mxu0 0.0
  %3566 = vmatpush1.msra.mxu0 0.0
  %3567 = vmatprep.subr.mxu0 0.0
  %3568 = vmatpush1.msra.mxu0 0.0
  %3569 = vmatprep.subr.mxu0 0.0
  %3570 = vmatpush1.msra.mxu0 0.0
  %3571 = vmatprep.subr.mxu0 0.0
  %3572 = vmatpush1.msra.mxu0 0.0
  %3573 = vmatprep.mubr.f32.mxu0 0.0
  %3574 = vmatmul.mubr.f32.gmra.mrb[0].mxu0 %v3507
  %v3575 = vpop.f32.mrb[0].mxu0
  %v3576 = vadd.f32 %v3504, %v3575
  %v3577 = vpop.f32.mrb[0].mxu0
  %3578 = vdwg.mxu0
  %3579 = vst [vmem:[%s24] sm:$0x3] %v3576
  // Predicated region
  $region98: #{transformer_forward.1} parent=0 // pred_check
    _
  $region99: #{transformer_forward.1} parent=0 // pred_check_branch
    %3581 = sbr.rel (0) target = $region101
  $region100: #{transformer_forward.1} parent=0 // pred_region
    _
  $region101: #{transformer_forward.1} parent=0 // pred_fallthru
    _
  // Predicated region
  $region102: #{transformer_forward.1} parent=0 // pred_check
    _
  $region103: #{transformer_forward.1} parent=0 // pred_check_branch
    %3583 = sbr.rel (0) target = $region105
  $region104: #{transformer_forward.1} parent=0 // pred_region
    _
  $region105: #{transformer_forward.1} parent=0 // pred_fallthru
    _

</llo_original>
